<compile_context>
chip_gen: v5e
topology: v5e:2x2
jax: 0.10.0
libtpu: 0.0.40
codegen_flags: <defaults>
</compile_context>

<pallas_src>
import math
import functools

import jax
import jax.numpy as jnp
from jax import lax
from jax.experimental import pallas as pl
from jax.experimental.pallas import tpu as pltpu

LN_EPS = 1e-5  # PyTorch nn.LayerNorm default


# ---------------------------------------------------------------------------
# in-kernel helpers
# ---------------------------------------------------------------------------
def _layernorm(x, g, b):
    mu = jnp.mean(x, axis=-1, keepdims=True)
    var = jnp.mean(jnp.square(x - mu), axis=-1, keepdims=True)
    return (x - mu) * lax.rsqrt(var + LN_EPS) * g + b


def _gelu(x):  # exact GELU (erf), matches torch.nn.GELU default
    return 0.5 * x * (1.0 + lax.erf(x * (1.0 / math.sqrt(2.0))))


# ---------------------------------------------------------------------------
# Stage 1: cross-attention "column" kernel
#   grid = (B, num_hw_chunks); rgb streamed through a running max, then both
#   CrossAttention_csvit blocks are evaluated on the last chunk.
# ---------------------------------------------------------------------------
def _columns_kernel(rgb_ref, pt_ref,
                    wq1_ref, wk1_ref, wv1_ref, wp1_ref, bp1_ref,
                    wv2_ref, wp2_ref, bp2_ref,
                    rgbcol_ref, ptcol_ref,
                    max_sc,
                    *, num_heads, scale):
    f32, bf16 = jnp.float32, jnp.bfloat16
    r = pl.program_id(1)
    nr = pl.num_programs(1)

    @pl.when(r == 0)
    def _init():
        max_sc[...] = jnp.full_like(max_sc, -jnp.inf)

    # streamed running max over HW chunks (rgb is only ever consumed via this max)
    chunk = rgb_ref[0]                                              # (C, CHW) f32
    max_sc[...] = jnp.maximum(max_sc[...],
                              jnp.max(chunk, axis=1, keepdims=True))

    @pl.when(r == nr - 1)
    def _attend():
        pt = pt_ref[0]                                              # (C, NP) f32, native layout
        qmax_rgb = jnp.transpose(max_sc[...])                       # (1, C)
        qmax_pt = jnp.transpose(jnp.max(pt, axis=1, keepdims=True))  # (1, C)
        pt_t = jnp.transpose(pt).astype(bf16)                       # (NP, C), in-kernel XLU transpose
        qb = qmax_rgb.astype(bf16)

        # ---- pre_p2r_attn(query = max_HW(rgb), kv = point tokens) ----------
        att = None
        for h in range(num_heads):   # head-major weights: no lane slices / concat
            q_h = jnp.dot(qb, wq1_ref[h], preferred_element_type=f32)      # (1, hd)
            k_h = jnp.dot(pt_t, wk1_ref[h], preferred_element_type=f32)    # (NP, hd)
            v_h = jnp.dot(pt_t, wv1_ref[h], preferred_element_type=f32)    # (NP, hd)
            s = jnp.einsum('qd,kd->qk', q_h.astype(bf16), k_h.astype(bf16),
                           preferred_element_type=f32) * scale             # (1, NP)
            s = s - jnp.max(s, axis=-1, keepdims=True)
            p = jnp.exp(s)
            p = p * pl.reciprocal(jnp.sum(p, axis=-1, keepdims=True), approx=True)
            o_h = jnp.dot(p.astype(bf16), v_h.astype(bf16),
                          preferred_element_type=f32)                      # (1, hd)
            part = jnp.dot(o_h.astype(bf16), wp1_ref[h],
                           preferred_element_type=f32)                     # (1, C)
            att = part if att is None else att + part
        rgb_col = att + bp1_ref[...] + qmax_rgb      # proj bias + residual; proj_drop = id

        # ---- pre_r2p_attn(query = max_NP(point), kv = rgb_new) -------------
        # every kv row equals rgb_col => softmax is exactly uniform and the
        # attention output collapses to wv(rgb_col); wq / wk drop out.
        a2 = jnp.dot(rgb_col.astype(bf16), wv2_ref[...], preferred_element_type=f32)
        a2 = jnp.dot(a2.astype(bf16), wp2_ref[...], preferred_element_type=f32)
        pt_col = a2 + bp2_ref[...] + qmax_pt

        rgbcol_ref[0] = rgb_col
        ptcol_ref[0] = pt_col


# ---------------------------------------------------------------------------
# Stage 2: flash-tiled TransformerBlock (n_layer = 1) + ln_f
#   grid = (B, num_q_tiles, num_kv_tiles); kv axis is the online-softmax loop.
# ---------------------------------------------------------------------------
def _transformer_kernel(rgbcol_ref, ptcol_ref, pos_q_ref, pos_k_ref,
                        wq_ref, wk_ref, wv_ref, wo_ref, w1_ref, w2_ref,
                        bq_ref, bk_ref, bv_ref, bo_ref, b1_ref, b2_ref, lnp_ref,
                        out_ref,
                        q_sc, m_sc, l_sc, acc_sc,
                        *, num_heads, hw, tq, tk, scale):
    f32, bf16 = jnp.float32, jnp.bfloat16
    i = pl.program_id(1)
    j = pl.program_id(2)
    nk = pl.num_programs(2)

    rgb_col = rgbcol_ref[0]                     # (1, C) f32
    pt_col = ptcol_ref[0]                       # (1, C) f32

    lnp = lnp_ref[...]                          # (6, C): ln1 g/b, ln2 g/b, lnf g/b
    ln1g, ln1b = lnp[0:1], lnp[1:2]
    ln2g, ln2b = lnp[2:3], lnp[3:4]
    lnfg, lnfb = lnp[4:5], lnp[5:6]

    # tokens for the current query tile, rebuilt from the two column vectors
    # plus the per-tile pos_emb block (no full (T, C) token slab anywhere).
    rows_q = lax.broadcasted_iota(jnp.int32, (tq, 1), 0) + i * tq
    tok_q = jnp.where(rows_q < hw, rgb_col, pt_col) + pos_q_ref[...].astype(f32)

    @pl.when(j == 0)
    def _init():
        xn = _layernorm(tok_q, ln1g, ln1b).astype(bf16)
        for h in range(num_heads):
            q_sc[h] = (jnp.dot(xn, wq_ref[h], preferred_element_type=f32)
                       + bq_ref[h]).astype(bf16)
        m_sc[...] = jnp.full_like(m_sc, -jnp.inf)
        l_sc[...] = jnp.zeros_like(l_sc)
        acc_sc[...] = jnp.zeros_like(acc_sc)

    # tokens / K / V for the current key-value tile (one online-softmax step)
    rows_k = lax.broadcasted_iota(jnp.int32, (tk, 1), 0) + j * tk
    tok_k = jnp.where(rows_k < hw, rgb_col, pt_col) + pos_k_ref[...].astype(f32)
    xn_k = _layernorm(tok_k, ln1g, ln1b).astype(bf16)

    for h in range(num_heads):   # head-major scratch: leading-axis ref slices only
        k_h = (jnp.dot(xn_k, wk_ref[h], preferred_element_type=f32)
               + bk_ref[h]).astype(bf16)                                    # (tk, hd)
        v_h = (jnp.dot(xn_k, wv_ref[h], preferred_element_type=f32)
               + bv_ref[h]).astype(bf16)                                    # (tk, hd)
        s = jnp.einsum('qd,kd->qk', q_sc[h], k_h,
                       preferred_element_type=f32) * scale                  # (tq, tk)
        m_prev = m_sc[h]
        m_new = jnp.maximum(m_prev, jnp.max(s, axis=-1, keepdims=True))
        alpha = jnp.exp(m_prev - m_new)
        p = jnp.exp(s - m_new)
        l_sc[h] = alpha * l_sc[h] + jnp.sum(p, axis=-1, keepdims=True)
        acc_sc[h] = alpha * acc_sc[h] + jnp.dot(p.astype(bf16), v_h,
                                                preferred_element_type=f32)
        m_sc[h] = m_new

    @pl.when(j == nk - 1)
    def _finalize():
        # attention output projection (attn_drop / resid_drop are identities)
        att = None
        for h in range(num_heads):
            inv = pl.reciprocal(l_sc[h], approx=True)                       # (tq, 1)
            o_h = (acc_sc[h] * inv).astype(bf16)                            # (tq, hd)
            part = jnp.dot(o_h, wo_ref[h], preferred_element_type=f32)      # (tq, C)
            att = part if att is None else att + part
        h1 = tok_q + att + bo_ref[...]

        # MLP fused per query tile
        yn = _layernorm(h1, ln2g, ln2b)
        z = _gelu(jnp.dot(yn.astype(bf16), w1_ref[...],
                          preferred_element_type=f32) + b1_ref[...])
        mlp = jnp.dot(z.astype(bf16), w2_ref[...],
                      preferred_element_type=f32) + b2_ref[...]
        h2 = h1 + mlp

        y = _layernorm(h2, lnfg, lnfb)                                      # (tq, C)
        # consumer layout: transpose to (C, tq) inside the kernel (XLU) so the
        # HBM store is lane-dense over T and the wrapper never re-transposes.
        out_ref[0] = jnp.transpose(y)


# ---------------------------------------------------------------------------
# tiling / compiler-param helpers
# ---------------------------------------------------------------------------
def _pick_tile(total, target):
    """Largest multiple of 128 that divides `total` and is <= target, else `total`."""
    if total <= target:
        return total
    best = None
    t = 128
    while t <= target:
        if total % t == 0:
            best = t
        t += 128
    # TODO(synk): totals not a multiple of 128 fall back to one full-extent tile;
    # a ragged tail would need masked tiles instead.
    return best if best is not None else total


def _vmem_limit_bytes():
    # Raise the scoped-VMEM ceiling above the 16/32 MiB defaults, capped below
    # the physical capacity (64 MiB on v7x, 128 MiB on v5e/v6e).
    try:
        cap = int(getattr(pltpu.get_tpu_info(), "vmem_capacity_bytes",
                          128 * 1024 * 1024))
    except Exception:
        cap = 64 * 1024 * 1024
    return int(min(cap - 8 * 1024 * 1024, 100 * 1024 * 1024))


def _const_spec(shape, grid_rank):
    """BlockSpec for a grid-invariant operand; single-buffered to save VMEM."""
    nd = len(shape)
    if grid_rank == 2:
        def imap(b, r):
            return (0,) * nd
    else:
        def imap(b, i, j):
            return (0,) * nd
    try:
        return pl.BlockSpec(shape, imap, pipeline_mode=pl.Buffered(1))
    except (TypeError, AttributeError):
        return pl.BlockSpec(shape, imap)


# ---------------------------------------------------------------------------
# wrapper
# ---------------------------------------------------------------------------
def dftr_forward(rgb_feat, point_feat, params, *, num_heads):
    """rgb_feat (B, C, HW), point_feat (B, C, NP) -> ((B, C, HW), (B, C, NP))."""
    B, C, HW = rgb_feat.shape
    NP = point_feat.shape[2]
    T = HW + NP
    HID = params["w1"].shape[1]
    hd = C // num_heads
    scale = 1.0 / math.sqrt(hd)  # same head_dim scale for cross- and self-attention
    vmem_limit = _vmem_limit_bytes()

    rgb = rgb_feat.astype(jnp.float32)     # native (B, C, HW): no wrapper transpose
    pt = point_feat.astype(jnp.float32)    # native (B, C, NP): no wrapper transpose

    # ---------------- stage 1: cross-attention column vectors ----------------
    chw = _pick_tile(HW, 2048)
    nr = HW // chw

    col_kernel = functools.partial(_columns_kernel, num_heads=num_heads, scale=scale)
    rgb_col, pt_col = pl.pallas_call(
        col_kernel,
        grid=(B, nr),
        in_specs=[
            pl.BlockSpec((1, C, chw), lambda b, r: (b, 0, r)),   # rgb HW chunk
            pl.BlockSpec((1, C, NP), lambda b, r: (b, 0, 0)),    # point (native layout)
            _const_spec(params["wq_p2r"].shape, 2),
            _const_spec(params["wk_p2r"].shape, 2),
            _const_spec(params["wv_p2r"].shape, 2),
            _const_spec(params["wp_p2r"].shape, 2),
            _const_spec(params["bp_p2r"].shape, 2),
            _const_spec(params["wv_r2p"].shape, 2),
            _const_spec(params["wp_r2p"].shape, 2),
            _const_spec(params["bp_r2p"].shape, 2),
        ],
        out_specs=[
            pl.BlockSpec((1, 1, C), lambda b, r: (b, 0, 0)),
            pl.BlockSpec((1, 1, C), lambda b, r: (b, 0, 0)),
        ],
        out_shape=[
            jax.ShapeDtypeStruct((B, 1, C), jnp.float32),
            jax.ShapeDtypeStruct((B, 1, C), jnp.float32),
        ],
        scratch_shapes=[pltpu.VMEM((C, 1), jnp.float32)],        # running max over HW
        compiler_params=pltpu.CompilerParams(
            dimension_semantics=("parallel", "arbitrary"),
            vmem_limit_bytes=vmem_limit),
    )(rgb, pt,
      params["wq_p2r"], params["wk_p2r"], params["wv_p2r"], params["wp_p2r"],
      params["bp_p2r"], params["wv_r2p"], params["wp_r2p"], params["bp_r2p"])

    # ---------------- stage 2: flash-tiled TransformerBlock + ln_f -----------
    tq = _pick_tile(T, 512)
    tk = _pick_tile(T, 512)
    nq = T // tq
    nk = T // tk

    flops = int(B * (8 * T * C * C + 4 * T * T * C + 4 * T * C * HID))
    transcendentals = int(B * (num_heads * T * T + T * HID))
    bytes_accessed = int(B * C * T * 4 + B * (nq + 1) * T * C * 2
                         + 2 * B * C * 4 + (4 * C * C + 2 * C * HID) * 2)
    cost = pl.CostEstimate(flops=flops, transcendentals=transcendentals,
                           bytes_accessed=bytes_accessed)

    tr_kernel = functools.partial(_transformer_kernel, num_heads=num_heads,
                                  hw=HW, tq=tq, tk=tk, scale=scale)
    y = pl.pallas_call(
        tr_kernel,
        grid=(B, nq, nk),
        in_specs=[
            pl.BlockSpec((1, 1, C), lambda b, i, j: (b, 0, 0)),   # rgb_col
            pl.BlockSpec((1, 1, C), lambda b, i, j: (b, 0, 0)),   # pt_col
            pl.BlockSpec((tq, C), lambda b, i, j: (i, 0)),        # pos_emb (query tile)
            pl.BlockSpec((tk, C), lambda b, i, j: (j, 0)),        # pos_emb (kv tile)
            _const_spec(params["wq_sa"].shape, 3),
            _const_spec(params["wk_sa"].shape, 3),
            _const_spec(params["wv_sa"].shape, 3),
            _const_spec(params["wo_sa"].shape, 3),
            _const_spec(params["w1"].shape, 3),
            _const_spec(params["w2"].shape, 3),
            _const_spec(params["bq_sa"].shape, 3),
            _const_spec(params["bk_sa"].shape, 3),
            _const_spec(params["bv_sa"].shape, 3),
            _const_spec(params["bo_sa"].shape, 3),
            _const_spec(params["b1"].shape, 3),
            _const_spec(params["b2"].shape, 3),
            _const_spec(params["lnp"].shape, 3),
        ],
        out_specs=pl.BlockSpec((1, C, tq), lambda b, i, j: (b, 0, i)),
        out_shape=jax.ShapeDtypeStruct((B, C, T), jnp.float32),
        scratch_shapes=[
            pltpu.VMEM((num_heads, tq, hd), jnp.bfloat16),  # q tile (head-major)
            pltpu.VMEM((num_heads, tq, 1), jnp.float32),    # online-softmax m
            pltpu.VMEM((num_heads, tq, 1), jnp.float32),    # online-softmax l
            pltpu.VMEM((num_heads, tq, hd), jnp.float32),   # attention accumulator
        ],
        compiler_params=pltpu.CompilerParams(
            dimension_semantics=("parallel", "parallel", "arbitrary"),
            vmem_limit_bytes=vmem_limit),
        cost_estimate=cost,
    )(rgb_col, pt_col, params["pos_emb"], params["pos_emb"],
      params["wq_sa"], params["wk_sa"], params["wv_sa"], params["wo_sa"],
      params["w1"], params["w2"],
      params["bq_sa"], params["bk_sa"], params["bv_sa"], params["bo_sa"],
      params["b1"], params["b2"], params["lnp"])

    # y is already in the consumer (B, C, T) layout; just split it.
    return y[:, :, :HW], y[:, :, HW:]


# ---------------------------------------------------------------------------
# Deterministic parameter init (matches DFTr._init_weights: Linear ~ N(0, 0.02),
# biases = 0, LayerNorm gamma = 1 / beta = 0, pos_emb = 0).  Weights are stored
# pre-transposed / head-major and in bf16 (MXU inputs); biases & LN params f32.
# ---------------------------------------------------------------------------
def init_params(key, d_model, num_heads, block_exp, total_tokens):
    C = d_model
    H = num_heads
    hd = C // H
    HID = block_exp * C
    bf16 = jnp.bfloat16
    keys = iter(jax.random.split(key, 16))

    def lin_t(out_f, in_f):  # torch Linear weight (out,in) stored transposed (in,out)
        w = jax.random.normal(next(keys), (out_f, in_f), jnp.float32) * 0.02
        return w.T

    def heads_in(wt):   # (C, C) -> (H, C, hd): per-head output-channel split
        return jnp.transpose(wt.reshape(C, H, hd), (1, 0, 2))

    def heads_out(wt):  # (C, C) -> (H, hd, C): per-head input-channel split
        return wt.reshape(H, hd, C)

    zeros_c = jnp.zeros((1, C), jnp.float32)
    lnp = jnp.zeros((6, C), jnp.float32)
    lnp = lnp.at[0].set(1.0).at[2].set(1.0).at[4].set(1.0)   # ln1/ln2/lnf gammas

    return {
        # pre_p2r_attn (qkv_bias=False, proj has bias)
        "wq_p2r": heads_in(lin_t(C, C)).astype(bf16),
        "wk_p2r": heads_in(lin_t(C, C)).astype(bf16),
        "wv_p2r": heads_in(lin_t(C, C)).astype(bf16),
        "wp_p2r": heads_out(lin_t(C, C)).astype(bf16),
        "bp_p2r": zeros_c,
        # pre_r2p_attn: wq/wk provably cancel (uniform softmax over identical kv rows)
        "wv_r2p": lin_t(C, C).astype(bf16),
        "wp_r2p": lin_t(C, C).astype(bf16),
        "bp_r2p": zeros_c,
        # TransformerBlock self-attention (all projections have biases)
        "wq_sa": heads_in(lin_t(C, C)).astype(bf16),
        "wk_sa": heads_in(lin_t(C, C)).astype(bf16),
        "wv_sa": heads_in(lin_t(C, C)).astype(bf16),
        "wo_sa": heads_out(lin_t(C, C)).astype(bf16),
        "bq_sa": jnp.zeros((H, 1, hd), jnp.float32),
        "bk_sa": jnp.zeros((H, 1, hd), jnp.float32),
        "bv_sa": jnp.zeros((H, 1, hd), jnp.float32),
        "bo_sa": zeros_c,
        # MLP
        "w1": lin_t(HID, C).astype(bf16),   # (C, HID)
        "b1": jnp.zeros((1, HID), jnp.float32),
        "w2": lin_t(C, HID).astype(bf16),   # (HID, C)
        "b2": zeros_c,
        # LayerNorm params (ln_input, ln_output, ln_f) and positional embedding
        "lnp": lnp,
        "pos_emb": jnp.zeros((total_tokens, C), bf16),
    }


if __name__ == "__main__":
    d_model, heads, block_exp = 32, 2, 2
    bs, hw, n_pts = 2, 16, 8   # small test sizes (rgb_anchors=16, point_anchors=8)

    key = jax.random.PRNGKey(0)
    kp, kr, kq = jax.random.split(key, 3)
    params = init_params(kp, d_model, heads, block_exp, hw + n_pts)

    rgb_feat = jax.random.normal(kr, (bs, d_model, hw), jnp.float32)
    point_feat = jax.random.normal(kq, (bs, d_model, n_pts), jnp.float32)

    fwd = jax.jit(functools.partial(dftr_forward, num_heads=heads))
    rgb_out, point_out = fwd(rgb_feat, point_feat, params)
    jax.block_until_ready((rgb_out, point_out))

    assert rgb_out.shape == (bs, d_model, hw), rgb_out.shape
    assert point_out.shape == (bs, d_model, n_pts), point_out.shape
    assert bool(jnp.all(jnp.isfinite(rgb_out))) and bool(jnp.all(jnp.isfinite(point_out)))
    print("KERNEL_OK")
</pallas_src>

<mosaic_0001>
module attributes {stable_mosaic.version = 11 : i64} {
  func.func @_columns_kernel(%arg0: i32, %arg1: i32, %arg2: memref<1x32x16xf32, #tpu.memory_space<vmem>>, %arg3: memref<1x32x8xf32, #tpu.memory_space<vmem>>, %arg4: memref<2x32x16xbf16, #tpu.memory_space<vmem>>, %arg5: memref<2x32x16xbf16, #tpu.memory_space<vmem>>, %arg6: memref<2x32x16xbf16, #tpu.memory_space<vmem>>, %arg7: memref<2x16x32xbf16, #tpu.memory_space<vmem>>, %arg8: memref<1x32xf32, #tpu.memory_space<vmem>>, %arg9: memref<32x32xbf16, #tpu.memory_space<vmem>>, %arg10: memref<32x32xbf16, #tpu.memory_space<vmem>>, %arg11: memref<1x32xf32, #tpu.memory_space<vmem>>, %arg12: memref<1x1x32xf32, #tpu.memory_space<vmem>>, %arg13: memref<1x1x32xf32, #tpu.memory_space<vmem>>, %arg14: memref<32x1xf32, #tpu.memory_space<vmem>>) attributes {dimension_semantics = [#tpu.dimension_semantics<parallel>, #tpu.dimension_semantics<arbitrary>], iteration_bounds = array<i64: 2, 1>, scalar_prefetch = 0 : i64, scratch_operands = 1 : i64, tpu.core_type = #tpu.core_type<tc>, window_params = [{transform_indices = @transform_0, window_bounds = array<i64: 1, 32, 16>}, {transform_indices = @transform_1, window_bounds = array<i64: 1, 32, 8>}, {pipeline_mode = #tpu.pipeline_mode<synchronous>, transform_indices = @transform_2, window_bounds = array<i64: 2, 32, 16>}, {pipeline_mode = #tpu.pipeline_mode<synchronous>, transform_indices = @transform_3, window_bounds = array<i64: 2, 32, 16>}, {pipeline_mode = #tpu.pipeline_mode<synchronous>, transform_indices = @transform_4, window_bounds = array<i64: 2, 32, 16>}, {pipeline_mode = #tpu.pipeline_mode<synchronous>, transform_indices = @transform_5, window_bounds = array<i64: 2, 16, 32>}, {pipeline_mode = #tpu.pipeline_mode<synchronous>, transform_indices = @transform_6, window_bounds = array<i64: 1, 32>}, {pipeline_mode = #tpu.pipeline_mode<synchronous>, transform_indices = @transform_7, window_bounds = array<i64: 32, 32>}, {pipeline_mode = #tpu.pipeline_mode<synchronous>, transform_indices = @transform_8, window_bounds = array<i64: 32, 32>}, {pipeline_mode = #tpu.pipeline_mode<synchronous>, transform_indices = @transform_9, window_bounds = array<i64: 1, 32>}, {transform_indices = @transform_10, window_bounds = array<i64: 1, 1, 32>}, {transform_indices = @transform_11, window_bounds = array<i64: 1, 1, 32>}]} {
    %c0_i32 = arith.constant 0 : i32
    %0 = arith.cmpi eq, %arg1, %c0_i32 : i32
    %1 = arith.extui %0 : i1 to i32
    %c0_i32_0 = arith.constant 0 : i32
    %2 = arith.cmpi ne, %1, %c0_i32_0 : i32
    scf.if %2 {
      %cst_9 = arith.constant 0xFF800000 : f32
      %13 = vector.broadcast %cst_9 : f32 to vector<32x1xf32>
      %c0_10 = arith.constant 0 : index
      %c0_11 = arith.constant 0 : index
      %14 = vector.load %arg14[%c0_10, %c0_11] : memref<32x1xf32, #tpu.memory_space<vmem>>, vector<32x1xf32>
      tpu.vector_store %arg14[%c0_10, %c0_11], %13 {strides = array<i32>} : memref<32x1xf32, #tpu.memory_space<vmem>>, vector<32x1xf32>,
    } else {
    }
    %c0 = arith.constant 0 : index
    %c0_1 = arith.constant 0 : index
    %c0_2 = arith.constant 0 : index
    %3 = vector.load %arg2[%c0, %c0_1, %c0_2] : memref<1x32x16xf32, #tpu.memory_space<vmem>>, vector<1x32x16xf32>
    %4 = vector.shape_cast %3 : vector<1x32x16xf32> to vector<32x16xf32>
    %c0_3 = arith.constant 0 : index
    %c0_4 = arith.constant 0 : index
    %5 = vector.load %arg14[%c0_3, %c0_4] : memref<32x1xf32, #tpu.memory_space<vmem>>, vector<32x1xf32>
    %cst = arith.constant dense<0xFF800000> : vector<32xf32>
    %6 = vector.multi_reduction <maximumf>, %4, %cst [1] : vector<32x16xf32> to vector<32xf32>
    %7 = vector.shape_cast %6 : vector<32xf32> to vector<32x1xf32>
    %8 = arith.maximumf %5, %7 : vector<32x1xf32>
    %c0_5 = arith.constant 0 : index
    %c0_6 = arith.constant 0 : index
    %9 = vector.load %arg14[%c0_5, %c0_6] : memref<32x1xf32, #tpu.memory_space<vmem>>, vector<32x1xf32>
    tpu.vector_store %arg14[%c0_5, %c0_6], %8 {strides = array<i32>} : memref<32x1xf32, #tpu.memory_space<vmem>>, vector<32x1xf32>,
    %c0_i32_7 = arith.constant 0 : i32
    %10 = arith.cmpi eq, %arg1, %c0_i32_7 : i32
    %11 = arith.extui %10 : i1 to i32
    %c0_i32_8 = arith.constant 0 : i32
    %12 = arith.cmpi ne, %11, %c0_i32_8 : i32
    scf.if %12 {
      %c0_9 = arith.constant 0 : index
      %c0_10 = arith.constant 0 : index
      %c0_11 = arith.constant 0 : index
      %13 = vector.load %arg3[%c0_9, %c0_10, %c0_11] : memref<1x32x8xf32, #tpu.memory_space<vmem>>, vector<1x32x8xf32>
      %14 = vector.shape_cast %13 : vector<1x32x8xf32> to vector<32x8xf32>
      %c0_12 = arith.constant 0 : index
      %c0_13 = arith.constant 0 : index
      %15 = vector.load %arg14[%c0_12, %c0_13] : memref<32x1xf32, #tpu.memory_space<vmem>>, vector<32x1xf32>
      %16 = tpu.transpose %15, [1, 0] : vector<32x1xf32> -> vector<1x32xf32>
      %cst_14 = arith.constant dense<0xFF800000> : vector<32xf32>
      %17 = vector.multi_reduction <maximumf>, %14, %cst_14 [1] : vector<32x8xf32> to vector<32xf32>
      %18 = vector.shape_cast %17 : vector<32xf32> to vector<32x1xf32>
      %19 = tpu.transpose %18, [1, 0] : vector<32x1xf32> -> vector<1x32xf32>
      %20 = tpu.transpose %14, [1, 0] : vector<32x8xf32> -> vector<8x32xf32>
      %21 = arith.truncf %20 : vector<8x32xf32> to vector<8x32xbf16>
      %22 = arith.truncf %16 : vector<1x32xf32> to vector<1x32xbf16>
      %c0_15 = arith.constant 0 : index
      %c0_16 = arith.constant 0 : index
      %c0_17 = arith.constant 0 : index
      %23 = vector.load %arg4[%c0_15, %c0_16, %c0_17] : memref<2x32x16xbf16, #tpu.memory_space<vmem>>, vector<1x32x16xbf16>
      %24 = vector.shape_cast %23 : vector<1x32x16xbf16> to vector<32x16xbf16>
      %cst_18 = arith.constant dense<0.000000e+00> : vector<1x16xf32>
      %25 = tpu.matmul %22, %24, %cst_18 {dimension_numbers = #tpu.dot_dimension_numbers<[1], [0], [0], [1], [0, 0, 1, 1], [], []>} : vector<1x32xbf16>, vector<32x16xbf16>, vector<1x16xf32> -> vector<1x16xf32>
      %c0_19 = arith.constant 0 : index
      %c0_20 = arith.constant 0 : index
      %c0_21 = arith.constant 0 : index
      %26 = vector.load %arg5[%c0_19, %c0_20, %c0_21] : memref<2x32x16xbf16, #tpu.memory_space<vmem>>, vector<1x32x16xbf16>
      %27 = vector.shape_cast %26 : vector<1x32x16xbf16> to vector<32x16xbf16>
      %cst_22 = arith.constant dense<0.000000e+00> : vector<8x16xf32>
      %28 = tpu.matmul %21, %27, %cst_22 {dimension_numbers = #tpu.dot_dimension_numbers<[1], [0], [0], [1], [0, 0, 1, 1], [], []>} : vector<8x32xbf16>, vector<32x16xbf16>, vector<8x16xf32> -> vector<8x16xf32>
      %c0_23 = arith.constant 0 : index
      %c0_24 = arith.constant 0 : index
      %c0_25 = arith.constant 0 : index
      %29 = vector.load %arg6[%c0_23, %c0_24, %c0_25] : memref<2x32x16xbf16, #tpu.memory_space<vmem>>, vector<1x32x16xbf16>
      %30 = vector.shape_cast %29 : vector<1x32x16xbf16> to vector<32x16xbf16>
      %cst_26 = arith.constant dense<0.000000e+00> : vector<8x16xf32>
      %31 = tpu.matmul %21, %30, %cst_26 {dimension_numbers = #tpu.dot_dimension_numbers<[1], [0], [0], [1], [0, 0, 1, 1], [], []>} : vector<8x32xbf16>, vector<32x16xbf16>, vector<8x16xf32> -> vector<8x16xf32>
      %32 = arith.truncf %25 : vector<1x16xf32> to vector<1x16xbf16>
      %33 = arith.truncf %28 : vector<8x16xf32> to vector<8x16xbf16>
      "tpu.trace_start"() <{level = 10 : i32, message = "qd,kd->qk"}> : () -> ()
      %cst_27 = arith.constant dense<0.000000e+00> : vector<1x8xf32>
      %34 = tpu.matmul %32, %33, %cst_27 {dimension_numbers = #tpu.dot_dimension_numbers<[1], [1], [0], [0], [0, 0, 1, 0], [], []>} : vector<1x16xbf16>, vector<8x16xbf16>, vector<1x8xf32> -> vector<1x8xf32>
      "tpu.trace_stop"() : () -> ()
      %cst_28 = arith.constant 2.500000e-01 : f32
      %35 = vector.broadcast %cst_28 : f32 to vector<1x8xf32>
      %36 = arith.mulf %34, %35 : vector<1x8xf32>
      %cst_29 = arith.constant dense<0xFF800000> : vector<1xf32>
      %37 = vector.multi_reduction <maximumf>, %36, %cst_29 [1] : vector<1x8xf32> to vector<1xf32>
      %38 = vector.shape_cast %37 : vector<1xf32> to vector<1x1xf32>
      %39 = vector.broadcast %38 : vector<1x1xf32> to vector<1x8xf32>
      %40 = arith.subf %36, %39 : vector<1x8xf32>
      %41 = math.exp %40 : vector<1x8xf32>
      %cst_30 = arith.constant dense<0.000000e+00> : vector<1xf32>
      %42 = vector.multi_reduction <add>, %41, %cst_30 [1] : vector<1x8xf32> to vector<1xf32>
      %43 = vector.shape_cast %42 : vector<1xf32> to vector<1x1xf32>
      %44 = tpu.reciprocal %43 {approx = true} : vector<1x1xf32> -> vector<1x1xf32>
      %45 = vector.broadcast %44 : vector<1x1xf32> to vector<1x8xf32>
      %46 = arith.mulf %41, %45 : vector<1x8xf32>
      %47 = arith.truncf %46 : vector<1x8xf32> to vector<1x8xbf16>
      %48 = arith.truncf %31 : vector<8x16xf32> to vector<8x16xbf16>
      %cst_31 = arith.constant dense<0.000000e+00> : vector<1x16xf32>
      %49 = tpu.matmul %47, %48, %cst_31 {dimension_numbers = #tpu.dot_dimension_numbers<[1], [0], [0], [1], [0, 0, 1, 1], [], []>} : vector<1x8xbf16>, vector<8x16xbf16>, vector<1x16xf32> -> vector<1x16xf32>
      %50 = arith.truncf %49 : vector<1x16xf32> to vector<1x16xbf16>
      %c0_32 = arith.constant 0 : index
      %c0_33 = arith.constant 0 : index
      %c0_34 = arith.constant 0 : index
      %51 = vector.load %arg7[%c0_32, %c0_33, %c0_34] : memref<2x16x32xbf16, #tpu.memory_space<vmem>>, vector<1x16x32xbf16>
      %52 = vector.shape_cast %51 : vector<1x16x32xbf16> to vector<16x32xbf16>
      %cst_35 = arith.constant dense<0.000000e+00> : vector<1x32xf32>
      %53 = tpu.matmul %50, %52, %cst_35 {dimension_numbers = #tpu.dot_dimension_numbers<[1], [0], [0], [1], [0, 0, 1, 1], [], []>} : vector<1x16xbf16>, vector<16x32xbf16>, vector<1x32xf32> -> vector<1x32xf32>
      %c1 = arith.constant 1 : index
      %c0_36 = arith.constant 0 : index
      %c0_37 = arith.constant 0 : index
      %54 = vector.load %arg4[%c1, %c0_36, %c0_37] : memref<2x32x16xbf16, #tpu.memory_space<vmem>>, vector<1x32x16xbf16>
      %55 = vector.shape_cast %54 : vector<1x32x16xbf16> to vector<32x16xbf16>
      %cst_38 = arith.constant dense<0.000000e+00> : vector<1x16xf32>
      %56 = tpu.matmul %22, %55, %cst_38 {dimension_numbers = #tpu.dot_dimension_numbers<[1], [0], [0], [1], [0, 0, 1, 1], [], []>} : vector<1x32xbf16>, vector<32x16xbf16>, vector<1x16xf32> -> vector<1x16xf32>
      %c1_39 = arith.constant 1 : index
      %c0_40 = arith.constant 0 : index
      %c0_41 = arith.constant 0 : index
      %57 = vector.load %arg5[%c1_39, %c0_40, %c0_41] : memref<2x32x16xbf16, #tpu.memory_space<vmem>>, vector<1x32x16xbf16>
      %58 = vector.shape_cast %57 : vector<1x32x16xbf16> to vector<32x16xbf16>
      %cst_42 = arith.constant dense<0.000000e+00> : vector<8x16xf32>
      %59 = tpu.matmul %21, %58, %cst_42 {dimension_numbers = #tpu.dot_dimension_numbers<[1], [0], [0], [1], [0, 0, 1, 1], [], []>} : vector<8x32xbf16>, vector<32x16xbf16>, vector<8x16xf32> -> vector<8x16xf32>
      %c1_43 = arith.constant 1 : index
      %c0_44 = arith.constant 0 : index
      %c0_45 = arith.constant 0 : index
      %60 = vector.load %arg6[%c1_43, %c0_44, %c0_45] : memref<2x32x16xbf16, #tpu.memory_space<vmem>>, vector<1x32x16xbf16>
      %61 = vector.shape_cast %60 : vector<1x32x16xbf16> to vector<32x16xbf16>
      %cst_46 = arith.constant dense<0.000000e+00> : vector<8x16xf32>
      %62 = tpu.matmul %21, %61, %cst_46 {dimension_numbers = #tpu.dot_dimension_numbers<[1], [0], [0], [1], [0, 0, 1, 1], [], []>} : vector<8x32xbf16>, vector<32x16xbf16>, vector<8x16xf32> -> vector<8x16xf32>
      %63 = arith.truncf %56 : vector<1x16xf32> to vector<1x16xbf16>
      %64 = arith.truncf %59 : vector<8x16xf32> to vector<8x16xbf16>
      "tpu.trace_start"() <{level = 10 : i32, message = "qd,kd->qk"}> : () -> ()
      %cst_47 = arith.constant dense<0.000000e+00> : vector<1x8xf32>
      %65 = tpu.matmul %63, %64, %cst_47 {dimension_numbers = #tpu.dot_dimension_numbers<[1], [1], [0], [0], [0, 0, 1, 0], [], []>} : vector<1x16xbf16>, vector<8x16xbf16>, vector<1x8xf32> -> vector<1x8xf32>
      "tpu.trace_stop"() : () -> ()
      %cst_48 = arith.constant 2.500000e-01 : f32
      %66 = vector.broadcast %cst_48 : f32 to vector<1x8xf32>
      %67 = arith.mulf %65, %66 : vector<1x8xf32>
      %cst_49 = arith.constant dense<0xFF800000> : vector<1xf32>
      %68 = vector.multi_reduction <maximumf>, %67, %cst_49 [1] : vector<1x8xf32> to vector<1xf32>
      %69 = vector.shape_cast %68 : vector<1xf32> to vector<1x1xf32>
      %70 = vector.broadcast %69 : vector<1x1xf32> to vector<1x8xf32>
      %71 = arith.subf %67, %70 : vector<1x8xf32>
      %72 = math.exp %71 : vector<1x8xf32>
      %cst_50 = arith.constant dense<0.000000e+00> : vector<1xf32>
      %73 = vector.multi_reduction <add>, %72, %cst_50 [1] : vector<1x8xf32> to vector<1xf32>
      %74 = vector.shape_cast %73 : vector<1xf32> to vector<1x1xf32>
      %75 = tpu.reciprocal %74 {approx = true} : vector<1x1xf32> -> vector<1x1xf32>
      %76 = vector.broadcast %75 : vector<1x1xf32> to vector<1x8xf32>
      %77 = arith.mulf %72, %76 : vector<1x8xf32>
      %78 = arith.truncf %77 : vector<1x8xf32> to vector<1x8xbf16>
      %79 = arith.truncf %62 : vector<8x16xf32> to vector<8x16xbf16>
      %cst_51 = arith.constant dense<0.000000e+00> : vector<1x16xf32>
      %80 = tpu.matmul %78, %79, %cst_51 {dimension_numbers = #tpu.dot_dimension_numbers<[1], [0], [0], [1], [0, 0, 1, 1], [], []>} : vector<1x8xbf16>, vector<8x16xbf16>, vector<1x16xf32> -> vector<1x16xf32>
      %81 = arith.truncf %80 : vector<1x16xf32> to vector<1x16xbf16>
      %c1_52 = arith.constant 1 : index
      %c0_53 = arith.constant 0 : index
      %c0_54 = arith.constant 0 : index
      %82 = vector.load %arg7[%c1_52, %c0_53, %c0_54] : memref<2x16x32xbf16, #tpu.memory_space<vmem>>, vector<1x16x32xbf16>
      %83 = vector.shape_cast %82 : vector<1x16x32xbf16> to vector<16x32xbf16>
      %cst_55 = arith.constant dense<0.000000e+00> : vector<1x32xf32>
      %84 = tpu.matmul %81, %83, %cst_55 {dimension_numbers = #tpu.dot_dimension_numbers<[1], [0], [0], [1], [0, 0, 1, 1], [], []>} : vector<1x16xbf16>, vector<16x32xbf16>, vector<1x32xf32> -> vector<1x32xf32>
      %85 = arith.addf %53, %84 : vector<1x32xf32>
      %c0_56 = arith.constant 0 : index
      %c0_57 = arith.constant 0 : index
      %86 = vector.load %arg8[%c0_56, %c0_57] : memref<1x32xf32, #tpu.memory_space<vmem>>, vector<1x32xf32>
      %87 = arith.addf %85, %86 : vector<1x32xf32>
      %88 = arith.addf %87, %16 : vector<1x32xf32>
      %89 = arith.truncf %88 : vector<1x32xf32> to vector<1x32xbf16>
      %c0_58 = arith.constant 0 : index
      %c0_59 = arith.constant 0 : index
      %90 = vector.load %arg9[%c0_58, %c0_59] : memref<32x32xbf16, #tpu.memory_space<vmem>>, vector<32x32xbf16>
      %cst_60 = arith.constant dense<0.000000e+00> : vector<1x32xf32>
      %91 = tpu.matmul %89, %90, %cst_60 {dimension_numbers = #tpu.dot_dimension_numbers<[1], [0], [0], [1], [0, 0, 1, 1], [], []>} : vector<1x32xbf16>, vector<32x32xbf16>, vector<1x32xf32> -> vector<1x32xf32>
      %92 = arith.truncf %91 : vector<1x32xf32> to vector<1x32xbf16>
      %c0_61 = arith.constant 0 : index
      %c0_62 = arith.constant 0 : index
      %93 = vector.load %arg10[%c0_61, %c0_62] : memref<32x32xbf16, #tpu.memory_space<vmem>>, vector<32x32xbf16>
      %cst_63 = arith.constant dense<0.000000e+00> : vector<1x32xf32>
      %94 = tpu.matmul %92, %93, %cst_63 {dimension_numbers = #tpu.dot_dimension_numbers<[1], [0], [0], [1], [0, 0, 1, 1], [], []>} : vector<1x32xbf16>, vector<32x32xbf16>, vector<1x32xf32> -> vector<1x32xf32>
      %c0_64 = arith.constant 0 : index
      %c0_65 = arith.constant 0 : index
      %95 = vector.load %arg11[%c0_64, %c0_65] : memref<1x32xf32, #tpu.memory_space<vmem>>, vector<1x32xf32>
      %96 = arith.addf %94, %95 : vector<1x32xf32>
      %97 = arith.addf %96, %19 : vector<1x32xf32>
      %c0_66 = arith.constant 0 : index
      %c0_67 = arith.constant 0 : index
      %c0_68 = arith.constant 0 : index
      %98 = vector.load %arg12[%c0_66, %c0_67, %c0_68] : memref<1x1x32xf32, #tpu.memory_space<vmem>>, vector<1x1x32xf32>
      %99 = vector.shape_cast %98 : vector<1x1x32xf32> to vector<1x32xf32>
      %100 = vector.shape_cast %88 : vector<1x32xf32> to vector<1x1x32xf32>
      tpu.vector_store %arg12[%c0_66, %c0_67, %c0_68], %100 {strides = array<i32>} : memref<1x1x32xf32, #tpu.memory_space<vmem>>, vector<1x1x32xf32>,
      %c0_69 = arith.constant 0 : index
      %c0_70 = arith.constant 0 : index
      %c0_71 = arith.constant 0 : index
      %101 = vector.load %arg13[%c0_69, %c0_70, %c0_71] : memref<1x1x32xf32, #tpu.memory_space<vmem>>, vector<1x1x32xf32>
      %102 = vector.shape_cast %101 : vector<1x1x32xf32> to vector<1x32xf32>
      %103 = vector.shape_cast %97 : vector<1x32xf32> to vector<1x1x32xf32>
      tpu.vector_store %arg13[%c0_69, %c0_70, %c0_71], %103 {strides = array<i32>} : memref<1x1x32xf32, #tpu.memory_space<vmem>>, vector<1x1x32xf32>,
    } else {
    }
    return
  }
  func.func @transform_0(%arg0: i32, %arg1: i32) -> (i32, i32, i32) {
    %c0_i32 = arith.constant 0 : i32
    %c0_i32_0 = arith.constant 0 : i32
    return %arg0, %c0_i32, %arg1 : i32, i32, i32
  }
  func.func @transform_1(%arg0: i32, %arg1: i32) -> (i32, i32, i32) {
    %c0_i32 = arith.constant 0 : i32
    %c0_i32_0 = arith.constant 0 : i32
    %c0_i32_1 = arith.constant 0 : i32
    return %arg0, %c0_i32, %c0_i32_0 : i32, i32, i32
  }
  func.func @transform_2(%arg0: i32, %arg1: i32) -> (i32, i32, i32) {
    %c0_i32 = arith.constant 0 : i32
    %c0_i32_0 = arith.constant 0 : i32
    %c0_i32_1 = arith.constant 0 : i32
    %c0_i32_2 = arith.constant 0 : i32
    return %c0_i32, %c0_i32_0, %c0_i32_1 : i32, i32, i32
  }
  func.func @transform_3(%arg0: i32, %arg1: i32) -> (i32, i32, i32) {
    %c0_i32 = arith.constant 0 : i32
    %c0_i32_0 = arith.constant 0 : i32
    %c0_i32_1 = arith.constant 0 : i32
    %c0_i32_2 = arith.constant 0 : i32
    return %c0_i32, %c0_i32_0, %c0_i32_1 : i32, i32, i32
  }
  func.func @transform_4(%arg0: i32, %arg1: i32) -> (i32, i32, i32) {
    %c0_i32 = arith.constant 0 : i32
    %c0_i32_0 = arith.constant 0 : i32
    %c0_i32_1 = arith.constant 0 : i32
    %c0_i32_2 = arith.constant 0 : i32
    return %c0_i32, %c0_i32_0, %c0_i32_1 : i32, i32, i32
  }
  func.func @transform_5(%arg0: i32, %arg1: i32) -> (i32, i32, i32) {
    %c0_i32 = arith.constant 0 : i32
    %c0_i32_0 = arith.constant 0 : i32
    %c0_i32_1 = arith.constant 0 : i32
    %c0_i32_2 = arith.constant 0 : i32
    return %c0_i32, %c0_i32_0, %c0_i32_1 : i32, i32, i32
  }
  func.func @transform_6(%arg0: i32, %arg1: i32) -> (i32, i32) {
    %c0_i32 = arith.constant 0 : i32
    %c0_i32_0 = arith.constant 0 : i32
    %c0_i32_1 = arith.constant 0 : i32
    return %c0_i32, %c0_i32_0 : i32, i32
  }
  func.func @transform_7(%arg0: i32, %arg1: i32) -> (i32, i32) {
    %c0_i32 = arith.constant 0 : i32
    %c0_i32_0 = arith.constant 0 : i32
    %c0_i32_1 = arith.constant 0 : i32
    return %c0_i32, %c0_i32_0 : i32, i32
  }
  func.func @transform_8(%arg0: i32, %arg1: i32) -> (i32, i32) {
    %c0_i32 = arith.constant 0 : i32
    %c0_i32_0 = arith.constant 0 : i32
    %c0_i32_1 = arith.constant 0 : i32
    return %c0_i32, %c0_i32_0 : i32, i32
  }
  func.func @transform_9(%arg0: i32, %arg1: i32) -> (i32, i32) {
    %c0_i32 = arith.constant 0 : i32
    %c0_i32_0 = arith.constant 0 : i32
    %c0_i32_1 = arith.constant 0 : i32
    return %c0_i32, %c0_i32_0 : i32, i32
  }
  func.func @transform_10(%arg0: i32, %arg1: i32) -> (i32, i32, i32) {
    %c0_i32 = arith.constant 0 : i32
    %c0_i32_0 = arith.constant 0 : i32
    %c0_i32_1 = arith.constant 0 : i32
    return %arg0, %c0_i32, %c0_i32_0 : i32, i32, i32
  }
  func.func @transform_11(%arg0: i32, %arg1: i32) -> (i32, i32, i32) {
    %c0_i32 = arith.constant 0 : i32
    %c0_i32_0 = arith.constant 0 : i32
    %c0_i32_1 = arith.constant 0 : i32
    return %arg0, %c0_i32, %c0_i32_0 : i32, i32, i32
  }
}

module attributes {stable_mosaic.version = 11 : i64} {
  func.func @_transformer_kernel(%arg0: i32, %arg1: i32, %arg2: i32, %arg3: memref<1x1x32xf32, #tpu.memory_space<vmem>>, %arg4: memref<1x1x32xf32, #tpu.memory_space<vmem>>, %arg5: memref<24x32xbf16, #tpu.memory_space<vmem>>, %arg6: memref<24x32xbf16, #tpu.memory_space<vmem>>, %arg7: memref<2x32x16xbf16, #tpu.memory_space<vmem>>, %arg8: memref<2x32x16xbf16, #tpu.memory_space<vmem>>, %arg9: memref<2x32x16xbf16, #tpu.memory_space<vmem>>, %arg10: memref<2x16x32xbf16, #tpu.memory_space<vmem>>, %arg11: memref<32x64xbf16, #tpu.memory_space<vmem>>, %arg12: memref<64x32xbf16, #tpu.memory_space<vmem>>, %arg13: memref<2x1x16xf32, #tpu.memory_space<vmem>>, %arg14: memref<2x1x16xf32, #tpu.memory_space<vmem>>, %arg15: memref<2x1x16xf32, #tpu.memory_space<vmem>>, %arg16: memref<1x32xf32, #tpu.memory_space<vmem>>, %arg17: memref<1x64xf32, #tpu.memory_space<vmem>>, %arg18: memref<1x32xf32, #tpu.memory_space<vmem>>, %arg19: memref<6x32xf32, #tpu.memory_space<vmem>>, %arg20: memref<1x32x24xf32, #tpu.memory_space<vmem>>, %arg21: memref<2x24x16xbf16, #tpu.memory_space<vmem>>, %arg22: memref<2x24x1xf32, #tpu.memory_space<vmem>>, %arg23: memref<2x24x1xf32, #tpu.memory_space<vmem>>, %arg24: memref<2x24x16xf32, #tpu.memory_space<vmem>>) attributes {dimension_semantics = [#tpu.dimension_semantics<parallel>, #tpu.dimension_semantics<parallel>, #tpu.dimension_semantics<arbitrary>], iteration_bounds = array<i64: 2, 1, 1>, scalar_prefetch = 0 : i64, scratch_operands = 4 : i64, tpu.core_type = #tpu.core_type<tc>, window_params = [{transform_indices = @transform_0, window_bounds = array<i64: 1, 1, 32>}, {transform_indices = @transform_1, window_bounds = array<i64: 1, 1, 32>}, {transform_indices = @transform_2, window_bounds = array<i64: 24, 32>}, {transform_indices = @transform_3, window_bounds = array<i64: 24, 32>}, {pipeline_mode = #tpu.pipeline_mode<synchronous>, transform_indices = @transform_4, window_bounds = array<i64: 2, 32, 16>}, {pipeline_mode = #tpu.pipeline_mode<synchronous>, transform_indices = @transform_5, window_bounds = array<i64: 2, 32, 16>}, {pipeline_mode = #tpu.pipeline_mode<synchronous>, transform_indices = @transform_6, window_bounds = array<i64: 2, 32, 16>}, {pipeline_mode = #tpu.pipeline_mode<synchronous>, transform_indices = @transform_7, window_bounds = array<i64: 2, 16, 32>}, {pipeline_mode = #tpu.pipeline_mode<synchronous>, transform_indices = @transform_8, window_bounds = array<i64: 32, 64>}, {pipeline_mode = #tpu.pipeline_mode<synchronous>, transform_indices = @transform_9, window_bounds = array<i64: 64, 32>}, {pipeline_mode = #tpu.pipeline_mode<synchronous>, transform_indices = @transform_10, window_bounds = array<i64: 2, 1, 16>}, {pipeline_mode = #tpu.pipeline_mode<synchronous>, transform_indices = @transform_11, window_bounds = array<i64: 2, 1, 16>}, {pipeline_mode = #tpu.pipeline_mode<synchronous>, transform_indices = @transform_12, window_bounds = array<i64: 2, 1, 16>}, {pipeline_mode = #tpu.pipeline_mode<synchronous>, transform_indices = @transform_13, window_bounds = array<i64: 1, 32>}, {pipeline_mode = #tpu.pipeline_mode<synchronous>, transform_indices = @transform_14, window_bounds = array<i64: 1, 64>}, {pipeline_mode = #tpu.pipeline_mode<synchronous>, transform_indices = @transform_15, window_bounds = array<i64: 1, 32>}, {pipeline_mode = #tpu.pipeline_mode<synchronous>, transform_indices = @transform_16, window_bounds = array<i64: 6, 32>}, {transform_indices = @transform_17, window_bounds = array<i64: 1, 32, 24>}]} {
    %c0 = arith.constant 0 : index
    %c0_0 = arith.constant 0 : index
    %c0_1 = arith.constant 0 : index
    %0 = vector.load %arg3[%c0, %c0_0, %c0_1] : memref<1x1x32xf32, #tpu.memory_space<vmem>>, vector<1x1x32xf32>
    %1 = vector.shape_cast %0 : vector<1x1x32xf32> to vector<1x32xf32>
    %c0_2 = arith.constant 0 : index
    %c0_3 = arith.constant 0 : index
    %c0_4 = arith.constant 0 : index
    %2 = vector.load %arg4[%c0_2, %c0_3, %c0_4] : memref<1x1x32xf32, #tpu.memory_space<vmem>>, vector<1x1x32xf32>
    %3 = vector.shape_cast %2 : vector<1x1x32xf32> to vector<1x32xf32>
    %c0_5 = arith.constant 0 : index
    %c0_6 = arith.constant 0 : index
    %4 = vector.load %arg19[%c0_5, %c0_6] : memref<6x32xf32, #tpu.memory_space<vmem>>, vector<6x32xf32>
    %5 = vector.extract_strided_slice %4 {offsets = [0, 0], sizes = [1, 32], strides = [1, 1]} : vector<6x32xf32> to vector<1x32xf32>
    %6 = vector.extract_strided_slice %4 {offsets = [1, 0], sizes = [1, 32], strides = [1, 1]} : vector<6x32xf32> to vector<1x32xf32>
    %7 = vector.extract_strided_slice %4 {offsets = [2, 0], sizes = [1, 32], strides = [1, 1]} : vector<6x32xf32> to vector<1x32xf32>
    %8 = vector.extract_strided_slice %4 {offsets = [3, 0], sizes = [1, 32], strides = [1, 1]} : vector<6x32xf32> to vector<1x32xf32>
    %9 = vector.extract_strided_slice %4 {offsets = [4, 0], sizes = [1, 32], strides = [1, 1]} : vector<6x32xf32> to vector<1x32xf32>
    %10 = vector.extract_strided_slice %4 {offsets = [5, 0], sizes = [1, 32], strides = [1, 1]} : vector<6x32xf32> to vector<1x32xf32>
    %11 = tpu.iota {dimensions = array<i32: 0>} : vector<24x1xi32>
    %c24_i32 = arith.constant 24 : i32
    %12 = arith.muli %arg1, %c24_i32 : i32
    %13 = vector.broadcast %12 : i32 to vector<24x1xi32>
    %14 = arith.addi %11, %13 : vector<24x1xi32>
    %c16_i32 = arith.constant 16 : i32
    %15 = vector.broadcast %c16_i32 : i32 to vector<24x1xi32>
    %16 = arith.cmpi slt, %14, %15 : vector<24x1xi32>
    %17 = vector.shape_cast %16 : vector<24x1xi1> to vector<24x1xi1>
    %18 = vector.broadcast %17 : vector<24x1xi1> to vector<24x32xi1>
    %19 = vector.shape_cast %1 : vector<1x32xf32> to vector<1x32xf32>
    %20 = vector.broadcast %19 : vector<1x32xf32> to vector<24x32xf32>
    %21 = vector.shape_cast %3 : vector<1x32xf32> to vector<1x32xf32>
    %22 = vector.broadcast %21 : vector<1x32xf32> to vector<24x32xf32>
    %23 = arith.select %18, %20, %22 : vector<24x32xi1>, vector<24x32xf32>
    %c0_7 = arith.constant 0 : index
    %c0_8 = arith.constant 0 : index
    %24 = vector.load %arg5[%c0_7, %c0_8] : memref<24x32xbf16, #tpu.memory_space<vmem>>, vector<24x32xbf16>
    %25 = arith.extf %24 : vector<24x32xbf16> to vector<24x32xf32>
    %26 = arith.addf %23, %25 : vector<24x32xf32>
    %c0_i32 = arith.constant 0 : i32
    %27 = arith.cmpi eq, %arg2, %c0_i32 : i32
    %28 = arith.extui %27 : i1 to i32
    %c0_i32_9 = arith.constant 0 : i32
    %29 = arith.cmpi ne, %28, %c0_i32_9 : i32
    scf.if %29 {
      %cst_99 = arith.constant dense<0.000000e+00> : vector<24xf32>
      %178 = vector.multi_reduction <add>, %26, %cst_99 [1] : vector<24x32xf32> to vector<24xf32>
      %179 = vector.shape_cast %178 : vector<24xf32> to vector<24x1xf32>
      %cst_100 = arith.constant 3.200000e+01 : f32
      %180 = vector.broadcast %cst_100 : f32 to vector<24x1xf32>
      %181 = arith.divf %179, %180 : vector<24x1xf32>
      %182 = vector.broadcast %181 : vector<24x1xf32> to vector<24x32xf32>
      %183 = arith.subf %26, %182 : vector<24x32xf32>
      %184 = arith.mulf %183, %183 : vector<24x32xf32>
      %cst_101 = arith.constant dense<0.000000e+00> : vector<24xf32>
      %185 = vector.multi_reduction <add>, %184, %cst_101 [1] : vector<24x32xf32> to vector<24xf32>
      %186 = vector.shape_cast %185 : vector<24xf32> to vector<24x1xf32>
      %cst_102 = arith.constant 3.200000e+01 : f32
      %187 = vector.broadcast %cst_102 : f32 to vector<24x1xf32>
      %188 = arith.divf %186, %187 : vector<24x1xf32>
      %189 = vector.broadcast %181 : vector<24x1xf32> to vector<24x32xf32>
      %190 = arith.subf %26, %189 : vector<24x32xf32>
      %cst_103 = arith.constant 9.99999974E-6 : f32
      %191 = vector.broadcast %cst_103 : f32 to vector<24x1xf32>
      %192 = arith.addf %188, %191 : vector<24x1xf32>
      %193 = math.rsqrt %192 : vector<24x1xf32>
      %194 = vector.broadcast %193 : vector<24x1xf32> to vector<24x32xf32>
      %195 = arith.mulf %190, %194 : vector<24x32xf32>
      %196 = vector.broadcast %5 : vector<1x32xf32> to vector<24x32xf32>
      %197 = arith.mulf %195, %196 : vector<24x32xf32>
      %198 = vector.broadcast %6 : vector<1x32xf32> to vector<24x32xf32>
      %199 = arith.addf %197, %198 : vector<24x32xf32>
      %200 = arith.truncf %199 : vector<24x32xf32> to vector<24x32xbf16>
      %c0_104 = arith.constant 0 : index
      %c0_105 = arith.constant 0 : index
      %c0_106 = arith.constant 0 : index
      %201 = vector.load %arg7[%c0_104, %c0_105, %c0_106] : memref<2x32x16xbf16, #tpu.memory_space<vmem>>, vector<1x32x16xbf16>
      %202 = vector.shape_cast %201 : vector<1x32x16xbf16> to vector<32x16xbf16>
      %cst_107 = arith.constant dense<0.000000e+00> : vector<24x16xf32>
      %203 = tpu.matmul %200, %202, %cst_107 {dimension_numbers = #tpu.dot_dimension_numbers<[1], [0], [0], [1], [0, 0, 1, 1], [], []>} : vector<24x32xbf16>, vector<32x16xbf16>, vector<24x16xf32> -> vector<24x16xf32>
      %c0_108 = arith.constant 0 : index
      %c0_109 = arith.constant 0 : index
      %c0_110 = arith.constant 0 : index
      %204 = vector.load %arg13[%c0_108, %c0_109, %c0_110] : memref<2x1x16xf32, #tpu.memory_space<vmem>>, vector<1x1x16xf32>
      %205 = vector.shape_cast %204 : vector<1x1x16xf32> to vector<1x16xf32>
      %206 = vector.broadcast %205 : vector<1x16xf32> to vector<24x16xf32>
      %207 = arith.addf %203, %206 : vector<24x16xf32>
      %208 = arith.truncf %207 : vector<24x16xf32> to vector<24x16xbf16>
      %c0_111 = arith.constant 0 : index
      %c0_112 = arith.constant 0 : index
      %c0_113 = arith.constant 0 : index
      %209 = vector.load %arg21[%c0_111, %c0_112, %c0_113] : memref<2x24x16xbf16, #tpu.memory_space<vmem>>, vector<1x24x16xbf16>
      %210 = vector.shape_cast %209 : vector<1x24x16xbf16> to vector<24x16xbf16>
      %211 = vector.shape_cast %208 : vector<24x16xbf16> to vector<1x24x16xbf16>
      tpu.vector_store %arg21[%c0_111, %c0_112, %c0_113], %211 {strides = array<i32>} : memref<2x24x16xbf16, #tpu.memory_space<vmem>>, vector<1x24x16xbf16>,
      %c1_114 = arith.constant 1 : index
      %c0_115 = arith.constant 0 : index
      %c0_116 = arith.constant 0 : index
      %212 = vector.load %arg7[%c1_114, %c0_115, %c0_116] : memref<2x32x16xbf16, #tpu.memory_space<vmem>>, vector<1x32x16xbf16>
      %213 = vector.shape_cast %212 : vector<1x32x16xbf16> to vector<32x16xbf16>
      %cst_117 = arith.constant dense<0.000000e+00> : vector<24x16xf32>
      %214 = tpu.matmul %200, %213, %cst_117 {dimension_numbers = #tpu.dot_dimension_numbers<[1], [0], [0], [1], [0, 0, 1, 1], [], []>} : vector<24x32xbf16>, vector<32x16xbf16>, vector<24x16xf32> -> vector<24x16xf32>
      %c1_118 = arith.constant 1 : index
      %c0_119 = arith.constant 0 : index
      %c0_120 = arith.constant 0 : index
      %215 = vector.load %arg13[%c1_118, %c0_119, %c0_120] : memref<2x1x16xf32, #tpu.memory_space<vmem>>, vector<1x1x16xf32>
      %216 = vector.shape_cast %215 : vector<1x1x16xf32> to vector<1x16xf32>
      %217 = vector.broadcast %216 : vector<1x16xf32> to vector<24x16xf32>
      %218 = arith.addf %214, %217 : vector<24x16xf32>
      %219 = arith.truncf %218 : vector<24x16xf32> to vector<24x16xbf16>
      %c1_121 = arith.constant 1 : index
      %c0_122 = arith.constant 0 : index
      %c0_123 = arith.constant 0 : index
      %220 = vector.load %arg21[%c1_121, %c0_122, %c0_123] : memref<2x24x16xbf16, #tpu.memory_space<vmem>>, vector<1x24x16xbf16>
      %221 = vector.shape_cast %220 : vector<1x24x16xbf16> to vector<24x16xbf16>
      %222 = vector.shape_cast %219 : vector<24x16xbf16> to vector<1x24x16xbf16>
      tpu.vector_store %arg21[%c1_121, %c0_122, %c0_123], %222 {strides = array<i32>} : memref<2x24x16xbf16, #tpu.memory_space<vmem>>, vector<1x24x16xbf16>,
      %cst_124 = arith.constant 0xFF800000 : f32
      %223 = vector.broadcast %cst_124 : f32 to vector<2x24x1xf32>
      %c0_125 = arith.constant 0 : index
      %c0_126 = arith.constant 0 : index
      %c0_127 = arith.constant 0 : index
      %224 = vector.load %arg22[%c0_125, %c0_126, %c0_127] : memref<2x24x1xf32, #tpu.memory_space<vmem>>, vector<2x24x1xf32>
      tpu.vector_store %arg22[%c0_125, %c0_126, %c0_127], %223 {strides = array<i32>} : memref<2x24x1xf32, #tpu.memory_space<vmem>>, vector<2x24x1xf32>,
      %cst_128 = arith.constant 0.000000e+00 : f32
      %225 = vector.broadcast %cst_128 : f32 to vector<2x24x1xf32>
      %c0_129 = arith.constant 0 : index
      %c0_130 = arith.constant 0 : index
      %c0_131 = arith.constant 0 : index
      %226 = vector.load %arg23[%c0_129, %c0_130, %c0_131] : memref<2x24x1xf32, #tpu.memory_space<vmem>>, vector<2x24x1xf32>
      tpu.vector_store %arg23[%c0_129, %c0_130, %c0_131], %225 {strides = array<i32>} : memref<2x24x1xf32, #tpu.memory_space<vmem>>, vector<2x24x1xf32>,
      %cst_132 = arith.constant 0.000000e+00 : f32
      %227 = vector.broadcast %cst_132 : f32 to vector<2x24x16xf32>
      %c0_133 = arith.constant 0 : index
      %c0_134 = arith.constant 0 : index
      %c0_135 = arith.constant 0 : index
      %228 = vector.load %arg24[%c0_133, %c0_134, %c0_135] : memref<2x24x16xf32, #tpu.memory_space<vmem>>, vector<2x24x16xf32>
      tpu.vector_store %arg24[%c0_133, %c0_134, %c0_135], %227 {strides = array<i32>} : memref<2x24x16xf32, #tpu.memory_space<vmem>>, vector<2x24x16xf32>,
    } else {
    }
    %30 = tpu.iota {dimensions = array<i32: 0>} : vector<24x1xi32>
    %c24_i32_10 = arith.constant 24 : i32
    %31 = arith.muli %arg2, %c24_i32_10 : i32
    %32 = vector.broadcast %31 : i32 to vector<24x1xi32>
    %33 = arith.addi %30, %32 : vector<24x1xi32>
    %c16_i32_11 = arith.constant 16 : i32
    %34 = vector.broadcast %c16_i32_11 : i32 to vector<24x1xi32>
    %35 = arith.cmpi slt, %33, %34 : vector<24x1xi32>
    %36 = vector.shape_cast %35 : vector<24x1xi1> to vector<24x1xi1>
    %37 = vector.broadcast %36 : vector<24x1xi1> to vector<24x32xi1>
    %38 = vector.shape_cast %1 : vector<1x32xf32> to vector<1x32xf32>
    %39 = vector.broadcast %38 : vector<1x32xf32> to vector<24x32xf32>
    %40 = vector.shape_cast %3 : vector<1x32xf32> to vector<1x32xf32>
    %41 = vector.broadcast %40 : vector<1x32xf32> to vector<24x32xf32>
    %42 = arith.select %37, %39, %41 : vector<24x32xi1>, vector<24x32xf32>
    %c0_12 = arith.constant 0 : index
    %c0_13 = arith.constant 0 : index
    %43 = vector.load %arg6[%c0_12, %c0_13] : memref<24x32xbf16, #tpu.memory_space<vmem>>, vector<24x32xbf16>
    %44 = arith.extf %43 : vector<24x32xbf16> to vector<24x32xf32>
    %45 = arith.addf %42, %44 : vector<24x32xf32>
    %cst = arith.constant dense<0.000000e+00> : vector<24xf32>
    %46 = vector.multi_reduction <add>, %45, %cst [1] : vector<24x32xf32> to vector<24xf32>
    %47 = vector.shape_cast %46 : vector<24xf32> to vector<24x1xf32>
    %cst_14 = arith.constant 3.200000e+01 : f32
    %48 = vector.broadcast %cst_14 : f32 to vector<24x1xf32>
    %49 = arith.divf %47, %48 : vector<24x1xf32>
    %50 = vector.broadcast %49 : vector<24x1xf32> to vector<24x32xf32>
    %51 = arith.subf %45, %50 : vector<24x32xf32>
    %52 = arith.mulf %51, %51 : vector<24x32xf32>
    %cst_15 = arith.constant dense<0.000000e+00> : vector<24xf32>
    %53 = vector.multi_reduction <add>, %52, %cst_15 [1] : vector<24x32xf32> to vector<24xf32>
    %54 = vector.shape_cast %53 : vector<24xf32> to vector<24x1xf32>
    %cst_16 = arith.constant 3.200000e+01 : f32
    %55 = vector.broadcast %cst_16 : f32 to vector<24x1xf32>
    %56 = arith.divf %54, %55 : vector<24x1xf32>
    %57 = vector.broadcast %49 : vector<24x1xf32> to vector<24x32xf32>
    %58 = arith.subf %45, %57 : vector<24x32xf32>
    %cst_17 = arith.constant 9.99999974E-6 : f32
    %59 = vector.broadcast %cst_17 : f32 to vector<24x1xf32>
    %60 = arith.addf %56, %59 : vector<24x1xf32>
    %61 = math.rsqrt %60 : vector<24x1xf32>
    %62 = vector.broadcast %61 : vector<24x1xf32> to vector<24x32xf32>
    %63 = arith.mulf %58, %62 : vector<24x32xf32>
    %64 = vector.broadcast %5 : vector<1x32xf32> to vector<24x32xf32>
    %65 = arith.mulf %63, %64 : vector<24x32xf32>
    %66 = vector.broadcast %6 : vector<1x32xf32> to vector<24x32xf32>
    %67 = arith.addf %65, %66 : vector<24x32xf32>
    %68 = arith.truncf %67 : vector<24x32xf32> to vector<24x32xbf16>
    %c0_18 = arith.constant 0 : index
    %c0_19 = arith.constant 0 : index
    %c0_20 = arith.constant 0 : index
    %69 = vector.load %arg8[%c0_18, %c0_19, %c0_20] : memref<2x32x16xbf16, #tpu.memory_space<vmem>>, vector<1x32x16xbf16>
    %70 = vector.shape_cast %69 : vector<1x32x16xbf16> to vector<32x16xbf16>
    %cst_21 = arith.constant dense<0.000000e+00> : vector<24x16xf32>
    %71 = tpu.matmul %68, %70, %cst_21 {dimension_numbers = #tpu.dot_dimension_numbers<[1], [0], [0], [1], [0, 0, 1, 1], [], []>} : vector<24x32xbf16>, vector<32x16xbf16>, vector<24x16xf32> -> vector<24x16xf32>
    %c0_22 = arith.constant 0 : index
    %c0_23 = arith.constant 0 : index
    %c0_24 = arith.constant 0 : index
    %72 = vector.load %arg14[%c0_22, %c0_23, %c0_24] : memref<2x1x16xf32, #tpu.memory_space<vmem>>, vector<1x1x16xf32>
    %73 = vector.shape_cast %72 : vector<1x1x16xf32> to vector<1x16xf32>
    %74 = vector.broadcast %73 : vector<1x16xf32> to vector<24x16xf32>
    %75 = arith.addf %71, %74 : vector<24x16xf32>
    %76 = arith.truncf %75 : vector<24x16xf32> to vector<24x16xbf16>
    %c0_25 = arith.constant 0 : index
    %c0_26 = arith.constant 0 : index
    %c0_27 = arith.constant 0 : index
    %77 = vector.load %arg9[%c0_25, %c0_26, %c0_27] : memref<2x32x16xbf16, #tpu.memory_space<vmem>>, vector<1x32x16xbf16>
    %78 = vector.shape_cast %77 : vector<1x32x16xbf16> to vector<32x16xbf16>
    %cst_28 = arith.constant dense<0.000000e+00> : vector<24x16xf32>
    %79 = tpu.matmul %68, %78, %cst_28 {dimension_numbers = #tpu.dot_dimension_numbers<[1], [0], [0], [1], [0, 0, 1, 1], [], []>} : vector<24x32xbf16>, vector<32x16xbf16>, vector<24x16xf32> -> vector<24x16xf32>
    %c0_29 = arith.constant 0 : index
    %c0_30 = arith.constant 0 : index
    %c0_31 = arith.constant 0 : index
    %80 = vector.load %arg15[%c0_29, %c0_30, %c0_31] : memref<2x1x16xf32, #tpu.memory_space<vmem>>, vector<1x1x16xf32>
    %81 = vector.shape_cast %80 : vector<1x1x16xf32> to vector<1x16xf32>
    %82 = vector.broadcast %81 : vector<1x16xf32> to vector<24x16xf32>
    %83 = arith.addf %79, %82 : vector<24x16xf32>
    %84 = arith.truncf %83 : vector<24x16xf32> to vector<24x16xbf16>
    %c0_32 = arith.constant 0 : index
    %c0_33 = arith.constant 0 : index
    %c0_34 = arith.constant 0 : index
    %85 = vector.load %arg21[%c0_32, %c0_33, %c0_34] : memref<2x24x16xbf16, #tpu.memory_space<vmem>>, vector<1x24x16xbf16>
    %86 = vector.shape_cast %85 : vector<1x24x16xbf16> to vector<24x16xbf16>
    "tpu.trace_start"() <{level = 10 : i32, message = "qd,kd->qk"}> : () -> ()
    %cst_35 = arith.constant dense<0.000000e+00> : vector<24x24xf32>
    %87 = tpu.matmul %86, %76, %cst_35 {dimension_numbers = #tpu.dot_dimension_numbers<[1], [1], [0], [0], [0, 0, 1, 0], [], []>} : vector<24x16xbf16>, vector<24x16xbf16>, vector<24x24xf32> -> vector<24x24xf32>
    "tpu.trace_stop"() : () -> ()
    %cst_36 = arith.constant 2.500000e-01 : f32
    %88 = vector.broadcast %cst_36 : f32 to vector<24x24xf32>
    %89 = arith.mulf %87, %88 : vector<24x24xf32>
    %c0_37 = arith.constant 0 : index
    %c0_38 = arith.constant 0 : index
    %c0_39 = arith.constant 0 : index
    %90 = vector.load %arg22[%c0_37, %c0_38, %c0_39] : memref<2x24x1xf32, #tpu.memory_space<vmem>>, vector<1x24x1xf32>
    %91 = vector.shape_cast %90 : vector<1x24x1xf32> to vector<24x1xf32>
    %cst_40 = arith.constant dense<0xFF800000> : vector<24xf32>
    %92 = vector.multi_reduction <maximumf>, %89, %cst_40 [1] : vector<24x24xf32> to vector<24xf32>
    %93 = vector.shape_cast %92 : vector<24xf32> to vector<24x1xf32>
    %94 = arith.maximumf %91, %93 : vector<24x1xf32>
    %95 = arith.subf %91, %94 : vector<24x1xf32>
    %96 = math.exp %95 : vector<24x1xf32>
    %97 = vector.broadcast %94 : vector<24x1xf32> to vector<24x24xf32>
    %98 = arith.subf %89, %97 : vector<24x24xf32>
    %99 = math.exp %98 : vector<24x24xf32>
    %c0_41 = arith.constant 0 : index
    %c0_42 = arith.constant 0 : index
    %c0_43 = arith.constant 0 : index
    %100 = vector.load %arg23[%c0_41, %c0_42, %c0_43] : memref<2x24x1xf32, #tpu.memory_space<vmem>>, vector<1x24x1xf32>
    %101 = vector.shape_cast %100 : vector<1x24x1xf32> to vector<24x1xf32>
    %102 = arith.mulf %96, %101 : vector<24x1xf32>
    %cst_44 = arith.constant dense<0.000000e+00> : vector<24xf32>
    %103 = vector.multi_reduction <add>, %99, %cst_44 [1] : vector<24x24xf32> to vector<24xf32>
    %104 = vector.shape_cast %103 : vector<24xf32> to vector<24x1xf32>
    %105 = arith.addf %102, %104 : vector<24x1xf32>
    %c0_45 = arith.constant 0 : index
    %c0_46 = arith.constant 0 : index
    %c0_47 = arith.constant 0 : index
    %106 = vector.load %arg23[%c0_45, %c0_46, %c0_47] : memref<2x24x1xf32, #tpu.memory_space<vmem>>, vector<1x24x1xf32>
    %107 = vector.shape_cast %106 : vector<1x24x1xf32> to vector<24x1xf32>
    %108 = vector.shape_cast %105 : vector<24x1xf32> to vector<1x24x1xf32>
    tpu.vector_store %arg23[%c0_45, %c0_46, %c0_47], %108 {strides = array<i32>} : memref<2x24x1xf32, #tpu.memory_space<vmem>>, vector<1x24x1xf32>,
    %c0_48 = arith.constant 0 : index
    %c0_49 = arith.constant 0 : index
    %c0_50 = arith.constant 0 : index
    %109 = vector.load %arg24[%c0_48, %c0_49, %c0_50] : memref<2x24x16xf32, #tpu.memory_space<vmem>>, vector<1x24x16xf32>
    %110 = vector.shape_cast %109 : vector<1x24x16xf32> to vector<24x16xf32>
    %111 = vector.broadcast %96 : vector<24x1xf32> to vector<24x16xf32>
    %112 = arith.mulf %111, %110 : vector<24x16xf32>
    %113 = arith.truncf %99 : vector<24x24xf32> to vector<24x24xbf16>
    %cst_51 = arith.constant dense<0.000000e+00> : vector<24x16xf32>
    %114 = tpu.matmul %113, %84, %cst_51 {dimension_numbers = #tpu.dot_dimension_numbers<[1], [0], [0], [1], [0, 0, 1, 1], [], []>} : vector<24x24xbf16>, vector<24x16xbf16>, vector<24x16xf32> -> vector<24x16xf32>
    %115 = arith.addf %112, %114 : vector<24x16xf32>
    %c0_52 = arith.constant 0 : index
    %c0_53 = arith.constant 0 : index
    %c0_54 = arith.constant 0 : index
    %116 = vector.load %arg24[%c0_52, %c0_53, %c0_54] : memref<2x24x16xf32, #tpu.memory_space<vmem>>, vector<1x24x16xf32>
    %117 = vector.shape_cast %116 : vector<1x24x16xf32> to vector<24x16xf32>
    %118 = vector.shape_cast %115 : vector<24x16xf32> to vector<1x24x16xf32>
    tpu.vector_store %arg24[%c0_52, %c0_53, %c0_54], %118 {strides = array<i32>} : memref<2x24x16xf32, #tpu.memory_space<vmem>>, vector<1x24x16xf32>,
    %c0_55 = arith.constant 0 : index
    %c0_56 = arith.constant 0 : index
    %c0_57 = arith.constant 0 : index
    %119 = vector.load %arg22[%c0_55, %c0_56, %c0_57] : memref<2x24x1xf32, #tpu.memory_space<vmem>>, vector<1x24x1xf32>
    %120 = vector.shape_cast %119 : vector<1x24x1xf32> to vector<24x1xf32>
    %121 = vector.shape_cast %94 : vector<24x1xf32> to vector<1x24x1xf32>
    tpu.vector_store %arg22[%c0_55, %c0_56, %c0_57], %121 {strides = array<i32>} : memref<2x24x1xf32, #tpu.memory_space<vmem>>, vector<1x24x1xf32>,
    %c1 = arith.constant 1 : index
    %c0_58 = arith.constant 0 : index
    %c0_59 = arith.constant 0 : index
    %122 = vector.load %arg8[%c1, %c0_58, %c0_59] : memref<2x32x16xbf16, #tpu.memory_space<vmem>>, vector<1x32x16xbf16>
    %123 = vector.shape_cast %122 : vector<1x32x16xbf16> to vector<32x16xbf16>
    %cst_60 = arith.constant dense<0.000000e+00> : vector<24x16xf32>
    %124 = tpu.matmul %68, %123, %cst_60 {dimension_numbers = #tpu.dot_dimension_numbers<[1], [0], [0], [1], [0, 0, 1, 1], [], []>} : vector<24x32xbf16>, vector<32x16xbf16>, vector<24x16xf32> -> vector<24x16xf32>
    %c1_61 = arith.constant 1 : index
    %c0_62 = arith.constant 0 : index
    %c0_63 = arith.constant 0 : index
    %125 = vector.load %arg14[%c1_61, %c0_62, %c0_63] : memref<2x1x16xf32, #tpu.memory_space<vmem>>, vector<1x1x16xf32>
    %126 = vector.shape_cast %125 : vector<1x1x16xf32> to vector<1x16xf32>
    %127 = vector.broadcast %126 : vector<1x16xf32> to vector<24x16xf32>
    %128 = arith.addf %124, %127 : vector<24x16xf32>
    %129 = arith.truncf %128 : vector<24x16xf32> to vector<24x16xbf16>
    %c1_64 = arith.constant 1 : index
    %c0_65 = arith.constant 0 : index
    %c0_66 = arith.constant 0 : index
    %130 = vector.load %arg9[%c1_64, %c0_65, %c0_66] : memref<2x32x16xbf16, #tpu.memory_space<vmem>>, vector<1x32x16xbf16>
    %131 = vector.shape_cast %130 : vector<1x32x16xbf16> to vector<32x16xbf16>
    %cst_67 = arith.constant dense<0.000000e+00> : vector<24x16xf32>
    %132 = tpu.matmul %68, %131, %cst_67 {dimension_numbers = #tpu.dot_dimension_numbers<[1], [0], [0], [1], [0, 0, 1, 1], [], []>} : vector<24x32xbf16>, vector<32x16xbf16>, vector<24x16xf32> -> vector<24x16xf32>
    %c1_68 = arith.constant 1 : index
    %c0_69 = arith.constant 0 : index
    %c0_70 = arith.constant 0 : index
    %133 = vector.load %arg15[%c1_68, %c0_69, %c0_70] : memref<2x1x16xf32, #tpu.memory_space<vmem>>, vector<1x1x16xf32>
    %134 = vector.shape_cast %133 : vector<1x1x16xf32> to vector<1x16xf32>
    %135 = vector.broadcast %134 : vector<1x16xf32> to vector<24x16xf32>
    %136 = arith.addf %132, %135 : vector<24x16xf32>
    %137 = arith.truncf %136 : vector<24x16xf32> to vector<24x16xbf16>
    %c1_71 = arith.constant 1 : index
    %c0_72 = arith.constant 0 : index
    %c0_73 = arith.constant 0 : index
    %138 = vector.load %arg21[%c1_71, %c0_72, %c0_73] : memref<2x24x16xbf16, #tpu.memory_space<vmem>>, vector<1x24x16xbf16>
    %139 = vector.shape_cast %138 : vector<1x24x16xbf16> to vector<24x16xbf16>
    "tpu.trace_start"() <{level = 10 : i32, message = "qd,kd->qk"}> : () -> ()
    %cst_74 = arith.constant dense<0.000000e+00> : vector<24x24xf32>
    %140 = tpu.matmul %139, %129, %cst_74 {dimension_numbers = #tpu.dot_dimension_numbers<[1], [1], [0], [0], [0, 0, 1, 0], [], []>} : vector<24x16xbf16>, vector<24x16xbf16>, vector<24x24xf32> -> vector<24x24xf32>
    "tpu.trace_stop"() : () -> ()
    %cst_75 = arith.constant 2.500000e-01 : f32
    %141 = vector.broadcast %cst_75 : f32 to vector<24x24xf32>
    %142 = arith.mulf %140, %141 : vector<24x24xf32>
    %c1_76 = arith.constant 1 : index
    %c0_77 = arith.constant 0 : index
    %c0_78 = arith.constant 0 : index
    %143 = vector.load %arg22[%c1_76, %c0_77, %c0_78] : memref<2x24x1xf32, #tpu.memory_space<vmem>>, vector<1x24x1xf32>
    %144 = vector.shape_cast %143 : vector<1x24x1xf32> to vector<24x1xf32>
    %cst_79 = arith.constant dense<0xFF800000> : vector<24xf32>
    %145 = vector.multi_reduction <maximumf>, %142, %cst_79 [1] : vector<24x24xf32> to vector<24xf32>
    %146 = vector.shape_cast %145 : vector<24xf32> to vector<24x1xf32>
    %147 = arith.maximumf %144, %146 : vector<24x1xf32>
    %148 = arith.subf %144, %147 : vector<24x1xf32>
    %149 = math.exp %148 : vector<24x1xf32>
    %150 = vector.broadcast %147 : vector<24x1xf32> to vector<24x24xf32>
    %151 = arith.subf %142, %150 : vector<24x24xf32>
    %152 = math.exp %151 : vector<24x24xf32>
    %c1_80 = arith.constant 1 : index
    %c0_81 = arith.constant 0 : index
    %c0_82 = arith.constant 0 : index
    %153 = vector.load %arg23[%c1_80, %c0_81, %c0_82] : memref<2x24x1xf32, #tpu.memory_space<vmem>>, vector<1x24x1xf32>
    %154 = vector.shape_cast %153 : vector<1x24x1xf32> to vector<24x1xf32>
    %155 = arith.mulf %149, %154 : vector<24x1xf32>
    %cst_83 = arith.constant dense<0.000000e+00> : vector<24xf32>
    %156 = vector.multi_reduction <add>, %152, %cst_83 [1] : vector<24x24xf32> to vector<24xf32>
    %157 = vector.shape_cast %156 : vector<24xf32> to vector<24x1xf32>
    %158 = arith.addf %155, %157 : vector<24x1xf32>
    %c1_84 = arith.constant 1 : index
    %c0_85 = arith.constant 0 : index
    %c0_86 = arith.constant 0 : index
    %159 = vector.load %arg23[%c1_84, %c0_85, %c0_86] : memref<2x24x1xf32, #tpu.memory_space<vmem>>, vector<1x24x1xf32>
    %160 = vector.shape_cast %159 : vector<1x24x1xf32> to vector<24x1xf32>
    %161 = vector.shape_cast %158 : vector<24x1xf32> to vector<1x24x1xf32>
    tpu.vector_store %arg23[%c1_84, %c0_85, %c0_86], %161 {strides = array<i32>} : memref<2x24x1xf32, #tpu.memory_space<vmem>>, vector<1x24x1xf32>,
    %c1_87 = arith.constant 1 : index
    %c0_88 = arith.constant 0 : index
    %c0_89 = arith.constant 0 : index
    %162 = vector.load %arg24[%c1_87, %c0_88, %c0_89] : memref<2x24x16xf32, #tpu.memory_space<vmem>>, vector<1x24x16xf32>
    %163 = vector.shape_cast %162 : vector<1x24x16xf32> to vector<24x16xf32>
    %164 = vector.broadcast %149 : vector<24x1xf32> to vector<24x16xf32>
    %165 = arith.mulf %164, %163 : vector<24x16xf32>
    %166 = arith.truncf %152 : vector<24x24xf32> to vector<24x24xbf16>
    %cst_90 = arith.constant dense<0.000000e+00> : vector<24x16xf32>
    %167 = tpu.matmul %166, %137, %cst_90 {dimension_numbers = #tpu.dot_dimension_numbers<[1], [0], [0], [1], [0, 0, 1, 1], [], []>} : vector<24x24xbf16>, vector<24x16xbf16>, vector<24x16xf32> -> vector<24x16xf32>
    %168 = arith.addf %165, %167 : vector<24x16xf32>
    %c1_91 = arith.constant 1 : index
    %c0_92 = arith.constant 0 : index
    %c0_93 = arith.constant 0 : index
    %169 = vector.load %arg24[%c1_91, %c0_92, %c0_93] : memref<2x24x16xf32, #tpu.memory_space<vmem>>, vector<1x24x16xf32>
    %170 = vector.shape_cast %169 : vector<1x24x16xf32> to vector<24x16xf32>
    %171 = vector.shape_cast %168 : vector<24x16xf32> to vector<1x24x16xf32>
    tpu.vector_store %arg24[%c1_91, %c0_92, %c0_93], %171 {strides = array<i32>} : memref<2x24x16xf32, #tpu.memory_space<vmem>>, vector<1x24x16xf32>,
    %c1_94 = arith.constant 1 : index
    %c0_95 = arith.constant 0 : index
    %c0_96 = arith.constant 0 : index
    %172 = vector.load %arg22[%c1_94, %c0_95, %c0_96] : memref<2x24x1xf32, #tpu.memory_space<vmem>>, vector<1x24x1xf32>
    %173 = vector.shape_cast %172 : vector<1x24x1xf32> to vector<24x1xf32>
    %174 = vector.shape_cast %147 : vector<24x1xf32> to vector<1x24x1xf32>
    tpu.vector_store %arg22[%c1_94, %c0_95, %c0_96], %174 {strides = array<i32>} : memref<2x24x1xf32, #tpu.memory_space<vmem>>, vector<1x24x1xf32>,
    %c0_i32_97 = arith.constant 0 : i32
    %175 = arith.cmpi eq, %arg2, %c0_i32_97 : i32
    %176 = arith.extui %175 : i1 to i32
    %c0_i32_98 = arith.constant 0 : i32
    %177 = arith.cmpi ne, %176, %c0_i32_98 : i32
    scf.if %177 {
      %c0_99 = arith.constant 0 : index
      %c0_100 = arith.constant 0 : index
      %c0_101 = arith.constant 0 : index
      %178 = vector.load %arg23[%c0_99, %c0_100, %c0_101] : memref<2x24x1xf32, #tpu.memory_space<vmem>>, vector<1x24x1xf32>
      %179 = vector.shape_cast %178 : vector<1x24x1xf32> to vector<24x1xf32>
      %180 = tpu.reciprocal %179 {approx = true} : vector<24x1xf32> -> vector<24x1xf32>
      %c0_102 = arith.constant 0 : index
      %c0_103 = arith.constant 0 : index
      %c0_104 = arith.constant 0 : index
      %181 = vector.load %arg24[%c0_102, %c0_103, %c0_104] : memref<2x24x16xf32, #tpu.memory_space<vmem>>, vector<1x24x16xf32>
      %182 = vector.shape_cast %181 : vector<1x24x16xf32> to vector<24x16xf32>
      %183 = vector.broadcast %180 : vector<24x1xf32> to vector<24x16xf32>
      %184 = arith.mulf %182, %183 : vector<24x16xf32>
      %185 = arith.truncf %184 : vector<24x16xf32> to vector<24x16xbf16>
      %c0_105 = arith.constant 0 : index
      %c0_106 = arith.constant 0 : index
      %c0_107 = arith.constant 0 : index
      %186 = vector.load %arg10[%c0_105, %c0_106, %c0_107] : memref<2x16x32xbf16, #tpu.memory_space<vmem>>, vector<1x16x32xbf16>
      %187 = vector.shape_cast %186 : vector<1x16x32xbf16> to vector<16x32xbf16>
      %cst_108 = arith.constant dense<0.000000e+00> : vector<24x32xf32>
      %188 = tpu.matmul %185, %187, %cst_108 {dimension_numbers = #tpu.dot_dimension_numbers<[1], [0], [0], [1], [0, 0, 1, 1], [], []>} : vector<24x16xbf16>, vector<16x32xbf16>, vector<24x32xf32> -> vector<24x32xf32>
      %c1_109 = arith.constant 1 : index
      %c0_110 = arith.constant 0 : index
      %c0_111 = arith.constant 0 : index
      %189 = vector.load %arg23[%c1_109, %c0_110, %c0_111] : memref<2x24x1xf32, #tpu.memory_space<vmem>>, vector<1x24x1xf32>
      %190 = vector.shape_cast %189 : vector<1x24x1xf32> to vector<24x1xf32>
      %191 = tpu.reciprocal %190 {approx = true} : vector<24x1xf32> -> vector<24x1xf32>
      %c1_112 = arith.constant 1 : index
      %c0_113 = arith.constant 0 : index
      %c0_114 = arith.constant 0 : index
      %192 = vector.load %arg24[%c1_112, %c0_113, %c0_114] : memref<2x24x16xf32, #tpu.memory_space<vmem>>, vector<1x24x16xf32>
      %193 = vector.shape_cast %192 : vector<1x24x16xf32> to vector<24x16xf32>
      %194 = vector.broadcast %191 : vector<24x1xf32> to vector<24x16xf32>
      %195 = arith.mulf %193, %194 : vector<24x16xf32>
      %196 = arith.truncf %195 : vector<24x16xf32> to vector<24x16xbf16>
      %c1_115 = arith.constant 1 : index
      %c0_116 = arith.constant 0 : index
      %c0_117 = arith.constant 0 : index
      %197 = vector.load %arg10[%c1_115, %c0_116, %c0_117] : memref<2x16x32xbf16, #tpu.memory_space<vmem>>, vector<1x16x32xbf16>
      %198 = vector.shape_cast %197 : vector<1x16x32xbf16> to vector<16x32xbf16>
      %cst_118 = arith.constant dense<0.000000e+00> : vector<24x32xf32>
      %199 = tpu.matmul %196, %198, %cst_118 {dimension_numbers = #tpu.dot_dimension_numbers<[1], [0], [0], [1], [0, 0, 1, 1], [], []>} : vector<24x16xbf16>, vector<16x32xbf16>, vector<24x32xf32> -> vector<24x32xf32>
      %200 = arith.addf %188, %199 : vector<24x32xf32>
      %201 = arith.addf %26, %200 : vector<24x32xf32>
      %c0_119 = arith.constant 0 : index
      %c0_120 = arith.constant 0 : index
      %202 = vector.load %arg16[%c0_119, %c0_120] : memref<1x32xf32, #tpu.memory_space<vmem>>, vector<1x32xf32>
      %203 = vector.broadcast %202 : vector<1x32xf32> to vector<24x32xf32>
      %204 = arith.addf %201, %203 : vector<24x32xf32>
      %cst_121 = arith.constant dense<0.000000e+00> : vector<24xf32>
      %205 = vector.multi_reduction <add>, %204, %cst_121 [1] : vector<24x32xf32> to vector<24xf32>
      %206 = vector.shape_cast %205 : vector<24xf32> to vector<24x1xf32>
      %cst_122 = arith.constant 3.200000e+01 : f32
      %207 = vector.broadcast %cst_122 : f32 to vector<24x1xf32>
      %208 = arith.divf %206, %207 : vector<24x1xf32>
      %209 = vector.broadcast %208 : vector<24x1xf32> to vector<24x32xf32>
      %210 = arith.subf %204, %209 : vector<24x32xf32>
      %211 = arith.mulf %210, %210 : vector<24x32xf32>
      %cst_123 = arith.constant dense<0.000000e+00> : vector<24xf32>
      %212 = vector.multi_reduction <add>, %211, %cst_123 [1] : vector<24x32xf32> to vector<24xf32>
      %213 = vector.shape_cast %212 : vector<24xf32> to vector<24x1xf32>
      %cst_124 = arith.constant 3.200000e+01 : f32
      %214 = vector.broadcast %cst_124 : f32 to vector<24x1xf32>
      %215 = arith.divf %213, %214 : vector<24x1xf32>
      %216 = vector.broadcast %208 : vector<24x1xf32> to vector<24x32xf32>
      %217 = arith.subf %204, %216 : vector<24x32xf32>
      %cst_125 = arith.constant 9.99999974E-6 : f32
      %218 = vector.broadcast %cst_125 : f32 to vector<24x1xf32>
      %219 = arith.addf %215, %218 : vector<24x1xf32>
      %220 = math.rsqrt %219 : vector<24x1xf32>
      %221 = vector.broadcast %220 : vector<24x1xf32> to vector<24x32xf32>
      %222 = arith.mulf %217, %221 : vector<24x32xf32>
      %223 = vector.broadcast %7 : vector<1x32xf32> to vector<24x32xf32>
      %224 = arith.mulf %222, %223 : vector<24x32xf32>
      %225 = vector.broadcast %8 : vector<1x32xf32> to vector<24x32xf32>
      %226 = arith.addf %224, %225 : vector<24x32xf32>
      %227 = arith.truncf %226 : vector<24x32xf32> to vector<24x32xbf16>
      %c0_126 = arith.constant 0 : index
      %c0_127 = arith.constant 0 : index
      %228 = vector.load %arg11[%c0_126, %c0_127] : memref<32x64xbf16, #tpu.memory_space<vmem>>, vector<32x64xbf16>
      %cst_128 = arith.constant dense<0.000000e+00> : vector<24x64xf32>
      %229 = tpu.matmul %227, %228, %cst_128 {dimension_numbers = #tpu.dot_dimension_numbers<[1], [0], [0], [1], [0, 0, 1, 1], [], []>} : vector<24x32xbf16>, vector<32x64xbf16>, vector<24x64xf32> -> vector<24x64xf32>
      %c0_129 = arith.constant 0 : index
      %c0_130 = arith.constant 0 : index
      %230 = vector.load %arg17[%c0_129, %c0_130] : memref<1x64xf32, #tpu.memory_space<vmem>>, vector<1x64xf32>
      %231 = vector.broadcast %230 : vector<1x64xf32> to vector<24x64xf32>
      %232 = arith.addf %229, %231 : vector<24x64xf32>
      %cst_131 = arith.constant 5.000000e-01 : f32
      %233 = vector.broadcast %cst_131 : f32 to vector<24x64xf32>
      %234 = arith.mulf %233, %232 : vector<24x64xf32>
      %cst_132 = arith.constant 0.707106769 : f32
      %235 = vector.broadcast %cst_132 : f32 to vector<24x64xf32>
      %236 = arith.mulf %232, %235 : vector<24x64xf32>
      %237 = math.erf %236 : vector<24x64xf32>
      %cst_133 = arith.constant 1.000000e+00 : f32
      %238 = vector.broadcast %cst_133 : f32 to vector<24x64xf32>
      %239 = arith.addf %238, %237 : vector<24x64xf32>
      %240 = arith.mulf %234, %239 : vector<24x64xf32>
      %241 = arith.truncf %240 : vector<24x64xf32> to vector<24x64xbf16>
      %c0_134 = arith.constant 0 : index
      %c0_135 = arith.constant 0 : index
      %242 = vector.load %arg12[%c0_134, %c0_135] : memref<64x32xbf16, #tpu.memory_space<vmem>>, vector<64x32xbf16>
      %cst_136 = arith.constant dense<0.000000e+00> : vector<24x32xf32>
      %243 = tpu.matmul %241, %242, %cst_136 {dimension_numbers = #tpu.dot_dimension_numbers<[1], [0], [0], [1], [0, 0, 1, 1], [], []>} : vector<24x64xbf16>, vector<64x32xbf16>, vector<24x32xf32> -> vector<24x32xf32>
      %c0_137 = arith.constant 0 : index
      %c0_138 = arith.constant 0 : index
      %244 = vector.load %arg18[%c0_137, %c0_138] : memref<1x32xf32, #tpu.memory_space<vmem>>, vector<1x32xf32>
      %245 = vector.broadcast %244 : vector<1x32xf32> to vector<24x32xf32>
      %246 = arith.addf %243, %245 : vector<24x32xf32>
      %247 = arith.addf %204, %246 : vector<24x32xf32>
      %cst_139 = arith.constant dense<0.000000e+00> : vector<24xf32>
      %248 = vector.multi_reduction <add>, %247, %cst_139 [1] : vector<24x32xf32> to vector<24xf32>
      %249 = vector.shape_cast %248 : vector<24xf32> to vector<24x1xf32>
      %cst_140 = arith.constant 3.200000e+01 : f32
      %250 = vector.broadcast %cst_140 : f32 to vector<24x1xf32>
      %251 = arith.divf %249, %250 : vector<24x1xf32>
      %252 = vector.broadcast %251 : vector<24x1xf32> to vector<24x32xf32>
      %253 = arith.subf %247, %252 : vector<24x32xf32>
      %254 = arith.mulf %253, %253 : vector<24x32xf32>
      %cst_141 = arith.constant dense<0.000000e+00> : vector<24xf32>
      %255 = vector.multi_reduction <add>, %254, %cst_141 [1] : vector<24x32xf32> to vector<24xf32>
      %256 = vector.shape_cast %255 : vector<24xf32> to vector<24x1xf32>
      %cst_142 = arith.constant 3.200000e+01 : f32
      %257 = vector.broadcast %cst_142 : f32 to vector<24x1xf32>
      %258 = arith.divf %256, %257 : vector<24x1xf32>
      %259 = vector.broadcast %251 : vector<24x1xf32> to vector<24x32xf32>
      %260 = arith.subf %247, %259 : vector<24x32xf32>
      %cst_143 = arith.constant 9.99999974E-6 : f32
      %261 = vector.broadcast %cst_143 : f32 to vector<24x1xf32>
      %262 = arith.addf %258, %261 : vector<24x1xf32>
      %263 = math.rsqrt %262 : vector<24x1xf32>
      %264 = vector.broadcast %263 : vector<24x1xf32> to vector<24x32xf32>
      %265 = arith.mulf %260, %264 : vector<24x32xf32>
      %266 = vector.broadcast %9 : vector<1x32xf32> to vector<24x32xf32>
      %267 = arith.mulf %265, %266 : vector<24x32xf32>
      %268 = vector.broadcast %10 : vector<1x32xf32> to vector<24x32xf32>
      %269 = arith.addf %267, %268 : vector<24x32xf32>
      %270 = tpu.transpose %269, [1, 0] : vector<24x32xf32> -> vector<32x24xf32>
      %c0_144 = arith.constant 0 : index
      %c0_145 = arith.constant 0 : index
      %c0_146 = arith.constant 0 : index
      %271 = vector.load %arg20[%c0_144, %c0_145, %c0_146] : memref<1x32x24xf32, #tpu.memory_space<vmem>>, vector<1x32x24xf32>
      %272 = vector.shape_cast %271 : vector<1x32x24xf32> to vector<32x24xf32>
      %273 = vector.shape_cast %270 : vector<32x24xf32> to vector<1x32x24xf32>
      tpu.vector_store %arg20[%c0_144, %c0_145, %c0_146], %273 {strides = array<i32>} : memref<1x32x24xf32, #tpu.memory_space<vmem>>, vector<1x32x24xf32>,
    } else {
    }
    return
  }
  func.func @transform_0(%arg0: i32, %arg1: i32, %arg2: i32) -> (i32, i32, i32) {
    %c0_i32 = arith.constant 0 : i32
    %c0_i32_0 = arith.constant 0 : i32
    %c0_i32_1 = arith.constant 0 : i32
    return %arg0, %c0_i32, %c0_i32_0 : i32, i32, i32
  }
  func.func @transform_1(%arg0: i32, %arg1: i32, %arg2: i32) -> (i32, i32, i32) {
    %c0_i32 = arith.constant 0 : i32
    %c0_i32_0 = arith.constant 0 : i32
    %c0_i32_1 = arith.constant 0 : i32
    return %arg0, %c0_i32, %c0_i32_0 : i32, i32, i32
  }
  func.func @transform_2(%arg0: i32, %arg1: i32, %arg2: i32) -> (i32, i32) {
    %c0_i32 = arith.constant 0 : i32
    %c0_i32_0 = arith.constant 0 : i32
    return %arg1, %c0_i32 : i32, i32
  }
  func.func @transform_3(%arg0: i32, %arg1: i32, %arg2: i32) -> (i32, i32) {
    %c0_i32 = arith.constant 0 : i32
    %c0_i32_0 = arith.constant 0 : i32
    return %arg2, %c0_i32 : i32, i32
  }
  func.func @transform_4(%arg0: i32, %arg1: i32, %arg2: i32) -> (i32, i32, i32) {
    %c0_i32 = arith.constant 0 : i32
    %c0_i32_0 = arith.constant 0 : i32
    %c0_i32_1 = arith.constant 0 : i32
    %c0_i32_2 = arith.constant 0 : i32
    return %c0_i32, %c0_i32_0, %c0_i32_1 : i32, i32, i32
  }
  func.func @transform_5(%arg0: i32, %arg1: i32, %arg2: i32) -> (i32, i32, i32) {
    %c0_i32 = arith.constant 0 : i32
    %c0_i32_0 = arith.constant 0 : i32
    %c0_i32_1 = arith.constant 0 : i32
    %c0_i32_2 = arith.constant 0 : i32
    return %c0_i32, %c0_i32_0, %c0_i32_1 : i32, i32, i32
  }
  func.func @transform_6(%arg0: i32, %arg1: i32, %arg2: i32) -> (i32, i32, i32) {
    %c0_i32 = arith.constant 0 : i32
    %c0_i32_0 = arith.constant 0 : i32
    %c0_i32_1 = arith.constant 0 : i32
    %c0_i32_2 = arith.constant 0 : i32
    return %c0_i32, %c0_i32_0, %c0_i32_1 : i32, i32, i32
  }
  func.func @transform_7(%arg0: i32, %arg1: i32, %arg2: i32) -> (i32, i32, i32) {
    %c0_i32 = arith.constant 0 : i32
    %c0_i32_0 = arith.constant 0 : i32
    %c0_i32_1 = arith.constant 0 : i32
    %c0_i32_2 = arith.constant 0 : i32
    return %c0_i32, %c0_i32_0, %c0_i32_1 : i32, i32, i32
  }
  func.func @transform_8(%arg0: i32, %arg1: i32, %arg2: i32) -> (i32, i32) {
    %c0_i32 = arith.constant 0 : i32
    %c0_i32_0 = arith.constant 0 : i32
    %c0_i32_1 = arith.constant 0 : i32
    return %c0_i32, %c0_i32_0 : i32, i32
  }
  func.func @transform_9(%arg0: i32, %arg1: i32, %arg2: i32) -> (i32, i32) {
    %c0_i32 = arith.constant 0 : i32
    %c0_i32_0 = arith.constant 0 : i32
    %c0_i32_1 = arith.constant 0 : i32
    return %c0_i32, %c0_i32_0 : i32, i32
  }
  func.func @transform_10(%arg0: i32, %arg1: i32, %arg2: i32) -> (i32, i32, i32) {
    %c0_i32 = arith.constant 0 : i32
    %c0_i32_0 = arith.constant 0 : i32
    %c0_i32_1 = arith.constant 0 : i32
    %c0_i32_2 = arith.constant 0 : i32
    return %c0_i32, %c0_i32_0, %c0_i32_1 : i32, i32, i32
  }
  func.func @transform_11(%arg0: i32, %arg1: i32, %arg2: i32) -> (i32, i32, i32) {
    %c0_i32 = arith.constant 0 : i32
    %c0_i32_0 = arith.constant 0 : i32
    %c0_i32_1 = arith.constant 0 : i32
    %c0_i32_2 = arith.constant 0 : i32
    return %c0_i32, %c0_i32_0, %c0_i32_1 : i32, i32, i32
  }
  func.func @transform_12(%arg0: i32, %arg1: i32, %arg2: i32) -> (i32, i32, i32) {
    %c0_i32 = arith.constant 0 : i32
    %c0_i32_0 = arith.constant 0 : i32
    %c0_i32_1 = arith.constant 0 : i32
    %c0_i32_2 = arith.constant 0 : i32
    return %c0_i32, %c0_i32_0, %c0_i32_1 : i32, i32, i32
  }
  func.func @transform_13(%arg0: i32, %arg1: i32, %arg2: i32) -> (i32, i32) {
    %c0_i32 = arith.constant 0 : i32
    %c0_i32_0 = arith.constant 0 : i32
    %c0_i32_1 = arith.constant 0 : i32
    return %c0_i32, %c0_i32_0 : i32, i32
  }
  func.func @transform_14(%arg0: i32, %arg1: i32, %arg2: i32) -> (i32, i32) {
    %c0_i32 = arith.constant 0 : i32
    %c0_i32_0 = arith.constant 0 : i32
    %c0_i32_1 = arith.constant 0 : i32
    return %c0_i32, %c0_i32_0 : i32, i32
  }
  func.func @transform_15(%arg0: i32, %arg1: i32, %arg2: i32) -> (i32, i32) {
    %c0_i32 = arith.constant 0 : i32
    %c0_i32_0 = arith.constant 0 : i32
    %c0_i32_1 = arith.constant 0 : i32
    return %c0_i32, %c0_i32_0 : i32, i32
  }
  func.func @transform_16(%arg0: i32, %arg1: i32, %arg2: i32) -> (i32, i32) {
    %c0_i32 = arith.constant 0 : i32
    %c0_i32_0 = arith.constant 0 : i32
    %c0_i32_1 = arith.constant 0 : i32
    return %c0_i32, %c0_i32_0 : i32, i32
  }
  func.func @transform_17(%arg0: i32, %arg1: i32, %arg2: i32) -> (i32, i32, i32) {
    %c0_i32 = arith.constant 0 : i32
    %c0_i32_0 = arith.constant 0 : i32
    return %arg0, %c0_i32, %arg1 : i32, i32, i32
  }
}

</mosaic_0001>

<llo_original>
// kernel: dftr_forward.2
$region0: #{dftr_forward.2}
  #allocation0 [shape = 'u32[]', space=smem, size = 0x4, offset = 0x4, fixed_abs, tag = 'smem constant byte address 0x4 - core index']
  #allocation1 [shape = 'u32[72,128]{1,0:T(1,128)}', space=vmem, size = 0x9000, scoped, tag = 'internal scratch']
  #allocation2 [shape = 'f32[32,1]{1,0:T(8,128)}', space=vmem, size = 0x4000, scoped, tag = 'scratch operand']
  %s0 = inlined_call_operand.vmem [shape: f32[2,32,16], index: 0, kind: input, shape index: {}]
  %s1 = inlined_call_operand.vmem [shape: f32[2,32,8], index: 1, kind: input, shape index: {}]
  %s2 = inlined_call_operand.vmem [shape: bf16[2,32,16], index: 2, kind: input, shape index: {}]
  %s3 = inlined_call_operand.vmem [shape: bf16[2,32,16], index: 3, kind: input, shape index: {}]
  %s4 = inlined_call_operand.vmem [shape: bf16[2,32,16], index: 4, kind: input, shape index: {}]
  %s5 = inlined_call_operand.vmem [shape: bf16[2,16,32], index: 5, kind: input, shape index: {}]
  %s6 = inlined_call_operand.vmem [shape: f32[1,32], index: 6, kind: input, shape index: {}]
  %s7 = inlined_call_operand.vmem [shape: bf16[32,32], index: 7, kind: input, shape index: {}]
  %s8 = inlined_call_operand.vmem [shape: bf16[32,32], index: 8, kind: input, shape index: {}]
  %s9 = inlined_call_operand.vmem [shape: f32[1,32], index: 9, kind: input, shape index: {}]
  %s10 = inlined_call_operand.vmem [shape: f32[2,1,32], index: 10, kind: output, shape index: {0}]
  %s11 = inlined_call_operand.vmem [shape: f32[2,1,32], index: 11, kind: output, shape index: {1}]
  %12 = xla_tuple %s10, %s11
  %s13 = sld [smem:[#allocation0]]
  $region89: #{dftr_forward.2} parent=0
    _
  %s15 = ssub.s32 1, %s13
  %s16 = scalar_select 0, %s15, %s13
  loop: start=0, step=1, limit=4
  $region2: #{dftr_forward.2} parent=0 // loop_pre_header
    _
  $region3: #{dftr_forward.2} parent=0 // loop_header
    %s18 = sphi 0, %s22
    %p19 = scmp.ge.s32.totalorder %s18, 4
    %s25 = sphi 0, %s37
    %s26 = sphi 0, %s33
    %s27 = sphi 0, %s25
    %s28 = sphi 0, %s26
    %s29 = sphi 0, %s27
    %s30 = sphi 0, %s28
    %s42 = sphi 0, %s44
    %s45 = sphi 0, %s42
    %s46 = sphi 0, %s45
    %s62 = sphi 0, %s46
    %s68 = sphi 0, %s70
    %s71 = sphi 0, %s68
    %s72 = sphi 0, %s71
    %s88 = sphi 0, %s72
    %s92 = sphi 0, %s92
    %s94 = sphi 0, %s92
    %s95 = sphi 0, %s94
    %s109 = sphi 0, %s95
    %s113 = sphi 0, %s113
    %s115 = sphi 0, %s113
    %s116 = sphi 0, %s115
    %s130 = sphi 0, %s116
    %s134 = sphi 0, %s134
    %s136 = sphi 0, %s134
    %s137 = sphi 0, %s136
    %s151 = sphi 0, %s137
    %s155 = sphi 0, %s155
    %s157 = sphi 0, %s155
    %s158 = sphi 0, %s157
    %s172 = sphi 0, %s158
    %s176 = sphi 0, %s176
    %s178 = sphi 0, %s176
    %s179 = sphi 0, %s178
    %s193 = sphi 0, %s179
    %s197 = sphi 0, %s197
    %s199 = sphi 0, %s197
    %s200 = sphi 0, %s199
    %s214 = sphi 0, %s200
    %s218 = sphi 0, %s218
    %s220 = sphi 0, %s218
    %s221 = sphi 0, %s220
    %s235 = sphi 0, %s221
    %s239 = sphi 0, %s239
    %s241 = sphi 0, %s239
    %s242 = sphi 0, %s241
    %s256 = sphi 0, %s242
    %s262 = sphi 0, %s264
    %s265 = sphi 0, %s262
    %s266 = sphi 0, %s265
    %s282 = sphi 0, %s266
    %s288 = sphi 0, %s290
    %s291 = sphi 0, %s288
    %s292 = sphi 0, %s291
    %s308 = sphi 0, %s292
  $region4: #{dftr_forward.2} parent=0 // loop_header_branch
    %21 = sbr.rel (%p19) target = $region8
  $region5: #{dftr_forward.2} parent=0 // loop_body
    %s23 = ssub.s32 %s18, 1
    %s24 = ssub.s32 %s18, 2
    %s31 = sadd.s32 1, %s26
    %p32 = scmp.ge.s32.totalorder %s31, 1
    %s33 = scalar_select %p32, 0, %s31
    %s34 = sadd.s32 1, %s25
    %s35 = scalar_select %p32, %s34, %s25
    %p36 = scmp.ge.s32.totalorder %s35, 2
    %s37 = scalar_select %p36, 0, %s35
    %s38 = ssub.s32 %s25, %s37
    %s39 = ssub.s32 %s26, %s33
    %s40 = sor.u32 %s38, %s39
    %p41 = scmp.eq.s32.totalorder %s40, 0
    %s43 = sadd.s32 %s42, 1
    %s44 = scalar_select %p41, %s42, %s43
    %p47 = pneg %p41
    %p48 = scmp.eq.s32.totalorder %s18, 1
    %p49 = por %p47, %p48
    %p50 = scmp.ne.s32.totalorder %s42, %s45
    %p51 = scmp.eq.s32.totalorder %s18, 0
    %p52 = por %p50, %p51
    %p53 = scmp.ne.s32.totalorder %s42, %s45
    %p54 = scmp.eq.s32.totalorder %s23, 1
    %p55 = por %p53, %p54
    %p56 = scmp.ne.s32.totalorder %s45, %s46
    %p57 = scmp.eq.s32.totalorder %s23, 0
    %p58 = por %p56, %p57
    %p59 = scmp.ne.s32.totalorder %s45, %s46
    %p60 = scmp.eq.s32.totalorder %s24, 1
    %p61 = por %p59, %p60
    %p63 = scmp.ne.s32.totalorder %s46, %s62
    %p64 = scmp.eq.s32.totalorder %s24, 0
    %p65 = por %p63, %p64
    %s66 = ssub.s32 %s25, %s37
    %p67 = scmp.eq.s32.totalorder %s66, 0
    %s69 = sadd.s32 %s68, 1
    %s70 = scalar_select %p67, %s68, %s69
    %p73 = pneg %p67
    %p74 = scmp.eq.s32.totalorder %s18, 1
    %p75 = por %p73, %p74
    %p76 = scmp.ne.s32.totalorder %s68, %s71
    %p77 = scmp.eq.s32.totalorder %s18, 0
    %p78 = por %p76, %p77
    %p79 = scmp.ne.s32.totalorder %s68, %s71
    %p80 = scmp.eq.s32.totalorder %s23, 1
    %p81 = por %p79, %p80
    %p82 = scmp.ne.s32.totalorder %s71, %s72
    %p83 = scmp.eq.s32.totalorder %s23, 0
    %p84 = por %p82, %p83
    %p85 = scmp.ne.s32.totalorder %s71, %s72
    %p86 = scmp.eq.s32.totalorder %s24, 1
    %p87 = por %p85, %p86
    %p89 = scmp.ne.s32.totalorder %s72, %s88
    %p90 = scmp.eq.s32.totalorder %s24, 0
    %p91 = por %p89, %p90
    %s93 = sadd.s32 %s92, 1
    %p96 = scmp.eq.s32.totalorder %s18, 1
    %p97 = scmp.ne.s32.totalorder %s92, %s94
    %p98 = scmp.eq.s32.totalorder %s18, 0
    %p99 = por %p97, %p98
    %p100 = scmp.ne.s32.totalorder %s92, %s94
    %p101 = scmp.eq.s32.totalorder %s23, 1
    %p102 = por %p100, %p101
    %p103 = scmp.ne.s32.totalorder %s94, %s95
    %p104 = scmp.eq.s32.totalorder %s23, 0
    %p105 = por %p103, %p104
    %p106 = scmp.ne.s32.totalorder %s94, %s95
    %p107 = scmp.eq.s32.totalorder %s24, 1
    %p108 = por %p106, %p107
    %p110 = scmp.ne.s32.totalorder %s95, %s109
    %p111 = scmp.eq.s32.totalorder %s24, 0
    %p112 = por %p110, %p111
    %s114 = sadd.s32 %s113, 1
    %p117 = scmp.eq.s32.totalorder %s18, 1
    %p118 = scmp.ne.s32.totalorder %s113, %s115
    %p119 = scmp.eq.s32.totalorder %s18, 0
    %p120 = por %p118, %p119
    %p121 = scmp.ne.s32.totalorder %s113, %s115
    %p122 = scmp.eq.s32.totalorder %s23, 1
    %p123 = por %p121, %p122
    %p124 = scmp.ne.s32.totalorder %s115, %s116
    %p125 = scmp.eq.s32.totalorder %s23, 0
    %p126 = por %p124, %p125
    %p127 = scmp.ne.s32.totalorder %s115, %s116
    %p128 = scmp.eq.s32.totalorder %s24, 1
    %p129 = por %p127, %p128
    %p131 = scmp.ne.s32.totalorder %s116, %s130
    %p132 = scmp.eq.s32.totalorder %s24, 0
    %p133 = por %p131, %p132
    %s135 = sadd.s32 %s134, 1
    %p138 = scmp.eq.s32.totalorder %s18, 1
    %p139 = scmp.ne.s32.totalorder %s134, %s136
    %p140 = scmp.eq.s32.totalorder %s18, 0
    %p141 = por %p139, %p140
    %p142 = scmp.ne.s32.totalorder %s134, %s136
    %p143 = scmp.eq.s32.totalorder %s23, 1
    %p144 = por %p142, %p143
    %p145 = scmp.ne.s32.totalorder %s136, %s137
    %p146 = scmp.eq.s32.totalorder %s23, 0
    %p147 = por %p145, %p146
    %p148 = scmp.ne.s32.totalorder %s136, %s137
    %p149 = scmp.eq.s32.totalorder %s24, 1
    %p150 = por %p148, %p149
    %p152 = scmp.ne.s32.totalorder %s137, %s151
    %p153 = scmp.eq.s32.totalorder %s24, 0
    %p154 = por %p152, %p153
    %s156 = sadd.s32 %s155, 1
    %p159 = scmp.eq.s32.totalorder %s18, 1
    %p160 = scmp.ne.s32.totalorder %s155, %s157
    %p161 = scmp.eq.s32.totalorder %s18, 0
    %p162 = por %p160, %p161
    %p163 = scmp.ne.s32.totalorder %s155, %s157
    %p164 = scmp.eq.s32.totalorder %s23, 1
    %p165 = por %p163, %p164
    %p166 = scmp.ne.s32.totalorder %s157, %s158
    %p167 = scmp.eq.s32.totalorder %s23, 0
    %p168 = por %p166, %p167
    %p169 = scmp.ne.s32.totalorder %s157, %s158
    %p170 = scmp.eq.s32.totalorder %s24, 1
    %p171 = por %p169, %p170
    %p173 = scmp.ne.s32.totalorder %s158, %s172
    %p174 = scmp.eq.s32.totalorder %s24, 0
    %p175 = por %p173, %p174
    %s177 = sadd.s32 %s176, 1
    %p180 = scmp.eq.s32.totalorder %s18, 1
    %p181 = scmp.ne.s32.totalorder %s176, %s178
    %p182 = scmp.eq.s32.totalorder %s18, 0
    %p183 = por %p181, %p182
    %p184 = scmp.ne.s32.totalorder %s176, %s178
    %p185 = scmp.eq.s32.totalorder %s23, 1
    %p186 = por %p184, %p185
    %p187 = scmp.ne.s32.totalorder %s178, %s179
    %p188 = scmp.eq.s32.totalorder %s23, 0
    %p189 = por %p187, %p188
    %p190 = scmp.ne.s32.totalorder %s178, %s179
    %p191 = scmp.eq.s32.totalorder %s24, 1
    %p192 = por %p190, %p191
    %p194 = scmp.ne.s32.totalorder %s179, %s193
    %p195 = scmp.eq.s32.totalorder %s24, 0
    %p196 = por %p194, %p195
    %s198 = sadd.s32 %s197, 1
    %p201 = scmp.eq.s32.totalorder %s18, 1
    %p202 = scmp.ne.s32.totalorder %s197, %s199
    %p203 = scmp.eq.s32.totalorder %s18, 0
    %p204 = por %p202, %p203
    %p205 = scmp.ne.s32.totalorder %s197, %s199
    %p206 = scmp.eq.s32.totalorder %s23, 1
    %p207 = por %p205, %p206
    %p208 = scmp.ne.s32.totalorder %s199, %s200
    %p209 = scmp.eq.s32.totalorder %s23, 0
    %p210 = por %p208, %p209
    %p211 = scmp.ne.s32.totalorder %s199, %s200
    %p212 = scmp.eq.s32.totalorder %s24, 1
    %p213 = por %p211, %p212
    %p215 = scmp.ne.s32.totalorder %s200, %s214
    %p216 = scmp.eq.s32.totalorder %s24, 0
    %p217 = por %p215, %p216
    %s219 = sadd.s32 %s218, 1
    %p222 = scmp.eq.s32.totalorder %s18, 1
    %p223 = scmp.ne.s32.totalorder %s218, %s220
    %p224 = scmp.eq.s32.totalorder %s18, 0
    %p225 = por %p223, %p224
    %p226 = scmp.ne.s32.totalorder %s218, %s220
    %p227 = scmp.eq.s32.totalorder %s23, 1
    %p228 = por %p226, %p227
    %p229 = scmp.ne.s32.totalorder %s220, %s221
    %p230 = scmp.eq.s32.totalorder %s23, 0
    %p231 = por %p229, %p230
    %p232 = scmp.ne.s32.totalorder %s220, %s221
    %p233 = scmp.eq.s32.totalorder %s24, 1
    %p234 = por %p232, %p233
    %p236 = scmp.ne.s32.totalorder %s221, %s235
    %p237 = scmp.eq.s32.totalorder %s24, 0
    %p238 = por %p236, %p237
    %s240 = sadd.s32 %s239, 1
    %p243 = scmp.eq.s32.totalorder %s18, 1
    %p244 = scmp.ne.s32.totalorder %s239, %s241
    %p245 = scmp.eq.s32.totalorder %s18, 0
    %p246 = por %p244, %p245
    %p247 = scmp.ne.s32.totalorder %s239, %s241
    %p248 = scmp.eq.s32.totalorder %s23, 1
    %p249 = por %p247, %p248
    %p250 = scmp.ne.s32.totalorder %s241, %s242
    %p251 = scmp.eq.s32.totalorder %s23, 0
    %p252 = por %p250, %p251
    %p253 = scmp.ne.s32.totalorder %s241, %s242
    %p254 = scmp.eq.s32.totalorder %s24, 1
    %p255 = por %p253, %p254
    %p257 = scmp.ne.s32.totalorder %s242, %s256
    %p258 = scmp.eq.s32.totalorder %s24, 0
    %p259 = por %p257, %p258
    %s260 = ssub.s32 %s25, %s37
    %p261 = scmp.eq.s32.totalorder %s260, 0
    %s263 = sadd.s32 %s262, 1
    %s264 = scalar_select %p261, %s262, %s263
    %p267 = pneg %p261
    %p268 = scmp.eq.s32.totalorder %s18, 1
    %p269 = por %p267, %p268
    %p270 = scmp.ne.s32.totalorder %s262, %s265
    %p271 = scmp.eq.s32.totalorder %s18, 0
    %p272 = por %p270, %p271
    %p273 = scmp.ne.s32.totalorder %s262, %s265
    %p274 = scmp.eq.s32.totalorder %s23, 1
    %p275 = por %p273, %p274
    %p276 = scmp.ne.s32.totalorder %s265, %s266
    %p277 = scmp.eq.s32.totalorder %s23, 0
    %p278 = por %p276, %p277
    %p279 = scmp.ne.s32.totalorder %s265, %s266
    %p280 = scmp.eq.s32.totalorder %s24, 1
    %p281 = por %p279, %p280
    %p283 = scmp.ne.s32.totalorder %s266, %s282
    %p284 = scmp.eq.s32.totalorder %s24, 0
    %p285 = por %p283, %p284
    %s286 = ssub.s32 %s25, %s37
    %p287 = scmp.eq.s32.totalorder %s286, 0
    %s289 = sadd.s32 %s288, 1
    %s290 = scalar_select %p287, %s288, %s289
    %p293 = pneg %p287
    %p294 = scmp.eq.s32.totalorder %s18, 1
    %p295 = por %p293, %p294
    %p296 = scmp.ne.s32.totalorder %s288, %s291
    %p297 = scmp.eq.s32.totalorder %s18, 0
    %p298 = por %p296, %p297
    %p299 = scmp.ne.s32.totalorder %s288, %s291
    %p300 = scmp.eq.s32.totalorder %s23, 1
    %p301 = por %p299, %p300
    %p302 = scmp.ne.s32.totalorder %s291, %s292
    %p303 = scmp.eq.s32.totalorder %s23, 0
    %p304 = por %p302, %p303
    %p305 = scmp.ne.s32.totalorder %s291, %s292
    %p306 = scmp.eq.s32.totalorder %s24, 1
    %p307 = por %p305, %p306
    %p309 = scmp.ne.s32.totalorder %s292, %s308
    %p310 = scmp.eq.s32.totalorder %s24, 0
    %p311 = por %p309, %p310
    %p312 = scmp.le.s32.totalorder 1, %s18
    %p313 = scmp.lt.s32.totalorder %s18, 3
    %p314 = pnand %p312, %p313
    %p315 = pneg %p314
    // Predicated region
    $region9: #{dftr_forward.2} parent=5 // pred_check
      _
    $region10: #{dftr_forward.2} parent=5 // pred_check_branch
      %317 = sbr.rel (%p314) target = $region12
    $region11: #{dftr_forward.2} parent=5 // pred_region
      %s318 = ssub.s32 %s18, 1
      // Predicated region
      $region13: #{dftr_forward.2} parent=11 // pred_check
        %p319 = pneg %p105
      $region14: #{dftr_forward.2} parent=11 // pred_check_branch
        %321 = sbr.rel (%p319) target = $region16
      $region15: #{dftr_forward.2} parent=11 // pred_region
        _
      $region16: #{dftr_forward.2} parent=11 // pred_fallthru
        _
      // Predicated region
      $region17: #{dftr_forward.2} parent=11 // pred_check
        %p322 = pneg %p126
      $region18: #{dftr_forward.2} parent=11 // pred_check_branch
        %324 = sbr.rel (%p322) target = $region20
      $region19: #{dftr_forward.2} parent=11 // pred_region
        _
      $region20: #{dftr_forward.2} parent=11 // pred_fallthru
        _
      // Predicated region
      $region21: #{dftr_forward.2} parent=11 // pred_check
        %p325 = pneg %p147
      $region22: #{dftr_forward.2} parent=11 // pred_check_branch
        %327 = sbr.rel (%p325) target = $region24
      $region23: #{dftr_forward.2} parent=11 // pred_region
        _
      $region24: #{dftr_forward.2} parent=11 // pred_fallthru
        _
      // Predicated region
      $region25: #{dftr_forward.2} parent=11 // pred_check
        %p328 = pneg %p168
      $region26: #{dftr_forward.2} parent=11 // pred_check_branch
        %330 = sbr.rel (%p328) target = $region28
      $region27: #{dftr_forward.2} parent=11 // pred_region
        _
      $region28: #{dftr_forward.2} parent=11 // pred_fallthru
        _
      // Predicated region
      $region29: #{dftr_forward.2} parent=11 // pred_check
        %p331 = pneg %p189
      $region30: #{dftr_forward.2} parent=11 // pred_check_branch
        %333 = sbr.rel (%p331) target = $region32
      $region31: #{dftr_forward.2} parent=11 // pred_region
        _
      $region32: #{dftr_forward.2} parent=11 // pred_fallthru
        _
      // Predicated region
      $region33: #{dftr_forward.2} parent=11 // pred_check
        %p334 = pneg %p210
      $region34: #{dftr_forward.2} parent=11 // pred_check_branch
        %336 = sbr.rel (%p334) target = $region36
      $region35: #{dftr_forward.2} parent=11 // pred_region
        _
      $region36: #{dftr_forward.2} parent=11 // pred_fallthru
        _
      // Predicated region
      $region37: #{dftr_forward.2} parent=11 // pred_check
        %p337 = pneg %p231
      $region38: #{dftr_forward.2} parent=11 // pred_check_branch
        %339 = sbr.rel (%p337) target = $region40
      $region39: #{dftr_forward.2} parent=11 // pred_region
        _
      $region40: #{dftr_forward.2} parent=11 // pred_fallthru
        _
      // Predicated region
      $region41: #{dftr_forward.2} parent=11 // pred_check
        %p340 = pneg %p252
      $region42: #{dftr_forward.2} parent=11 // pred_check_branch
        %342 = sbr.rel (%p340) target = $region44
      $region43: #{dftr_forward.2} parent=11 // pred_region
        _
      $region44: #{dftr_forward.2} parent=11 // pred_fallthru
        _
    $region12: #{dftr_forward.2} parent=5 // pred_fallthru
      _
    %p343 = scmp.lt.s32.totalorder %s18, 2
    // Predicated region
    $region45: #{dftr_forward.2} parent=5 // pred_check
      %p344 = pneg %p343
    $region46: #{dftr_forward.2} parent=5 // pred_check_branch
      %346 = sbr.rel (%p344) target = $region48
    $region47: #{dftr_forward.2} parent=5 // pred_region
      // Predicated region
      $region49: #{dftr_forward.2} parent=47 // pred_check
        %p347 = pneg %p52
      $region50: #{dftr_forward.2} parent=47 // pred_check_branch
        %349 = sbr.rel (%p347) target = $region52
      $region51: #{dftr_forward.2} parent=47 // pred_region
        %p350 = scmp.lt.s32.totalorder %s25, 1
        %s351 = scalar_select %p350, %s25, 1
        %p352 = scmp.lt.s32.totalorder %s26, 0
        %s353 = scalar_select %p352, %s26, 0
        %s354 = smul.addr %s351, 4
        %s355 = sadd.s32 %s353, %s354
        %s356 = smul.addr %s355, 8
        %s357 = scalar_lea.vmem %s0, %s356
      $region52: #{dftr_forward.2} parent=47 // pred_fallthru
        _
      // Predicated region
      $region53: #{dftr_forward.2} parent=47 // pred_check
        %p358 = pneg %p78
      $region54: #{dftr_forward.2} parent=47 // pred_check_branch
        %360 = sbr.rel (%p358) target = $region56
      $region55: #{dftr_forward.2} parent=47 // pred_region
        %p361 = scmp.lt.s32.totalorder %s25, 1
        %s362 = scalar_select %p361, %s25, 1
        %s363 = smul.addr %s362, 4
        %s364 = smul.addr %s363, 8
        %s365 = scalar_lea.vmem %s1, %s364
      $region56: #{dftr_forward.2} parent=47 // pred_fallthru
        _
    $region48: #{dftr_forward.2} parent=5 // pred_fallthru
      _
    %p366 = scmp.le.s32.totalorder 1, %s18
    %p367 = scmp.lt.s32.totalorder %s18, 3
    %p368 = pnand %p366, %p367
    %p369 = pneg %p368
    // Predicated region
    $region57: #{dftr_forward.2} parent=5 // pred_check
      _
    $region58: #{dftr_forward.2} parent=5 // pred_check_branch
      %371 = sbr.rel (%p368) target = $region60
    $region59: #{dftr_forward.2} parent=5 // pred_region
      %s372 = ssub.s32 %s18, 1
      %p373 = scmp.lt.s32.totalorder %s27, 1
      %s374 = scalar_select %p373, %s27, 1
      %p375 = scmp.lt.s32.totalorder %s28, 0
      %s376 = scalar_select %p375, %s28, 0
      %s377 = smul.addr %s374, 4
      %s378 = sadd.s32 %s376, %s377
      %s379 = smul.addr %s378, 8
      %s380 = scalar_lea.vmem %s0, %s379
      %p381 = pneg %p58
      %p382 = pneg %p55
      %p383 = scmp.lt.s32.totalorder %s27, 1
      %s384 = scalar_select %p383, %s27, 1
      %s385 = smul.addr %s384, 4
      %s386 = smul.addr %s385, 8
      %s387 = scalar_lea.vmem %s1, %s386
      %p388 = pneg %p84
      %p389 = pneg %p81
      %p390 = pneg %p105
      %p391 = pneg %p102
      %p392 = pneg %p126
      %p393 = pneg %p123
      %p394 = pneg %p147
      %p395 = pneg %p144
      %p396 = pneg %p168
      %p397 = pneg %p165
      %p398 = pneg %p189
      %p399 = pneg %p186
      %p400 = pneg %p210
      %p401 = pneg %p207
      %p402 = pneg %p231
      %p403 = pneg %p228
      %p404 = pneg %p252
      %p405 = pneg %p249
      %p406 = pneg %p278
      %p407 = pneg %p275
      %p408 = scmp.lt.s32.totalorder %s27, 1
      %s409 = scalar_select %p408, %s27, 1
      %s410 = scalar_lea.vmem %s10, %s409
      %p411 = pneg %p304
      %p412 = pneg %p301
      %p413 = scmp.lt.s32.totalorder %s27, 1
      %s414 = scalar_select %p413, %s27, 1
      %s415 = scalar_lea.vmem %s11, %s414
      %p416 = scmp.lt.s32.totalorder %s27, 1
      %s417 = scalar_select %p416, %s27, 1
      %p418 = scmp.lt.s32.totalorder %s28, 0
      %s419 = scalar_select %p418, %s28, 0
      %s420 = smul.addr %s417, 4
      %s421 = sadd.s32 %s419, %s420
      %s422 = smul.addr %s421, 8
      %s423 = scalar_lea.vmem %s0, %s422
      %p424 = scmp.lt.s32.totalorder %s27, 1
      %s425 = scalar_select %p424, %s27, 1
      %s426 = smul.addr %s425, 4
      %s427 = smul.addr %s426, 8
      %s428 = scalar_lea.vmem %s1, %s427
      %p429 = scmp.lt.s32.totalorder %s27, 1
      %s430 = scalar_select %p429, %s27, 1
      %s431 = scalar_lea.vmem %s10, %s430
      %p432 = scmp.lt.s32.totalorder %s27, 1
      %s433 = scalar_select %p432, %s27, 1
      %s434 = scalar_lea.vmem %s11, %s433
      %p436 = scmp.eq.s32.totalorder %s28, 0
      // Predicated region
      $region61: #{dftr_forward.2} parent=59 // pred_check
        %p437 = pneg %p436
      $region62: #{dftr_forward.2} parent=59 // pred_check_branch
        %439 = sbr.rel (%p437) target = $region64
      $region63: #{dftr_forward.2} parent=59 // pred_region
        %vm440 = vcmask 7168
        %441 = vst.msk [vmem:[#allocation2] sm:$0xff] %vm440, -inf
        %442 = vst.msk [vmem:[#allocation2 + $0x8] sm:$0xff] %vm440, -inf
        %443 = vst.msk [vmem:[#allocation2 + $0x10] sm:$0xff] %vm440, -inf
        %444 = vst.msk [vmem:[#allocation2 + $0x18] sm:$0xff] %vm440, -inf
      $region64: #{dftr_forward.2} parent=59 // pred_fallthru
        _
      %v445 = vld [vmem:[%s423] sm:$0xff]
      %v446 = vld [vmem:[%s423 + $0x8] sm:$0xff]
      %v447 = vld [vmem:[%s423 + $0x10] sm:$0xff]
      %v448 = vld [vmem:[%s423 + $0x18] sm:$0xff]
      %v449 = vld [vmem:[#allocation2] sm:$0xff]
      %v450 = vld [vmem:[#allocation2 + $0x8] sm:$0xff]
      %v451 = vld [vmem:[#allocation2 + $0x10] sm:$0xff]
      %v452 = vld [vmem:[#allocation2 + $0x18] sm:$0xff]
      %vm453 = vcmask 130048
      %v454 = vsel %vm453, %v445, -inf
      %455 = vmax.xlane.f32.xlu0 %v454
      %v456 = vpop.xlane.xlu0 %455
      %v457 = vsel %vm453, %v446, -inf
      %458 = vmax.xlane.f32.xlu0 %v457
      %v459 = vpop.xlane.xlu0 %458
      %v460 = vsel %vm453, %v447, -inf
      %461 = vmax.xlane.f32.xlu0 %v460
      %v462 = vpop.xlane.xlu0 %461
      %v463 = vsel %vm453, %v448, -inf
      %464 = vmax.xlane.f32.xlu0 %v463
      %v465 = vpop.xlane.xlu0 %464
      %v466 = vmax.f32 %v449, %v456
      %v467 = vmax.f32 %v450, %v459
      %v468 = vmax.f32 %v451, %v462
      %v469 = vmax.f32 %v452, %v465
      %vm470 = vcmask 7168
      %471 = vst.msk [vmem:[#allocation2] sm:$0xff] %vm470, %v466
      %472 = vst.msk [vmem:[#allocation2 + $0x8] sm:$0xff] %vm470, %v467
      %473 = vst.msk [vmem:[#allocation2 + $0x10] sm:$0xff] %vm470, %v468
      %474 = vst.msk [vmem:[#allocation2 + $0x18] sm:$0xff] %vm470, %v469
      // Predicated region
      $region65: #{dftr_forward.2} parent=59 // pred_check
        %p475 = pneg %p436
      $region66: #{dftr_forward.2} parent=59 // pred_check_branch
        %477 = sbr.rel (%p475) target = $region68
      $region67: #{dftr_forward.2} parent=59 // pred_region
        %v478 = vld [vmem:[%s428] sm:$0xff]
        %v479 = vld [vmem:[%s428 + $0x8] sm:$0xff]
        %v480 = vld [vmem:[%s428 + $0x10] sm:$0xff]
        %v481 = vld [vmem:[%s428 + $0x18] sm:$0xff]
        %v482 = vld [vmem:[#allocation2] sm:$0xff]
        %v483 = vld [vmem:[#allocation2 + $0x8] sm:$0xff]
        %v484 = vld [vmem:[#allocation2 + $0x10] sm:$0xff]
        %v485 = vld [vmem:[#allocation2 + $0x18] sm:$0xff]
        %486 = vxpose.xlu0.b32.start [1/16] %v482, 128
        %487 = vxpose.xlu0.b32.cont [2/16] %v483, 128
        %488 = vxpose.xlu0.b32.cont [3/16] %v484, 128
        %489 = vxpose.xlu0.b32.cont [4/16] %v485, 128
        %490 = vxpose.xlu0.b32.cont [5/16] 0.0, 128
        %491 = vxpose.xlu0.b32.cont [6/16] 0.0, 128
        %492 = vxpose.xlu0.b32.cont [7/16] 0.0, 128
        %493 = vxpose.xlu0.b32.cont [8/16] 0.0, 128
        %494 = vxpose.xlu0.b32.cont [9/16] 0.0, 128
        %495 = vxpose.xlu0.b32.cont [10/16] 0.0, 128
        %496 = vxpose.xlu0.b32.cont [11/16] 0.0, 128
        %497 = vxpose.xlu0.b32.cont [12/16] 0.0, 128
        %498 = vxpose.xlu0.b32.cont [13/16] 0.0, 128
        %499 = vxpose.xlu0.b32.cont [14/16] 0.0, 128
        %500 = vxpose.xlu0.b32.cont [15/16] 0.0, 128
        %501 = vxpose.xlu0.b32.end [16/16] 0.0, 128
        %v502 = vpop.trf.xlu0
        %v503 = vpop.trf.xlu0
        %v504 = vpop.trf.xlu0
        %v505 = vpop.trf.xlu0
        %v506 = vpop.trf.xlu0
        %v507 = vpop.trf.xlu0
        %v508 = vpop.trf.xlu0
        %v509 = vpop.trf.xlu0
        %v510 = vpop.trf.xlu0
        %v511 = vpop.trf.xlu0
        %v512 = vpop.trf.xlu0
        %v513 = vpop.trf.xlu0
        %v514 = vpop.trf.xlu0
        %v515 = vpop.trf.xlu0
        %v516 = vpop.trf.xlu0
        %v517 = vpop.trf.xlu0
        %vm518 = vcmask 64512
        %v519 = vsel %vm518, %v478, -inf
        %520 = vmax.xlane.f32.xlu0 %v519
        %v521 = vpop.xlane.xlu0 %520
        %v522 = vsel %vm518, %v479, -inf
        %523 = vmax.xlane.f32.xlu0 %v522
        %v524 = vpop.xlane.xlu0 %523
        %v525 = vsel %vm518, %v480, -inf
        %526 = vmax.xlane.f32.xlu0 %v525
        %v527 = vpop.xlane.xlu0 %526
        %v528 = vsel %vm518, %v481, -inf
        %529 = vmax.xlane.f32.xlu0 %v528
        %v530 = vpop.xlane.xlu0 %529
        %531 = vxpose.xlu0.b32.start [1/16] %v521, 128
        %532 = vxpose.xlu0.b32.cont [2/16] %v524, 128
        %533 = vxpose.xlu0.b32.cont [3/16] %v527, 128
        %534 = vxpose.xlu0.b32.cont [4/16] %v530, 128
        %535 = vxpose.xlu0.b32.cont [5/16] 0.0, 128
        %536 = vxpose.xlu0.b32.cont [6/16] 0.0, 128
        %537 = vxpose.xlu0.b32.cont [7/16] 0.0, 128
        %538 = vxpose.xlu0.b32.cont [8/16] 0.0, 128
        %539 = vxpose.xlu0.b32.cont [9/16] 0.0, 128
        %540 = vxpose.xlu0.b32.cont [10/16] 0.0, 128
        %541 = vxpose.xlu0.b32.cont [11/16] 0.0, 128
        %542 = vxpose.xlu0.b32.cont [12/16] 0.0, 128
        %543 = vxpose.xlu0.b32.cont [13/16] 0.0, 128
        %544 = vxpose.xlu0.b32.cont [14/16] 0.0, 128
        %545 = vxpose.xlu0.b32.cont [15/16] 0.0, 128
        %546 = vxpose.xlu0.b32.end [16/16] 0.0, 128
        %v547 = vpop.trf.xlu0
        %v548 = vpop.trf.xlu0
        %v549 = vpop.trf.xlu0
        %v550 = vpop.trf.xlu0
        %v551 = vpop.trf.xlu0
        %v552 = vpop.trf.xlu0
        %v553 = vpop.trf.xlu0
        %v554 = vpop.trf.xlu0
        %v555 = vpop.trf.xlu0
        %v556 = vpop.trf.xlu0
        %v557 = vpop.trf.xlu0
        %v558 = vpop.trf.xlu0
        %v559 = vpop.trf.xlu0
        %v560 = vpop.trf.xlu0
        %v561 = vpop.trf.xlu0
        %v562 = vpop.trf.xlu0
        %563 = vxpose.xlu0.b32.start [1/16] %v478, 128
        %564 = vxpose.xlu0.b32.cont [2/16] %v479, 128
        %565 = vxpose.xlu0.b32.cont [3/16] %v480, 128
        %566 = vxpose.xlu0.b32.cont [4/16] %v481, 128
        %567 = vxpose.xlu0.b32.cont [5/16] 0.0, 128
        %568 = vxpose.xlu0.b32.cont [6/16] 0.0, 128
        %569 = vxpose.xlu0.b32.cont [7/16] 0.0, 128
        %570 = vxpose.xlu0.b32.cont [8/16] 0.0, 128
        %571 = vxpose.xlu0.b32.cont [9/16] 0.0, 128
        %572 = vxpose.xlu0.b32.cont [10/16] 0.0, 128
        %573 = vxpose.xlu0.b32.cont [11/16] 0.0, 128
        %574 = vxpose.xlu0.b32.cont [12/16] 0.0, 128
        %575 = vxpose.xlu0.b32.cont [13/16] 0.0, 128
        %576 = vxpose.xlu0.b32.cont [14/16] 0.0, 128
        %577 = vxpose.xlu0.b32.cont [15/16] 0.0, 128
        %578 = vxpose.xlu0.b32.end [16/16] 0.0, 128
        %v579 = vpop.trf.xlu0
        %v580 = vpop.trf.xlu0
        %v581 = vpop.trf.xlu0
        %v582 = vpop.trf.xlu0
        %v583 = vpop.trf.xlu0
        %v584 = vpop.trf.xlu0
        %v585 = vpop.trf.xlu0
        %v586 = vpop.trf.xlu0
        %v587 = vpop.trf.xlu0
        %v588 = vpop.trf.xlu0
        %v589 = vpop.trf.xlu0
        %v590 = vpop.trf.xlu0
        %v591 = vpop.trf.xlu0
        %v592 = vpop.trf.xlu0
        %v593 = vpop.trf.xlu0
        %v594 = vpop.trf.xlu0
        %v595 = vpack.c.bf16 %v579, %v579
        %v596 = vpack.c.bf16 %v502, %v502
        %v597 = vld [vmem:[%s2] sm:$0xf]
        %v598 = vld [vmem:[%s2 + $0x4] sm:$0xf]
        %v599 = vld [vmem:[%s2 + $0x8] sm:$0xf]
        %v600 = vld [vmem:[%s2 + $0xc] sm:$0xf]
        %v605 = vunpack.c.l.b16 %v597
        %v606 = vunpack.c.l.b16 %v598
        %v607 = vunpack.c.l.b16 %v599
        %v608 = vunpack.c.l.b16 %v600
        %v609 = vpack.c.b16 %v606, %v605
        %v610 = vpack.c.b16 %v608, %v607
        %vm613 = vcmask 261120
        %v615 = vsel %vm613, %v596, 0
        %617 = vmatpush.bf16.msra.mxu0 0
        %618 = vmatpush.bf16.msra.mxu0 0
        %619 = vmatpush.bf16.msra.mxu0 0
        %620 = vmatpush.bf16.msra.mxu0 0
        %621 = vmatpush.bf16.msra.mxu0 0
        %622 = vmatpush.bf16.msra.mxu0 0
        %623 = vmatpush.bf16.msra.mxu0 %v610
        %624 = vmatpush.bf16.msra.mxu0 %v609
        %625 = vmatmul.bf16.gmra.mxu0 %v615
        %v626 = vpop.f32.mrf.mxu0
        %v627 = vadd.f32 0.0, %v626
        %v628 = vpop.f32.mrf.mxu0
        %629 = vdwg.mxu0
        %v630 = vld [vmem:[%s3] sm:$0xf]
        %v631 = vld [vmem:[%s3 + $0x4] sm:$0xf]
        %v632 = vld [vmem:[%s3 + $0x8] sm:$0xf]
        %v633 = vld [vmem:[%s3 + $0xc] sm:$0xf]
        %v638 = vunpack.c.l.b16 %v630
        %v639 = vunpack.c.l.b16 %v631
        %v640 = vunpack.c.l.b16 %v632
        %v641 = vunpack.c.l.b16 %v633
        %v642 = vpack.c.b16 %v639, %v638
        %v643 = vpack.c.b16 %v641, %v640
        %v647 = vsel %vm613, %v595, 0
        %649 = vmatpush.bf16.msra.mxu0 0
        %650 = vmatpush.bf16.msra.mxu0 0
        %651 = vmatpush.bf16.msra.mxu0 0
        %652 = vmatpush.bf16.msra.mxu0 0
        %653 = vmatpush.bf16.msra.mxu0 0
        %654 = vmatpush.bf16.msra.mxu0 0
        %655 = vmatpush.bf16.msra.mxu0 %v643
        %656 = vmatpush.bf16.msra.mxu0 %v642
        %657 = vmatmul.bf16.gmra.mxu0 %v647
        %v658 = vpop.f32.mrf.mxu0
        %v659 = vadd.f32 0.0, %v658
        %v660 = vpop.f32.mrf.mxu0
        %661 = vdwg.mxu0
        %v662 = vld [vmem:[%s4] sm:$0xf]
        %v663 = vld [vmem:[%s4 + $0x4] sm:$0xf]
        %v664 = vld [vmem:[%s4 + $0x8] sm:$0xf]
        %v665 = vld [vmem:[%s4 + $0xc] sm:$0xf]
        %v670 = vunpack.c.l.b16 %v662
        %v671 = vunpack.c.l.b16 %v663
        %v672 = vunpack.c.l.b16 %v664
        %v673 = vunpack.c.l.b16 %v665
        %v674 = vpack.c.b16 %v671, %v670
        %v675 = vpack.c.b16 %v673, %v672
        %678 = vmatpush.bf16.msra.mxu0 0
        %679 = vmatpush.bf16.msra.mxu0 0
        %680 = vmatpush.bf16.msra.mxu0 0
        %681 = vmatpush.bf16.msra.mxu0 0
        %682 = vmatpush.bf16.msra.mxu0 0
        %683 = vmatpush.bf16.msra.mxu0 0
        %684 = vmatpush.bf16.msra.mxu0 %v675
        %685 = vmatpush.bf16.msra.mxu0 %v674
        %686 = vmatmul.bf16.gmra.mxu0 %v647
        %v687 = vpop.f32.mrf.mxu0
        %v688 = vadd.f32 0.0, %v687
        %v689 = vpop.f32.mrf.mxu0
        %690 = vdwg.mxu0
        %v691 = vpack.c.bf16 %v627, %v627
        %v692 = vpack.c.bf16 %v659, %v659
        %v694 = vsel %vm453, %v691, 0
        %v697 = vsel %vm453, %v692, 0
        %699 = vmatpush.bf16.xpose.msra.mxu0 0
        %700 = vmatpush.bf16.xpose.msra.mxu0 0
        %701 = vmatpush.bf16.xpose.msra.mxu0 0
        %702 = vmatpush.bf16.xpose.msra.mxu0 0
        %703 = vmatpush.bf16.xpose.msra.mxu0 0
        %704 = vmatpush.bf16.xpose.msra.mxu0 0
        %705 = vmatpush.bf16.xpose.msra.mxu0 0
        %706 = vmatpush.bf16.xpose.msra.mxu0 %v697
        %707 = vmatmul.bf16.gmra.mxu0 %v694
        %v708 = vpop.f32.mrf.mxu0
        %v709 = vadd.f32 0.0, %v708
        %v710 = vpop.f32.mrf.mxu0
        %711 = vdwg.mxu0
        %v712 = vmul.f32 %v709, 0.25
        %vm713 = vcmask 57344
        %v714 = vsel %vm713, %v712, -inf
        %715 = vmax.xlane.f32.xlu0 %v714
        %v716 = vpop.xlane.xlu0 %715
        %v717 = vsub.f32 %v712, %v716
        %v718 = vmul.f32 %v717, 1.442695
        %v719 = vpow.pop %v718
        %v720 = vsel %vm713, %v719, 0.0
        %721 = vadd.xlane.f32.xlu0 %v720
        %v722 = vpop.xlane.xlu0 %721
        %v723 = vrcp.pop %v722
        %v724 = vmul.f32 %v719, %v723
        %v725 = vpack.c.bf16 %v724, %v724
        %v726 = vpack.c.bf16 %v688, %v688
        %v728 = vsel %vm518, %v725, 0
        %vm730 = vcmask 1043456
        %v732 = vsel %vm730, %v726, 0
        %734 = vmatpush.bf16.msra.mxu0 0
        %735 = vmatpush.bf16.msra.mxu0 0
        %736 = vmatpush.bf16.msra.mxu0 0
        %737 = vmatpush.bf16.msra.mxu0 0
        %738 = vmatpush.bf16.msra.mxu0 0
        %739 = vmatpush.bf16.msra.mxu0 0
        %740 = vmatpush.bf16.msra.mxu0 0
        %741 = vmatpush.bf16.msra.mxu0 %v732
        %742 = vmatmul.bf16.gmra.mxu0 %v728
        %v743 = vpop.f32.mrf.mxu0
        %v744 = vadd.f32 0.0, %v743
        %v745 = vpop.f32.mrf.mxu0
        %746 = vdwg.mxu0
        %v747 = vpack.c.bf16 %v744, %v744
        %v748 = vld [vmem:[%s5] sm:$0xf]
        %v749 = vld [vmem:[%s5 + $0x4] sm:$0xf]
        %s750 = scalar_lea.vmem %s2, 16
        %v751 = vld [vmem:[%s750] sm:$0xf]
        %v752 = vld [vmem:[%s750 + $0x4] sm:$0xf]
        %v753 = vld [vmem:[%s750 + $0x8] sm:$0xf]
        %v754 = vld [vmem:[%s750 + $0xc] sm:$0xf]
        %v759 = vunpack.c.l.b16 %v751
        %v760 = vunpack.c.l.b16 %v752
        %v761 = vunpack.c.l.b16 %v753
        %v762 = vunpack.c.l.b16 %v754
        %v763 = vpack.c.b16 %v760, %v759
        %v764 = vpack.c.b16 %v762, %v761
        %767 = vmatpush.bf16.msra.mxu0 0
        %768 = vmatpush.bf16.msra.mxu0 0
        %769 = vmatpush.bf16.msra.mxu0 0
        %770 = vmatpush.bf16.msra.mxu0 0
        %771 = vmatpush.bf16.msra.mxu0 0
        %772 = vmatpush.bf16.msra.mxu0 0
        %773 = vmatpush.bf16.msra.mxu0 %v764
        %774 = vmatpush.bf16.msra.mxu0 %v763
        %775 = vmatmul.bf16.gmra.mxu0 %v615
        %v776 = vpop.f32.mrf.mxu0
        %v777 = vadd.f32 0.0, %v776
        %v778 = vpop.f32.mrf.mxu0
        %779 = vdwg.mxu0
        %s780 = scalar_lea.vmem %s3, 16
        %v781 = vld [vmem:[%s780] sm:$0xf]
        %v782 = vld [vmem:[%s780 + $0x4] sm:$0xf]
        %v783 = vld [vmem:[%s780 + $0x8] sm:$0xf]
        %v784 = vld [vmem:[%s780 + $0xc] sm:$0xf]
        %v789 = vunpack.c.l.b16 %v781
        %v790 = vunpack.c.l.b16 %v782
        %v791 = vunpack.c.l.b16 %v783
        %v792 = vunpack.c.l.b16 %v784
        %v793 = vpack.c.b16 %v790, %v789
        %v794 = vpack.c.b16 %v792, %v791
        %797 = vmatpush.bf16.msra.mxu0 0
        %798 = vmatpush.bf16.msra.mxu0 0
        %799 = vmatpush.bf16.msra.mxu0 0
        %800 = vmatpush.bf16.msra.mxu0 0
        %801 = vmatpush.bf16.msra.mxu0 0
        %802 = vmatpush.bf16.msra.mxu0 0
        %803 = vmatpush.bf16.msra.mxu0 %v794
        %804 = vmatpush.bf16.msra.mxu0 %v793
        %805 = vmatmul.bf16.gmra.mxu0 %v647
        %v806 = vpop.f32.mrf.mxu0
        %v807 = vadd.f32 0.0, %v806
        %v808 = vpop.f32.mrf.mxu0
        %809 = vdwg.mxu0
        %s810 = scalar_lea.vmem %s4, 16
        %v811 = vld [vmem:[%s810] sm:$0xf]
        %v812 = vld [vmem:[%s810 + $0x4] sm:$0xf]
        %v813 = vld [vmem:[%s810 + $0x8] sm:$0xf]
        %v814 = vld [vmem:[%s810 + $0xc] sm:$0xf]
        %v819 = vunpack.c.l.b16 %v811
        %v820 = vunpack.c.l.b16 %v812
        %v821 = vunpack.c.l.b16 %v813
        %v822 = vunpack.c.l.b16 %v814
        %v823 = vpack.c.b16 %v820, %v819
        %v824 = vpack.c.b16 %v822, %v821
        %827 = vmatpush.bf16.msra.mxu0 0
        %828 = vmatpush.bf16.msra.mxu0 0
        %829 = vmatpush.bf16.msra.mxu0 0
        %830 = vmatpush.bf16.msra.mxu0 0
        %831 = vmatpush.bf16.msra.mxu0 0
        %832 = vmatpush.bf16.msra.mxu0 0
        %833 = vmatpush.bf16.msra.mxu0 %v824
        %834 = vmatpush.bf16.msra.mxu0 %v823
        %835 = vmatmul.bf16.gmra.mxu0 %v647
        %v836 = vpop.f32.mrf.mxu0
        %v837 = vadd.f32 0.0, %v836
        %v838 = vpop.f32.mrf.mxu0
        %839 = vdwg.mxu0
        %v840 = vpack.c.bf16 %v777, %v777
        %v841 = vpack.c.bf16 %v807, %v807
        %v843 = vsel %vm453, %v840, 0
        %v846 = vsel %vm453, %v841, 0
        %848 = vmatpush.bf16.xpose.msra.mxu0 0
        %849 = vmatpush.bf16.xpose.msra.mxu0 0
        %850 = vmatpush.bf16.xpose.msra.mxu0 0
        %851 = vmatpush.bf16.xpose.msra.mxu0 0
        %852 = vmatpush.bf16.xpose.msra.mxu0 0
        %853 = vmatpush.bf16.xpose.msra.mxu0 0
        %854 = vmatpush.bf16.xpose.msra.mxu0 0
        %855 = vmatpush.bf16.xpose.msra.mxu0 %v846
        %856 = vmatmul.bf16.gmra.mxu0 %v843
        %v857 = vpop.f32.mrf.mxu0
        %v858 = vadd.f32 0.0, %v857
        %v859 = vpop.f32.mrf.mxu0
        %860 = vdwg.mxu0
        %v861 = vmul.f32 %v858, 0.25
        %v862 = vsel %vm713, %v861, -inf
        %863 = vmax.xlane.f32.xlu0 %v862
        %v864 = vpop.xlane.xlu0 %863
        %v865 = vsub.f32 %v861, %v864
        %v866 = vmul.f32 %v865, 1.442695
        %v867 = vpow.pop %v866
        %v868 = vsel %vm713, %v867, 0.0
        %869 = vadd.xlane.f32.xlu0 %v868
        %v870 = vpop.xlane.xlu0 %869
        %v871 = vrcp.pop %v870
        %v872 = vmul.f32 %v867, %v871
        %v873 = vpack.c.bf16 %v872, %v872
        %v874 = vpack.c.bf16 %v837, %v837
        %v876 = vsel %vm518, %v873, 0
        %v879 = vsel %vm730, %v874, 0
        %881 = vmatpush.bf16.msra.mxu0 0
        %882 = vmatpush.bf16.msra.mxu0 0
        %883 = vmatpush.bf16.msra.mxu0 0
        %884 = vmatpush.bf16.msra.mxu0 0
        %885 = vmatpush.bf16.msra.mxu0 0
        %886 = vmatpush.bf16.msra.mxu0 0
        %887 = vmatpush.bf16.msra.mxu0 0
        %888 = vmatpush.bf16.msra.mxu0 %v879
        %889 = vmatmul.bf16.gmra.mxu0 %v876
        %v890 = vpop.f32.mrf.mxu0
        %v891 = vadd.f32 0.0, %v890
        %v892 = vpop.f32.mrf.mxu0
        %893 = vdwg.mxu0
        %v894 = vpack.c.bf16 %v891, %v891
        %s895 = scalar_lea.vmem %s5, 8
        %v896 = vld [vmem:[%s895] sm:$0xf]
        %v897 = vld [vmem:[%s895 + $0x4] sm:$0xf]
        %v900 = vunpack.c.l.b16 %v896
        %v901 = vunpack.c.l.b16 %v897
        %v902 = vpack.c.b16 %v901, %v900
        %v905 = vsel %vm453, %v894, 0
        %907 = vmatpush.bf16.msra.mxu0 0
        %908 = vmatpush.bf16.msra.mxu0 0
        %909 = vmatpush.bf16.msra.mxu0 0
        %910 = vmatpush.bf16.msra.mxu0 0
        %911 = vmatpush.bf16.msra.mxu0 0
        %912 = vmatpush.bf16.msra.mxu0 0
        %913 = vmatpush.bf16.msra.mxu0 0
        %914 = vmatpush.bf16.msra.mxu0 %v902
        %915 = vmatmul.bf16.gmra.mxu0 %v905
        %v916 = vpop.f32.mrf.mxu0
        %v917 = vadd.f32 0.0, %v916
        %v918 = vpop.f32.mrf.mxu0
        %919 = vdwg.mxu0
        %v922 = vunpack.c.l.b16 %v748
        %v923 = vunpack.c.l.b16 %v749
        %v924 = vpack.c.b16 %v923, %v922
        %v927 = vsel %vm453, %v747, 0
        %929 = vmatpush.bf16.msra.mxu0 0
        %930 = vmatpush.bf16.msra.mxu0 0
        %931 = vmatpush.bf16.msra.mxu0 0
        %932 = vmatpush.bf16.msra.mxu0 0
        %933 = vmatpush.bf16.msra.mxu0 0
        %934 = vmatpush.bf16.msra.mxu0 0
        %935 = vmatpush.bf16.msra.mxu0 0
        %936 = vmatpush.bf16.msra.mxu0 %v924
        %937 = vmatmul.bf16.gmra.mxu0 %v927
        %v938 = vpop.f32.mrf.mxu0
        %v939 = vadd.f32 %v917, %v938
        %v940 = vpop.f32.mrf.mxu0
        %941 = vdwg.mxu0
        %v942 = vld [vmem:[%s6] sm:$0x1]
        %v943 = vadd.f32 %v939, %v942
        %v944 = vadd.f32 %v943, %v502
        %v945 = vpack.c.bf16 %v944, %v944
        %v946 = vld [vmem:[%s7] sm:$0xf]
        %v947 = vld [vmem:[%s7 + $0x4] sm:$0xf]
        %v948 = vld [vmem:[%s7 + $0x8] sm:$0xf]
        %v949 = vld [vmem:[%s7 + $0xc] sm:$0xf]
        %v954 = vunpack.c.l.b16 %v946
        %v955 = vunpack.c.l.b16 %v947
        %v956 = vunpack.c.l.b16 %v948
        %v957 = vunpack.c.l.b16 %v949
        %v958 = vpack.c.b16 %v955, %v954
        %v959 = vpack.c.b16 %v957, %v956
        %v963 = vsel %vm613, %v945, 0
        %965 = vmatpush.bf16.msra.mxu0 0
        %966 = vmatpush.bf16.msra.mxu0 0
        %967 = vmatpush.bf16.msra.mxu0 0
        %968 = vmatpush.bf16.msra.mxu0 0
        %969 = vmatpush.bf16.msra.mxu0 0
        %970 = vmatpush.bf16.msra.mxu0 0
        %971 = vmatpush.bf16.msra.mxu0 %v959
        %972 = vmatpush.bf16.msra.mxu0 %v958
        %973 = vmatmul.bf16.gmra.mxu0 %v963
        %v974 = vpop.f32.mrf.mxu0
        %v975 = vadd.f32 0.0, %v974
        %v976 = vpop.f32.mrf.mxu0
        %977 = vdwg.mxu0
        %v978 = vpack.c.bf16 %v975, %v975
        %v979 = vld [vmem:[%s8] sm:$0xf]
        %v980 = vld [vmem:[%s8 + $0x4] sm:$0xf]
        %v981 = vld [vmem:[%s8 + $0x8] sm:$0xf]
        %v982 = vld [vmem:[%s8 + $0xc] sm:$0xf]
        %v983 = vld [vmem:[%s9] sm:$0x1]
        %v988 = vunpack.c.l.b16 %v979
        %v989 = vunpack.c.l.b16 %v980
        %v990 = vunpack.c.l.b16 %v981
        %v991 = vunpack.c.l.b16 %v982
        %v992 = vpack.c.b16 %v989, %v988
        %v993 = vpack.c.b16 %v991, %v990
        %v997 = vsel %vm613, %v978, 0
        %999 = vmatpush.bf16.msra.mxu0 0
        %1000 = vmatpush.bf16.msra.mxu0 0
        %1001 = vmatpush.bf16.msra.mxu0 0
        %1002 = vmatpush.bf16.msra.mxu0 0
        %1003 = vmatpush.bf16.msra.mxu0 0
        %1004 = vmatpush.bf16.msra.mxu0 0
        %1005 = vmatpush.bf16.msra.mxu0 %v993
        %1006 = vmatpush.bf16.msra.mxu0 %v992
        %1007 = vmatmul.bf16.gmra.mxu0 %v997
        %v1008 = vpop.f32.mrf.mxu0
        %v1009 = vadd.f32 %v983, %v1008
        %v1010 = vpop.f32.mrf.mxu0
        %1011 = vdwg.mxu0
        %v1012 = vadd.f32 %v1009, %v547
        %vm1013 = vcmask 253952
        %1014 = vst.msk [vmem:[%s431] sm:$0x1] %vm1013, %v944
        %1015 = vst.msk [vmem:[%s434] sm:$0x1] %vm1013, %v1012
      $region68: #{dftr_forward.2} parent=59 // pred_fallthru
        _
      %p1016 = scmp.lt.s32.totalorder %s27, 1
      %s1017 = scalar_select %p1016, %s27, 1
      %s1018 = scalar_lea.vmem %s10, %s1017
      %p1019 = scmp.lt.s32.totalorder %s27, 1
      %s1020 = scalar_select %p1019, %s27, 1
      %s1021 = scalar_lea.vmem %s11, %s1020
      // Predicated region
      $region69: #{dftr_forward.2} parent=59 // pred_check
        %p1022 = pneg %p275
      $region70: #{dftr_forward.2} parent=59 // pred_check_branch
        %1024 = sbr.rel (%p1022) target = $region72
      $region71: #{dftr_forward.2} parent=59 // pred_region
        _
      $region72: #{dftr_forward.2} parent=59 // pred_fallthru
        _
      // Predicated region
      $region73: #{dftr_forward.2} parent=59 // pred_check
        %p1025 = pneg %p301
      $region74: #{dftr_forward.2} parent=59 // pred_check_branch
        %1027 = sbr.rel (%p1025) target = $region76
      $region75: #{dftr_forward.2} parent=59 // pred_region
        _
      $region76: #{dftr_forward.2} parent=59 // pred_fallthru
        _
    $region60: #{dftr_forward.2} parent=5 // pred_fallthru
      _
    %p1028 = scmp.le.s32.totalorder 2, %s18
    // Predicated region
    $region77: #{dftr_forward.2} parent=5 // pred_check
      %p1029 = pneg %p1028
    $region78: #{dftr_forward.2} parent=5 // pred_check_branch
      %1031 = sbr.rel (%p1029) target = $region80
    $region79: #{dftr_forward.2} parent=5 // pred_region
      %s1032 = ssub.s32 %s18, 2
      // Predicated region
      $region81: #{dftr_forward.2} parent=79 // pred_check
        %p1033 = pneg %p281
      $region82: #{dftr_forward.2} parent=79 // pred_check_branch
        %1035 = sbr.rel (%p1033) target = $region84
      $region83: #{dftr_forward.2} parent=79 // pred_region
        %p1036 = scmp.lt.s32.totalorder %s29, 1
        %s1037 = scalar_select %p1036, %s29, 1
        %s1038 = scalar_lea.vmem %s10, %s1037
      $region84: #{dftr_forward.2} parent=79 // pred_fallthru
        _
      // Predicated region
      $region85: #{dftr_forward.2} parent=79 // pred_check
        %p1039 = pneg %p307
      $region86: #{dftr_forward.2} parent=79 // pred_check_branch
        %1041 = sbr.rel (%p1039) target = $region88
      $region87: #{dftr_forward.2} parent=79 // pred_region
        %p1042 = scmp.lt.s32.totalorder %s29, 1
        %s1043 = scalar_select %p1042, %s29, 1
        %s1044 = scalar_lea.vmem %s11, %s1043
      $region88: #{dftr_forward.2} parent=79 // pred_fallthru
        _
    $region80: #{dftr_forward.2} parent=5 // pred_fallthru
      _
  $region6: #{dftr_forward.2} parent=0 // loop_footer
    %s22 = sadd.s32 1, %s18
  $region7: #{dftr_forward.2} parent=0 // loop_footer_branch
    %17 = sbr.rel target = $region3
  $region8: #{dftr_forward.2} parent=0 // loop_exit
    _

// kernel: dftr_forward.3
$region0: #{dftr_forward.3}
  #allocation0 [shape = 'u32[]', space=smem, size = 0x4, offset = 0x4, fixed_abs, tag = 'smem constant byte address 0x4 - core index']
  #allocation1 [shape = 'u32[72,128]{1,0:T(1,128)}', space=vmem, size = 0x9000, scoped, tag = 'internal scratch']
  #allocation2 [shape = 'bf16[2,24,16]{2,1,0:T(8,128)(2,1)}', space=vmem, size = 0x3000, scoped, tag = 'scratch operand']
  #allocation3 [shape = 'f32[2,24,1]{2,1,0:T(8,128)}', space=vmem, size = 0x6000, scoped, tag = 'scratch operand']
  #allocation4 [shape = 'f32[2,24,1]{2,1,0:T(8,128)}', space=vmem, size = 0x6000, scoped, tag = 'scratch operand']
  #allocation5 [shape = 'f32[2,24,16]{2,1,0:T(8,128)}', space=vmem, size = 0x6000, scoped, tag = 'scratch operand']
  %s0 = inlined_call_operand.vmem [shape: f32[2,1,32], index: 0, kind: input, shape index: {}]
  %s1 = inlined_call_operand.vmem [shape: f32[2,1,32], index: 1, kind: input, shape index: {}]
  %s2 = inlined_call_operand.vmem [shape: bf16[24,32], index: 2, kind: input, shape index: {}, may-alias: {2,3}]
  %s3 = inlined_call_operand.vmem [shape: bf16[24,32], index: 3, kind: input, shape index: {}, may-alias: {2,3}]
  %s4 = inlined_call_operand.vmem [shape: bf16[2,32,16], index: 4, kind: input, shape index: {}]
  %s5 = inlined_call_operand.vmem [shape: bf16[2,32,16], index: 5, kind: input, shape index: {}]
  %s6 = inlined_call_operand.vmem [shape: bf16[2,32,16], index: 6, kind: input, shape index: {}]
  %s7 = inlined_call_operand.vmem [shape: bf16[2,16,32], index: 7, kind: input, shape index: {}]
  %s8 = inlined_call_operand.vmem [shape: bf16[32,64], index: 8, kind: input, shape index: {}]
  %s9 = inlined_call_operand.vmem [shape: bf16[64,32], index: 9, kind: input, shape index: {}]
  %s10 = inlined_call_operand.vmem [shape: f32[2,1,16], index: 10, kind: input, shape index: {}]
  %s11 = inlined_call_operand.vmem [shape: f32[2,1,16], index: 11, kind: input, shape index: {}]
  %s12 = inlined_call_operand.vmem [shape: f32[2,1,16], index: 12, kind: input, shape index: {}]
  %s13 = inlined_call_operand.vmem [shape: f32[1,32], index: 13, kind: input, shape index: {}]
  %s14 = inlined_call_operand.vmem [shape: f32[1,64], index: 14, kind: input, shape index: {}]
  %s15 = inlined_call_operand.vmem [shape: f32[1,32], index: 15, kind: input, shape index: {}]
  %s16 = inlined_call_operand.vmem [shape: f32[6,32], index: 16, kind: input, shape index: {}]
  %s17 = inlined_call_operand.vmem [shape: f32[2,32,24], index: 17, kind: output, shape index: {}]
  %s18 = sld [smem:[#allocation0]]
  $region109: #{dftr_forward.3} parent=0
    _
  %s20 = ssub.s32 1, %s18
  %s21 = scalar_select 0, %s20, %s18
  loop: start=0, step=1, limit=4
  $region2: #{dftr_forward.3} parent=0 // loop_pre_header
    _
  $region3: #{dftr_forward.3} parent=0 // loop_header
    %s23 = sphi 0, %s27
    %p24 = scmp.ge.s32.totalorder %s23, 4
    %s30 = sphi 0, %s49
    %s31 = sphi 0, %s45
    %s32 = sphi 0, %s41
    %s33 = sphi 0, %s30
    %s34 = sphi 0, %s31
    %s35 = sphi 0, %s32
    %s36 = sphi 0, %s33
    %s37 = sphi 0, %s34
    %s38 = sphi 0, %s35
    %s52 = sphi 0, %s54
    %s55 = sphi 0, %s52
    %s56 = sphi 0, %s55
    %s72 = sphi 0, %s56
    %s78 = sphi 0, %s80
    %s81 = sphi 0, %s78
    %s82 = sphi 0, %s81
    %s98 = sphi 0, %s82
    %s104 = sphi 0, %s106
    %s107 = sphi 0, %s104
    %s108 = sphi 0, %s107
    %s124 = sphi 0, %s108
    %s130 = sphi 0, %s132
    %s133 = sphi 0, %s130
    %s134 = sphi 0, %s133
    %s150 = sphi 0, %s134
    %s154 = sphi 0, %s154
    %s156 = sphi 0, %s154
    %s157 = sphi 0, %s156
    %s171 = sphi 0, %s157
    %s175 = sphi 0, %s175
    %s177 = sphi 0, %s175
    %s178 = sphi 0, %s177
    %s192 = sphi 0, %s178
    %s196 = sphi 0, %s196
    %s198 = sphi 0, %s196
    %s199 = sphi 0, %s198
    %s213 = sphi 0, %s199
    %s217 = sphi 0, %s217
    %s219 = sphi 0, %s217
    %s220 = sphi 0, %s219
    %s234 = sphi 0, %s220
    %s238 = sphi 0, %s238
    %s240 = sphi 0, %s238
    %s241 = sphi 0, %s240
    %s255 = sphi 0, %s241
    %s259 = sphi 0, %s259
    %s261 = sphi 0, %s259
    %s262 = sphi 0, %s261
    %s276 = sphi 0, %s262
    %s280 = sphi 0, %s280
    %s282 = sphi 0, %s280
    %s283 = sphi 0, %s282
    %s297 = sphi 0, %s283
    %s301 = sphi 0, %s301
    %s303 = sphi 0, %s301
    %s304 = sphi 0, %s303
    %s318 = sphi 0, %s304
    %s322 = sphi 0, %s322
    %s324 = sphi 0, %s322
    %s325 = sphi 0, %s324
    %s339 = sphi 0, %s325
    %s343 = sphi 0, %s343
    %s345 = sphi 0, %s343
    %s346 = sphi 0, %s345
    %s360 = sphi 0, %s346
    %s364 = sphi 0, %s364
    %s366 = sphi 0, %s364
    %s367 = sphi 0, %s366
    %s381 = sphi 0, %s367
    %s385 = sphi 0, %s385
    %s387 = sphi 0, %s385
    %s388 = sphi 0, %s387
    %s402 = sphi 0, %s388
    %s406 = sphi 0, %s406
    %s408 = sphi 0, %s406
    %s409 = sphi 0, %s408
    %s423 = sphi 0, %s409
    %s431 = sphi 0, %s433
    %s434 = sphi 0, %s431
    %s435 = sphi 0, %s434
    %s451 = sphi 0, %s435
  $region4: #{dftr_forward.3} parent=0 // loop_header_branch
    %26 = sbr.rel (%p24) target = $region8
  $region5: #{dftr_forward.3} parent=0 // loop_body
    %s28 = ssub.s32 %s23, 1
    %s29 = ssub.s32 %s23, 2
    %s39 = sadd.s32 1, %s32
    %p40 = scmp.ge.s32.totalorder %s39, 1
    %s41 = scalar_select %p40, 0, %s39
    %s42 = sadd.s32 1, %s31
    %s43 = scalar_select %p40, %s42, %s31
    %p44 = scmp.ge.s32.totalorder %s43, 1
    %s45 = scalar_select %p44, 0, %s43
    %s46 = sadd.s32 1, %s30
    %s47 = scalar_select %p44, %s46, %s30
    %p48 = scmp.ge.s32.totalorder %s47, 2
    %s49 = scalar_select %p48, 0, %s47
    %s50 = ssub.s32 %s30, %s49
    %p51 = scmp.eq.s32.totalorder %s50, 0
    %s53 = sadd.s32 %s52, 1
    %s54 = scalar_select %p51, %s52, %s53
    %p57 = pneg %p51
    %p58 = scmp.eq.s32.totalorder %s23, 1
    %p59 = por %p57, %p58
    %p60 = scmp.ne.s32.totalorder %s52, %s55
    %p61 = scmp.eq.s32.totalorder %s23, 0
    %p62 = por %p60, %p61
    %p63 = scmp.ne.s32.totalorder %s52, %s55
    %p64 = scmp.eq.s32.totalorder %s28, 1
    %p65 = por %p63, %p64
    %p66 = scmp.ne.s32.totalorder %s55, %s56
    %p67 = scmp.eq.s32.totalorder %s28, 0
    %p68 = por %p66, %p67
    %p69 = scmp.ne.s32.totalorder %s55, %s56
    %p70 = scmp.eq.s32.totalorder %s29, 1
    %p71 = por %p69, %p70
    %p73 = scmp.ne.s32.totalorder %s56, %s72
    %p74 = scmp.eq.s32.totalorder %s29, 0
    %p75 = por %p73, %p74
    %s76 = ssub.s32 %s30, %s49
    %p77 = scmp.eq.s32.totalorder %s76, 0
    %s79 = sadd.s32 %s78, 1
    %s80 = scalar_select %p77, %s78, %s79
    %p83 = pneg %p77
    %p84 = scmp.eq.s32.totalorder %s23, 1
    %p85 = por %p83, %p84
    %p86 = scmp.ne.s32.totalorder %s78, %s81
    %p87 = scmp.eq.s32.totalorder %s23, 0
    %p88 = por %p86, %p87
    %p89 = scmp.ne.s32.totalorder %s78, %s81
    %p90 = scmp.eq.s32.totalorder %s28, 1
    %p91 = por %p89, %p90
    %p92 = scmp.ne.s32.totalorder %s81, %s82
    %p93 = scmp.eq.s32.totalorder %s28, 0
    %p94 = por %p92, %p93
    %p95 = scmp.ne.s32.totalorder %s81, %s82
    %p96 = scmp.eq.s32.totalorder %s29, 1
    %p97 = por %p95, %p96
    %p99 = scmp.ne.s32.totalorder %s82, %s98
    %p100 = scmp.eq.s32.totalorder %s29, 0
    %p101 = por %p99, %p100
    %s102 = ssub.s32 %s31, %s45
    %p103 = scmp.eq.s32.totalorder %s102, 0
    %s105 = sadd.s32 %s104, 1
    %s106 = scalar_select %p103, %s104, %s105
    %p109 = pneg %p103
    %p110 = scmp.eq.s32.totalorder %s23, 1
    %p111 = por %p109, %p110
    %p112 = scmp.ne.s32.totalorder %s104, %s107
    %p113 = scmp.eq.s32.totalorder %s23, 0
    %p114 = por %p112, %p113
    %p115 = scmp.ne.s32.totalorder %s104, %s107
    %p116 = scmp.eq.s32.totalorder %s28, 1
    %p117 = por %p115, %p116
    %p118 = scmp.ne.s32.totalorder %s107, %s108
    %p119 = scmp.eq.s32.totalorder %s28, 0
    %p120 = por %p118, %p119
    %p121 = scmp.ne.s32.totalorder %s107, %s108
    %p122 = scmp.eq.s32.totalorder %s29, 1
    %p123 = por %p121, %p122
    %p125 = scmp.ne.s32.totalorder %s108, %s124
    %p126 = scmp.eq.s32.totalorder %s29, 0
    %p127 = por %p125, %p126
    %s128 = ssub.s32 %s32, %s41
    %p129 = scmp.eq.s32.totalorder %s128, 0
    %s131 = sadd.s32 %s130, 1
    %s132 = scalar_select %p129, %s130, %s131
    %p135 = pneg %p129
    %p136 = scmp.eq.s32.totalorder %s23, 1
    %p137 = por %p135, %p136
    %p138 = scmp.ne.s32.totalorder %s130, %s133
    %p139 = scmp.eq.s32.totalorder %s23, 0
    %p140 = por %p138, %p139
    %p141 = scmp.ne.s32.totalorder %s130, %s133
    %p142 = scmp.eq.s32.totalorder %s28, 1
    %p143 = por %p141, %p142
    %p144 = scmp.ne.s32.totalorder %s133, %s134
    %p145 = scmp.eq.s32.totalorder %s28, 0
    %p146 = por %p144, %p145
    %p147 = scmp.ne.s32.totalorder %s133, %s134
    %p148 = scmp.eq.s32.totalorder %s29, 1
    %p149 = por %p147, %p148
    %p151 = scmp.ne.s32.totalorder %s134, %s150
    %p152 = scmp.eq.s32.totalorder %s29, 0
    %p153 = por %p151, %p152
    %s155 = sadd.s32 %s154, 1
    %p158 = scmp.eq.s32.totalorder %s23, 1
    %p159 = scmp.ne.s32.totalorder %s154, %s156
    %p160 = scmp.eq.s32.totalorder %s23, 0
    %p161 = por %p159, %p160
    %p162 = scmp.ne.s32.totalorder %s154, %s156
    %p163 = scmp.eq.s32.totalorder %s28, 1
    %p164 = por %p162, %p163
    %p165 = scmp.ne.s32.totalorder %s156, %s157
    %p166 = scmp.eq.s32.totalorder %s28, 0
    %p167 = por %p165, %p166
    %p168 = scmp.ne.s32.totalorder %s156, %s157
    %p169 = scmp.eq.s32.totalorder %s29, 1
    %p170 = por %p168, %p169
    %p172 = scmp.ne.s32.totalorder %s157, %s171
    %p173 = scmp.eq.s32.totalorder %s29, 0
    %p174 = por %p172, %p173
    %s176 = sadd.s32 %s175, 1
    %p179 = scmp.eq.s32.totalorder %s23, 1
    %p180 = scmp.ne.s32.totalorder %s175, %s177
    %p181 = scmp.eq.s32.totalorder %s23, 0
    %p182 = por %p180, %p181
    %p183 = scmp.ne.s32.totalorder %s175, %s177
    %p184 = scmp.eq.s32.totalorder %s28, 1
    %p185 = por %p183, %p184
    %p186 = scmp.ne.s32.totalorder %s177, %s178
    %p187 = scmp.eq.s32.totalorder %s28, 0
    %p188 = por %p186, %p187
    %p189 = scmp.ne.s32.totalorder %s177, %s178
    %p190 = scmp.eq.s32.totalorder %s29, 1
    %p191 = por %p189, %p190
    %p193 = scmp.ne.s32.totalorder %s178, %s192
    %p194 = scmp.eq.s32.totalorder %s29, 0
    %p195 = por %p193, %p194
    %s197 = sadd.s32 %s196, 1
    %p200 = scmp.eq.s32.totalorder %s23, 1
    %p201 = scmp.ne.s32.totalorder %s196, %s198
    %p202 = scmp.eq.s32.totalorder %s23, 0
    %p203 = por %p201, %p202
    %p204 = scmp.ne.s32.totalorder %s196, %s198
    %p205 = scmp.eq.s32.totalorder %s28, 1
    %p206 = por %p204, %p205
    %p207 = scmp.ne.s32.totalorder %s198, %s199
    %p208 = scmp.eq.s32.totalorder %s28, 0
    %p209 = por %p207, %p208
    %p210 = scmp.ne.s32.totalorder %s198, %s199
    %p211 = scmp.eq.s32.totalorder %s29, 1
    %p212 = por %p210, %p211
    %p214 = scmp.ne.s32.totalorder %s199, %s213
    %p215 = scmp.eq.s32.totalorder %s29, 0
    %p216 = por %p214, %p215
    %s218 = sadd.s32 %s217, 1
    %p221 = scmp.eq.s32.totalorder %s23, 1
    %p222 = scmp.ne.s32.totalorder %s217, %s219
    %p223 = scmp.eq.s32.totalorder %s23, 0
    %p224 = por %p222, %p223
    %p225 = scmp.ne.s32.totalorder %s217, %s219
    %p226 = scmp.eq.s32.totalorder %s28, 1
    %p227 = por %p225, %p226
    %p228 = scmp.ne.s32.totalorder %s219, %s220
    %p229 = scmp.eq.s32.totalorder %s28, 0
    %p230 = por %p228, %p229
    %p231 = scmp.ne.s32.totalorder %s219, %s220
    %p232 = scmp.eq.s32.totalorder %s29, 1
    %p233 = por %p231, %p232
    %p235 = scmp.ne.s32.totalorder %s220, %s234
    %p236 = scmp.eq.s32.totalorder %s29, 0
    %p237 = por %p235, %p236
    %s239 = sadd.s32 %s238, 1
    %p242 = scmp.eq.s32.totalorder %s23, 1
    %p243 = scmp.ne.s32.totalorder %s238, %s240
    %p244 = scmp.eq.s32.totalorder %s23, 0
    %p245 = por %p243, %p244
    %p246 = scmp.ne.s32.totalorder %s238, %s240
    %p247 = scmp.eq.s32.totalorder %s28, 1
    %p248 = por %p246, %p247
    %p249 = scmp.ne.s32.totalorder %s240, %s241
    %p250 = scmp.eq.s32.totalorder %s28, 0
    %p251 = por %p249, %p250
    %p252 = scmp.ne.s32.totalorder %s240, %s241
    %p253 = scmp.eq.s32.totalorder %s29, 1
    %p254 = por %p252, %p253
    %p256 = scmp.ne.s32.totalorder %s241, %s255
    %p257 = scmp.eq.s32.totalorder %s29, 0
    %p258 = por %p256, %p257
    %s260 = sadd.s32 %s259, 1
    %p263 = scmp.eq.s32.totalorder %s23, 1
    %p264 = scmp.ne.s32.totalorder %s259, %s261
    %p265 = scmp.eq.s32.totalorder %s23, 0
    %p266 = por %p264, %p265
    %p267 = scmp.ne.s32.totalorder %s259, %s261
    %p268 = scmp.eq.s32.totalorder %s28, 1
    %p269 = por %p267, %p268
    %p270 = scmp.ne.s32.totalorder %s261, %s262
    %p271 = scmp.eq.s32.totalorder %s28, 0
    %p272 = por %p270, %p271
    %p273 = scmp.ne.s32.totalorder %s261, %s262
    %p274 = scmp.eq.s32.totalorder %s29, 1
    %p275 = por %p273, %p274
    %p277 = scmp.ne.s32.totalorder %s262, %s276
    %p278 = scmp.eq.s32.totalorder %s29, 0
    %p279 = por %p277, %p278
    %s281 = sadd.s32 %s280, 1
    %p284 = scmp.eq.s32.totalorder %s23, 1
    %p285 = scmp.ne.s32.totalorder %s280, %s282
    %p286 = scmp.eq.s32.totalorder %s23, 0
    %p287 = por %p285, %p286
    %p288 = scmp.ne.s32.totalorder %s280, %s282
    %p289 = scmp.eq.s32.totalorder %s28, 1
    %p290 = por %p288, %p289
    %p291 = scmp.ne.s32.totalorder %s282, %s283
    %p292 = scmp.eq.s32.totalorder %s28, 0
    %p293 = por %p291, %p292
    %p294 = scmp.ne.s32.totalorder %s282, %s283
    %p295 = scmp.eq.s32.totalorder %s29, 1
    %p296 = por %p294, %p295
    %p298 = scmp.ne.s32.totalorder %s283, %s297
    %p299 = scmp.eq.s32.totalorder %s29, 0
    %p300 = por %p298, %p299
    %s302 = sadd.s32 %s301, 1
    %p305 = scmp.eq.s32.totalorder %s23, 1
    %p306 = scmp.ne.s32.totalorder %s301, %s303
    %p307 = scmp.eq.s32.totalorder %s23, 0
    %p308 = por %p306, %p307
    %p309 = scmp.ne.s32.totalorder %s301, %s303
    %p310 = scmp.eq.s32.totalorder %s28, 1
    %p311 = por %p309, %p310
    %p312 = scmp.ne.s32.totalorder %s303, %s304
    %p313 = scmp.eq.s32.totalorder %s28, 0
    %p314 = por %p312, %p313
    %p315 = scmp.ne.s32.totalorder %s303, %s304
    %p316 = scmp.eq.s32.totalorder %s29, 1
    %p317 = por %p315, %p316
    %p319 = scmp.ne.s32.totalorder %s304, %s318
    %p320 = scmp.eq.s32.totalorder %s29, 0
    %p321 = por %p319, %p320
    %s323 = sadd.s32 %s322, 1
    %p326 = scmp.eq.s32.totalorder %s23, 1
    %p327 = scmp.ne.s32.totalorder %s322, %s324
    %p328 = scmp.eq.s32.totalorder %s23, 0
    %p329 = por %p327, %p328
    %p330 = scmp.ne.s32.totalorder %s322, %s324
    %p331 = scmp.eq.s32.totalorder %s28, 1
    %p332 = por %p330, %p331
    %p333 = scmp.ne.s32.totalorder %s324, %s325
    %p334 = scmp.eq.s32.totalorder %s28, 0
    %p335 = por %p333, %p334
    %p336 = scmp.ne.s32.totalorder %s324, %s325
    %p337 = scmp.eq.s32.totalorder %s29, 1
    %p338 = por %p336, %p337
    %p340 = scmp.ne.s32.totalorder %s325, %s339
    %p341 = scmp.eq.s32.totalorder %s29, 0
    %p342 = por %p340, %p341
    %s344 = sadd.s32 %s343, 1
    %p347 = scmp.eq.s32.totalorder %s23, 1
    %p348 = scmp.ne.s32.totalorder %s343, %s345
    %p349 = scmp.eq.s32.totalorder %s23, 0
    %p350 = por %p348, %p349
    %p351 = scmp.ne.s32.totalorder %s343, %s345
    %p352 = scmp.eq.s32.totalorder %s28, 1
    %p353 = por %p351, %p352
    %p354 = scmp.ne.s32.totalorder %s345, %s346
    %p355 = scmp.eq.s32.totalorder %s28, 0
    %p356 = por %p354, %p355
    %p357 = scmp.ne.s32.totalorder %s345, %s346
    %p358 = scmp.eq.s32.totalorder %s29, 1
    %p359 = por %p357, %p358
    %p361 = scmp.ne.s32.totalorder %s346, %s360
    %p362 = scmp.eq.s32.totalorder %s29, 0
    %p363 = por %p361, %p362
    %s365 = sadd.s32 %s364, 1
    %p368 = scmp.eq.s32.totalorder %s23, 1
    %p369 = scmp.ne.s32.totalorder %s364, %s366
    %p370 = scmp.eq.s32.totalorder %s23, 0
    %p371 = por %p369, %p370
    %p372 = scmp.ne.s32.totalorder %s364, %s366
    %p373 = scmp.eq.s32.totalorder %s28, 1
    %p374 = por %p372, %p373
    %p375 = scmp.ne.s32.totalorder %s366, %s367
    %p376 = scmp.eq.s32.totalorder %s28, 0
    %p377 = por %p375, %p376
    %p378 = scmp.ne.s32.totalorder %s366, %s367
    %p379 = scmp.eq.s32.totalorder %s29, 1
    %p380 = por %p378, %p379
    %p382 = scmp.ne.s32.totalorder %s367, %s381
    %p383 = scmp.eq.s32.totalorder %s29, 0
    %p384 = por %p382, %p383
    %s386 = sadd.s32 %s385, 1
    %p389 = scmp.eq.s32.totalorder %s23, 1
    %p390 = scmp.ne.s32.totalorder %s385, %s387
    %p391 = scmp.eq.s32.totalorder %s23, 0
    %p392 = por %p390, %p391
    %p393 = scmp.ne.s32.totalorder %s385, %s387
    %p394 = scmp.eq.s32.totalorder %s28, 1
    %p395 = por %p393, %p394
    %p396 = scmp.ne.s32.totalorder %s387, %s388
    %p397 = scmp.eq.s32.totalorder %s28, 0
    %p398 = por %p396, %p397
    %p399 = scmp.ne.s32.totalorder %s387, %s388
    %p400 = scmp.eq.s32.totalorder %s29, 1
    %p401 = por %p399, %p400
    %p403 = scmp.ne.s32.totalorder %s388, %s402
    %p404 = scmp.eq.s32.totalorder %s29, 0
    %p405 = por %p403, %p404
    %s407 = sadd.s32 %s406, 1
    %p410 = scmp.eq.s32.totalorder %s23, 1
    %p411 = scmp.ne.s32.totalorder %s406, %s408
    %p412 = scmp.eq.s32.totalorder %s23, 0
    %p413 = por %p411, %p412
    %p414 = scmp.ne.s32.totalorder %s406, %s408
    %p415 = scmp.eq.s32.totalorder %s28, 1
    %p416 = por %p414, %p415
    %p417 = scmp.ne.s32.totalorder %s408, %s409
    %p418 = scmp.eq.s32.totalorder %s28, 0
    %p419 = por %p417, %p418
    %p420 = scmp.ne.s32.totalorder %s408, %s409
    %p421 = scmp.eq.s32.totalorder %s29, 1
    %p422 = por %p420, %p421
    %p424 = scmp.ne.s32.totalorder %s409, %s423
    %p425 = scmp.eq.s32.totalorder %s29, 0
    %p426 = por %p424, %p425
    %s427 = ssub.s32 %s30, %s49
    %s428 = ssub.s32 %s31, %s45
    %s429 = sor.u32 %s427, %s428
    %p430 = scmp.eq.s32.totalorder %s429, 0
    %s432 = sadd.s32 %s431, 1
    %s433 = scalar_select %p430, %s431, %s432
    %p436 = pneg %p430
    %p437 = scmp.eq.s32.totalorder %s23, 1
    %p438 = por %p436, %p437
    %p439 = scmp.ne.s32.totalorder %s431, %s434
    %p440 = scmp.eq.s32.totalorder %s23, 0
    %p441 = por %p439, %p440
    %p442 = scmp.ne.s32.totalorder %s431, %s434
    %p443 = scmp.eq.s32.totalorder %s28, 1
    %p444 = por %p442, %p443
    %p445 = scmp.ne.s32.totalorder %s434, %s435
    %p446 = scmp.eq.s32.totalorder %s28, 0
    %p447 = por %p445, %p446
    %p448 = scmp.ne.s32.totalorder %s434, %s435
    %p449 = scmp.eq.s32.totalorder %s29, 1
    %p450 = por %p448, %p449
    %p452 = scmp.ne.s32.totalorder %s435, %s451
    %p453 = scmp.eq.s32.totalorder %s29, 0
    %p454 = por %p452, %p453
    %p455 = scmp.le.s32.totalorder 1, %s23
    %p456 = scmp.lt.s32.totalorder %s23, 3
    %p457 = pnand %p455, %p456
    %p458 = pneg %p457
    // Predicated region
    $region9: #{dftr_forward.3} parent=5 // pred_check
      _
    $region10: #{dftr_forward.3} parent=5 // pred_check_branch
      %460 = sbr.rel (%p457) target = $region12
    $region11: #{dftr_forward.3} parent=5 // pred_region
      %s461 = ssub.s32 %s23, 1
      // Predicated region
      $region13: #{dftr_forward.3} parent=11 // pred_check
        %p462 = pneg %p120
      $region14: #{dftr_forward.3} parent=11 // pred_check_branch
        %464 = sbr.rel (%p462) target = $region16
      $region15: #{dftr_forward.3} parent=11 // pred_region
        %s465 = smul.u32 3, %s34
        %p466 = scmp.lt.s32.totalorder %s465, 2
        %s467 = scalar_select %p466, %s465, 2
        %s468 = smul.addr %s467, 4
        %s469 = scalar_lea.vmem %s2, %s468
        %s470 = smul.u32 3, %s34
      $region16: #{dftr_forward.3} parent=11 // pred_fallthru
        _
      // Predicated region
      $region17: #{dftr_forward.3} parent=11 // pred_check
        %p471 = pneg %p146
      $region18: #{dftr_forward.3} parent=11 // pred_check_branch
        %473 = sbr.rel (%p471) target = $region20
      $region19: #{dftr_forward.3} parent=11 // pred_region
        %s474 = smul.u32 3, %s35
        %p475 = scmp.lt.s32.totalorder %s474, 2
        %s476 = scalar_select %p475, %s474, 2
        %s477 = smul.addr %s476, 4
        %s478 = scalar_lea.vmem %s3, %s477
        %s479 = smul.u32 3, %s35
      $region20: #{dftr_forward.3} parent=11 // pred_fallthru
        _
      // Predicated region
      $region21: #{dftr_forward.3} parent=11 // pred_check
        %p480 = pneg %p167
      $region22: #{dftr_forward.3} parent=11 // pred_check_branch
        %482 = sbr.rel (%p480) target = $region24
      $region23: #{dftr_forward.3} parent=11 // pred_region
        _
      $region24: #{dftr_forward.3} parent=11 // pred_fallthru
        _
      // Predicated region
      $region25: #{dftr_forward.3} parent=11 // pred_check
        %p483 = pneg %p188
      $region26: #{dftr_forward.3} parent=11 // pred_check_branch
        %485 = sbr.rel (%p483) target = $region28
      $region27: #{dftr_forward.3} parent=11 // pred_region
        _
      $region28: #{dftr_forward.3} parent=11 // pred_fallthru
        _
      // Predicated region
      $region29: #{dftr_forward.3} parent=11 // pred_check
        %p486 = pneg %p209
      $region30: #{dftr_forward.3} parent=11 // pred_check_branch
        %488 = sbr.rel (%p486) target = $region32
      $region31: #{dftr_forward.3} parent=11 // pred_region
        _
      $region32: #{dftr_forward.3} parent=11 // pred_fallthru
        _
      // Predicated region
      $region33: #{dftr_forward.3} parent=11 // pred_check
        %p489 = pneg %p230
      $region34: #{dftr_forward.3} parent=11 // pred_check_branch
        %491 = sbr.rel (%p489) target = $region36
      $region35: #{dftr_forward.3} parent=11 // pred_region
        _
      $region36: #{dftr_forward.3} parent=11 // pred_fallthru
        _
      // Predicated region
      $region37: #{dftr_forward.3} parent=11 // pred_check
        %p492 = pneg %p251
      $region38: #{dftr_forward.3} parent=11 // pred_check_branch
        %494 = sbr.rel (%p492) target = $region40
      $region39: #{dftr_forward.3} parent=11 // pred_region
        _
      $region40: #{dftr_forward.3} parent=11 // pred_fallthru
        _
      // Predicated region
      $region41: #{dftr_forward.3} parent=11 // pred_check
        %p495 = pneg %p272
      $region42: #{dftr_forward.3} parent=11 // pred_check_branch
        %497 = sbr.rel (%p495) target = $region44
      $region43: #{dftr_forward.3} parent=11 // pred_region
        _
      $region44: #{dftr_forward.3} parent=11 // pred_fallthru
        _
      // Predicated region
      $region45: #{dftr_forward.3} parent=11 // pred_check
        %p498 = pneg %p293
      $region46: #{dftr_forward.3} parent=11 // pred_check_branch
        %500 = sbr.rel (%p498) target = $region48
      $region47: #{dftr_forward.3} parent=11 // pred_region
        _
      $region48: #{dftr_forward.3} parent=11 // pred_fallthru
        _
      // Predicated region
      $region49: #{dftr_forward.3} parent=11 // pred_check
        %p501 = pneg %p314
      $region50: #{dftr_forward.3} parent=11 // pred_check_branch
        %503 = sbr.rel (%p501) target = $region52
      $region51: #{dftr_forward.3} parent=11 // pred_region
        _
      $region52: #{dftr_forward.3} parent=11 // pred_fallthru
        _
      // Predicated region
      $region53: #{dftr_forward.3} parent=11 // pred_check
        %p504 = pneg %p335
      $region54: #{dftr_forward.3} parent=11 // pred_check_branch
        %506 = sbr.rel (%p504) target = $region56
      $region55: #{dftr_forward.3} parent=11 // pred_region
        _
      $region56: #{dftr_forward.3} parent=11 // pred_fallthru
        _
      // Predicated region
      $region57: #{dftr_forward.3} parent=11 // pred_check
        %p507 = pneg %p356
      $region58: #{dftr_forward.3} parent=11 // pred_check_branch
        %509 = sbr.rel (%p507) target = $region60
      $region59: #{dftr_forward.3} parent=11 // pred_region
        _
      $region60: #{dftr_forward.3} parent=11 // pred_fallthru
        _
      // Predicated region
      $region61: #{dftr_forward.3} parent=11 // pred_check
        %p510 = pneg %p377
      $region62: #{dftr_forward.3} parent=11 // pred_check_branch
        %512 = sbr.rel (%p510) target = $region64
      $region63: #{dftr_forward.3} parent=11 // pred_region
        _
      $region64: #{dftr_forward.3} parent=11 // pred_fallthru
        _
      // Predicated region
      $region65: #{dftr_forward.3} parent=11 // pred_check
        %p513 = pneg %p398
      $region66: #{dftr_forward.3} parent=11 // pred_check_branch
        %515 = sbr.rel (%p513) target = $region68
      $region67: #{dftr_forward.3} parent=11 // pred_region
        _
      $region68: #{dftr_forward.3} parent=11 // pred_fallthru
        _
      // Predicated region
      $region69: #{dftr_forward.3} parent=11 // pred_check
        %p516 = pneg %p419
      $region70: #{dftr_forward.3} parent=11 // pred_check_branch
        %518 = sbr.rel (%p516) target = $region72
      $region71: #{dftr_forward.3} parent=11 // pred_region
        _
      $region72: #{dftr_forward.3} parent=11 // pred_fallthru
        _
    $region12: #{dftr_forward.3} parent=5 // pred_fallthru
      _
    %p519 = scmp.lt.s32.totalorder %s23, 2
    // Predicated region
    $region73: #{dftr_forward.3} parent=5 // pred_check
      %p520 = pneg %p519
    $region74: #{dftr_forward.3} parent=5 // pred_check_branch
      %522 = sbr.rel (%p520) target = $region76
    $region75: #{dftr_forward.3} parent=5 // pred_region
      // Predicated region
      $region77: #{dftr_forward.3} parent=75 // pred_check
        %p523 = pneg %p62
      $region78: #{dftr_forward.3} parent=75 // pred_check_branch
        %525 = sbr.rel (%p523) target = $region80
      $region79: #{dftr_forward.3} parent=75 // pred_region
        %p526 = scmp.lt.s32.totalorder %s30, 1
        %s527 = scalar_select %p526, %s30, 1
        %s528 = scalar_lea.vmem %s0, %s527
      $region80: #{dftr_forward.3} parent=75 // pred_fallthru
        _
      // Predicated region
      $region81: #{dftr_forward.3} parent=75 // pred_check
        %p529 = pneg %p88
      $region82: #{dftr_forward.3} parent=75 // pred_check_branch
        %531 = sbr.rel (%p529) target = $region84
      $region83: #{dftr_forward.3} parent=75 // pred_region
        %p532 = scmp.lt.s32.totalorder %s30, 1
        %s533 = scalar_select %p532, %s30, 1
        %s534 = scalar_lea.vmem %s1, %s533
      $region84: #{dftr_forward.3} parent=75 // pred_fallthru
        _
    $region76: #{dftr_forward.3} parent=5 // pred_fallthru
      _
    %p535 = scmp.le.s32.totalorder 1, %s23
    %p536 = scmp.lt.s32.totalorder %s23, 3
    %p537 = pnand %p535, %p536
    %p538 = pneg %p537
    // Predicated region
    $region85: #{dftr_forward.3} parent=5 // pred_check
      _
    $region86: #{dftr_forward.3} parent=5 // pred_check_branch
      %540 = sbr.rel (%p537) target = $region88
    $region87: #{dftr_forward.3} parent=5 // pred_region
      %s541 = ssub.s32 %s23, 1
      %p542 = scmp.lt.s32.totalorder %s33, 1
      %s543 = scalar_select %p542, %s33, 1
      %s544 = scalar_lea.vmem %s0, %s543
      %p545 = pneg %p68
      %p546 = pneg %p65
      %p547 = scmp.lt.s32.totalorder %s33, 1
      %s548 = scalar_select %p547, %s33, 1
      %s549 = scalar_lea.vmem %s1, %s548
      %p550 = pneg %p94
      %p551 = pneg %p91
      %s552 = smul.u32 3, %s34
      %p553 = scmp.lt.s32.totalorder %s552, 2
      %s554 = scalar_select %p553, %s552, 2
      %s555 = smul.addr %s554, 4
      %s556 = scalar_lea.vmem %s2, %s555
      %p557 = pneg %p120
      %p558 = pneg %p117
      %s559 = smul.u32 3, %s35
      %p560 = scmp.lt.s32.totalorder %s559, 2
      %s561 = scalar_select %p560, %s559, 2
      %s562 = smul.addr %s561, 4
      %s563 = scalar_lea.vmem %s3, %s562
      %p564 = pneg %p146
      %p565 = pneg %p143
      %p566 = pneg %p167
      %p567 = pneg %p164
      %p568 = pneg %p188
      %p569 = pneg %p185
      %p570 = pneg %p209
      %p571 = pneg %p206
      %p572 = pneg %p230
      %p573 = pneg %p227
      %p574 = pneg %p251
      %p575 = pneg %p248
      %p576 = pneg %p272
      %p577 = pneg %p269
      %p578 = pneg %p293
      %p579 = pneg %p290
      %p580 = pneg %p314
      %p581 = pneg %p311
      %p582 = pneg %p335
      %p583 = pneg %p332
      %p584 = pneg %p356
      %p585 = pneg %p353
      %p586 = pneg %p377
      %p587 = pneg %p374
      %p588 = pneg %p398
      %p589 = pneg %p395
      %p590 = pneg %p419
      %p591 = pneg %p416
      %p592 = pneg %p447
      %p593 = pneg %p444
      %p594 = scmp.lt.s32.totalorder %s33, 1
      %s595 = scalar_select %p594, %s33, 1
      %p596 = scmp.lt.s32.totalorder %s34, 0
      %s597 = scalar_select %p596, %s34, 0
      %s598 = smul.addr %s595, 4
      %s599 = sadd.s32 %s597, %s598
      %s600 = smul.addr %s599, 8
      %s601 = scalar_lea.vmem %s17, %s600
      %p602 = scmp.lt.s32.totalorder %s33, 1
      %s603 = scalar_select %p602, %s33, 1
      %s604 = scalar_lea.vmem %s0, %s603
      %p605 = scmp.lt.s32.totalorder %s33, 1
      %s606 = scalar_select %p605, %s33, 1
      %s607 = scalar_lea.vmem %s1, %s606
      %s608 = smul.u32 3, %s34
      %p609 = scmp.lt.s32.totalorder %s608, 2
      %s610 = scalar_select %p609, %s608, 2
      %s611 = smul.addr %s610, 4
      %s612 = scalar_lea.vmem %s2, %s611
      %s613 = smul.u32 3, %s34
      %s614 = smul.u32 3, %s35
      %p615 = scmp.lt.s32.totalorder %s614, 2
      %s616 = scalar_select %p615, %s614, 2
      %s617 = smul.addr %s616, 4
      %s618 = scalar_lea.vmem %s3, %s617
      %s619 = smul.u32 3, %s35
      %p620 = scmp.lt.s32.totalorder %s33, 1
      %s621 = scalar_select %p620, %s33, 1
      %p622 = scmp.lt.s32.totalorder %s34, 0
      %s623 = scalar_select %p622, %s34, 0
      %s624 = smul.addr %s621, 4
      %s625 = sadd.s32 %s623, %s624
      %s626 = smul.addr %s625, 8
      %s627 = scalar_lea.vmem %s17, %s626
      %v629 = vld [vmem:[%s604] sm:$0x1]
      %v630 = vld [vmem:[%s607] sm:$0x1]
      %v631 = vld [vmem:[%s16] sm:$0x3f]
      %v632 = vlaneseq
      %v633 = vshrl.u32 %v632, 7
      %v634 = vadd.s32 %v633, 8
      %v635 = vadd.s32 %v633, 16
      %s636 = smul.u32 %s34, 24
      %v637 = vstv %s636
      %v638 = vadd.s32 %v633, %v637
      %v639 = vadd.s32 %v634, %v637
      %v640 = vadd.s32 %v635, %v637
      %vm641 = vcmp.lt.s32.totalorder %v638, 16
      %vm642 = vcmp.lt.s32.totalorder %v639, 16
      %vm643 = vcmp.lt.s32.totalorder %v640, 16
      %v644 = vsel %vm641, 1, 0
      %v645 = vsel %vm642, 1, 0
      %v646 = vsel %vm643, 1, 0
      %vm647 = vcmp.eq.s32.totalorder %v644, 1
      %vm648 = vcmp.eq.s32.totalorder %v645, 1
      %vm649 = vcmp.eq.s32.totalorder %v646, 1
      %v651 = vperm.slane %v629, 0
      %v654 = vperm.slane %v630, 0
      %v656 = vsel %vm647, %v651, %v654
      %v657 = vsel %vm648, %v651, %v654
      %v658 = vsel %vm649, %v651, %v654
      %v659 = vld [vmem:[%s612] sm:$0xf]
      %v660 = vld [vmem:[%s612 + $0x4] sm:$0xf]
      %v661 = vld [vmem:[%s612 + $0x8] sm:$0xf]
      %v662 = vunpack.c.l.bf16 %v659
      %v663 = vunpack.c.l.bf16 %v660
      %v664 = vunpack.c.l.bf16 %v661
      %v665 = vadd.f32 %v656, %v662
      %v666 = vadd.f32 %v657, %v663
      %v667 = vadd.f32 %v658, %v664
      %p668 = scmp.eq.s32.totalorder %s35, 0
      // Predicated region
      $region89: #{dftr_forward.3} parent=87 // pred_check
        %p669 = pneg %p668
      $region90: #{dftr_forward.3} parent=87 // pred_check_branch
        %671 = sbr.rel (%p669) target = $region92
      $region91: #{dftr_forward.3} parent=87 // pred_region
        %vm672 = vcmask 261120
        %v673 = vsel %vm672, %v665, 0.0
        %674 = vadd.xlane.f32.xlu0 %v673
        %v675 = vpop.xlane.xlu0 %674
        %v676 = vsel %vm672, %v666, 0.0
        %677 = vadd.xlane.f32.xlu0 %v676
        %v678 = vpop.xlane.xlu0 %677
        %v679 = vsel %vm672, %v667, 0.0
        %680 = vadd.xlane.f32.xlu0 %v679
        %v681 = vpop.xlane.xlu0 %680
        %v682 = vrcp.pop 32.0
        %v683 = vmul.f32 32.0, %v682
        %v684 = vsub.f32 1.0, %v683
        %v685 = vmul.f32 %v682, %v684
        %v686 = vadd.f32 %v682, %v685
        %vm687 = vweird.f32 %v682
        %v688 = vsel %vm687, %v682, %v686
        %v689 = vmul.f32 %v675, %v688
        %v690 = vmul.f32 %v678, %v688
        %v691 = vmul.f32 %v681, %v688
        %v692 = vsub.f32 %v665, %v689
        %v693 = vsub.f32 %v666, %v690
        %v694 = vsub.f32 %v667, %v691
        %v695 = vmul.f32 %v692, %v692
        %v696 = vmul.f32 %v693, %v693
        %v697 = vmul.f32 %v694, %v694
        %v698 = vsel %vm672, %v695, 0.0
        %699 = vadd.xlane.f32.xlu0 %v698
        %v700 = vpop.xlane.xlu0 %699
        %v701 = vsel %vm672, %v696, 0.0
        %702 = vadd.xlane.f32.xlu0 %v701
        %v703 = vpop.xlane.xlu0 %702
        %v704 = vsel %vm672, %v697, 0.0
        %705 = vadd.xlane.f32.xlu0 %v704
        %v706 = vpop.xlane.xlu0 %705
        %v707 = vmul.f32 %v700, %v688
        %v708 = vmul.f32 %v703, %v688
        %v709 = vmul.f32 %v706, %v688
        %v710 = vadd.f32 %v707, 1e-05
        %v711 = vadd.f32 %v708, 1e-05
        %v712 = vadd.f32 %v709, 1e-05
        %v713 = vrsqrt.pop %v710
        %v714 = vmul.f32 %v713, %v710
        %v715 = vmul.f32 %v714, %v713
        %v716 = vmul.f32 0.5, %v715
        %v717 = vsub.f32 1.5, %v716
        %v718 = vmul.f32 %v713, %v717
        %vm719 = vweird.f32 %v710
        %vm720 = vweird.f32 %v713
        %vm721 = vmor %vm719, %vm720
        %v722 = vsel %vm721, %v713, %v718
        %v723 = vrsqrt.pop %v711
        %v724 = vmul.f32 %v723, %v711
        %v725 = vmul.f32 %v724, %v723
        %v726 = vmul.f32 0.5, %v725
        %v727 = vsub.f32 1.5, %v726
        %v728 = vmul.f32 %v723, %v727
        %vm729 = vweird.f32 %v711
        %vm730 = vweird.f32 %v723
        %vm731 = vmor %vm729, %vm730
        %v732 = vsel %vm731, %v723, %v728
        %v733 = vrsqrt.pop %v712
        %v734 = vmul.f32 %v733, %v712
        %v735 = vmul.f32 %v734, %v733
        %v736 = vmul.f32 0.5, %v735
        %v737 = vsub.f32 1.5, %v736
        %v738 = vmul.f32 %v733, %v737
        %vm739 = vweird.f32 %v712
        %vm740 = vweird.f32 %v733
        %vm741 = vmor %vm739, %vm740
        %v742 = vsel %vm741, %v733, %v738
        %v743 = vmul.f32 %v692, %v722
        %v744 = vmul.f32 %v693, %v732
        %v745 = vmul.f32 %v694, %v742
        %v746 = vperm.slane %v631, 0
        %v747 = vmul.f32 %v743, %v746
        %v748 = vmul.f32 %v744, %v746
        %v749 = vmul.f32 %v745, %v746
        %v750 = vperm.slane %v631, 1
        %v751 = vadd.f32 %v747, %v750
        %v752 = vadd.f32 %v748, %v750
        %v753 = vadd.f32 %v749, %v750
        %v754 = vpack.c.bf16 %v752, %v751
        %v755 = vpack.c.bf16 %v753, %v753
        %v756 = vld [vmem:[%s4] sm:$0xf]
        %v757 = vld [vmem:[%s4 + $0x4] sm:$0xf]
        %v758 = vld [vmem:[%s4 + $0x8] sm:$0xf]
        %v759 = vld [vmem:[%s4 + $0xc] sm:$0xf]
        %v760 = vld [vmem:[%s10] sm:$0x1]
        %v762 = vperm.slane %v760, 0
        %v768 = vunpack.c.l.b16 %v756
        %v769 = vunpack.c.l.b16 %v757
        %v770 = vunpack.c.l.b16 %v758
        %v771 = vunpack.c.l.b16 %v759
        %v772 = vpack.c.b16 %v769, %v768
        %v773 = vpack.c.b16 %v771, %v770
        %v777 = vsel %vm672, %v754, 0
        %v780 = vsel %vm672, %v755, 0
        %782 = vmatpush.bf16.msra.mxu0 0
        %783 = vmatpush.bf16.msra.mxu0 0
        %784 = vmatpush.bf16.msra.mxu0 0
        %785 = vmatpush.bf16.msra.mxu0 0
        %786 = vmatpush.bf16.msra.mxu0 0
        %787 = vmatpush.bf16.msra.mxu0 0
        %788 = vmatpush.bf16.msra.mxu0 %v773
        %789 = vmatpush.bf16.msra.mxu0 %v772
        %790 = vmatmul.bf16.gmra.mxu0 %v777
        %v791 = vpop.f32.mrf.mxu0
        %v792 = vadd.f32 %v762, %v791
        %v793 = vpop.f32.mrf.mxu0
        %v794 = vadd.f32 %v762, %v793
        %795 = vmatmul.bf16.gmra.mxu0 %v780
        %v796 = vpop.f32.mrf.mxu0
        %v797 = vadd.f32 %v762, %v796
        %v798 = vpop.f32.mrf.mxu0
        %799 = vdwg.mxu0
        %v800 = vpack.c.bf16 %v792, %v792
        %v801 = vpack.c.bf16 %v794, %v794
        %v802 = vpack.c.bf16 %v797, %v797
        %vm803 = vcmask 125952
        %804 = vst.msk [vmem:[#allocation2] sm:$0xf] %vm803, %v800
        %805 = vst.msk [vmem:[#allocation2 + $0x4] sm:$0xf] %vm803, %v801
        %806 = vst.msk [vmem:[#allocation2 + $0x8] sm:$0xf] %vm803, %v802
        %s807 = scalar_lea.vmem %s4, 16
        %v808 = vld [vmem:[%s807] sm:$0xf]
        %v809 = vld [vmem:[%s807 + $0x4] sm:$0xf]
        %v810 = vld [vmem:[%s807 + $0x8] sm:$0xf]
        %v811 = vld [vmem:[%s807 + $0xc] sm:$0xf]
        %s812 = scalar_lea.vmem %s10, 1
        %v813 = vld [vmem:[%s812] sm:$0x1]
        %v815 = vperm.slane %v813, 0
        %v821 = vunpack.c.l.b16 %v808
        %v822 = vunpack.c.l.b16 %v809
        %v823 = vunpack.c.l.b16 %v810
        %v824 = vunpack.c.l.b16 %v811
        %v825 = vpack.c.b16 %v822, %v821
        %v826 = vpack.c.b16 %v824, %v823
        %829 = vmatpush.bf16.msra.mxu0 0
        %830 = vmatpush.bf16.msra.mxu0 0
        %831 = vmatpush.bf16.msra.mxu0 0
        %832 = vmatpush.bf16.msra.mxu0 0
        %833 = vmatpush.bf16.msra.mxu0 0
        %834 = vmatpush.bf16.msra.mxu0 0
        %835 = vmatpush.bf16.msra.mxu0 %v826
        %836 = vmatpush.bf16.msra.mxu0 %v825
        %837 = vmatmul.bf16.gmra.mxu0 %v777
        %v838 = vpop.f32.mrf.mxu0
        %v839 = vadd.f32 %v815, %v838
        %v840 = vpop.f32.mrf.mxu0
        %v841 = vadd.f32 %v815, %v840
        %842 = vmatmul.bf16.gmra.mxu0 %v780
        %v843 = vpop.f32.mrf.mxu0
        %v844 = vadd.f32 %v815, %v843
        %v845 = vpop.f32.mrf.mxu0
        %846 = vdwg.mxu0
        %v847 = vpack.c.bf16 %v839, %v839
        %v848 = vpack.c.bf16 %v841, %v841
        %v849 = vpack.c.bf16 %v844, %v844
        %s850 = scalar_lea.vmem [#allocation2], 12
        %851 = vst.msk [vmem:[%s850] sm:$0xf] %vm803, %v847
        %852 = vst.msk [vmem:[%s850 + $0x4] sm:$0xf] %vm803, %v848
        %853 = vst.msk [vmem:[%s850 + $0x8] sm:$0xf] %vm803, %v849
        %vm854 = vcmask 7168
        %855 = vst.msk [vmem:[#allocation3] sm:$0xff] %vm854, -inf
        %856 = vst.msk [vmem:[#allocation3 + $0x8] sm:$0xff] %vm854, -inf
        %857 = vst.msk [vmem:[#allocation3 + $0x10] sm:$0xff] %vm854, -inf
        %858 = vst.msk [vmem:[#allocation3 + $0x18] sm:$0xff] %vm854, -inf
        %859 = vst.msk [vmem:[#allocation3 + $0x20] sm:$0xff] %vm854, -inf
        %860 = vst.msk [vmem:[#allocation3 + $0x28] sm:$0xff] %vm854, -inf
        %861 = vst.msk [vmem:[#allocation4] sm:$0xff] %vm854, 0.0
        %862 = vst.msk [vmem:[#allocation4 + $0x8] sm:$0xff] %vm854, 0.0
        %863 = vst.msk [vmem:[#allocation4 + $0x10] sm:$0xff] %vm854, 0.0
        %864 = vst.msk [vmem:[#allocation4 + $0x18] sm:$0xff] %vm854, 0.0
        %865 = vst.msk [vmem:[#allocation4 + $0x20] sm:$0xff] %vm854, 0.0
        %866 = vst.msk [vmem:[#allocation4 + $0x28] sm:$0xff] %vm854, 0.0
        %vm867 = vcmask 130048
        %868 = vst.msk [vmem:[#allocation5] sm:$0xff] %vm867, 0.0
        %869 = vst.msk [vmem:[#allocation5 + $0x8] sm:$0xff] %vm867, 0.0
        %870 = vst.msk [vmem:[#allocation5 + $0x10] sm:$0xff] %vm867, 0.0
        %871 = vst.msk [vmem:[#allocation5 + $0x18] sm:$0xff] %vm867, 0.0
        %872 = vst.msk [vmem:[#allocation5 + $0x20] sm:$0xff] %vm867, 0.0
        %873 = vst.msk [vmem:[#allocation5 + $0x28] sm:$0xff] %vm867, 0.0
      $region92: #{dftr_forward.3} parent=87 // pred_fallthru
        _
      %s874 = smul.u32 %s35, 24
      %v875 = vstv %s874
      %v876 = vadd.s32 %v633, %v875
      %v877 = vadd.s32 %v634, %v875
      %v878 = vadd.s32 %v635, %v875
      %vm879 = vcmp.lt.s32.totalorder %v876, 16
      %vm880 = vcmp.lt.s32.totalorder %v877, 16
      %vm881 = vcmp.lt.s32.totalorder %v878, 16
      %v882 = vsel %vm879, 1, 0
      %v883 = vsel %vm880, 1, 0
      %v884 = vsel %vm881, 1, 0
      %vm885 = vcmp.eq.s32.totalorder %v882, 1
      %vm886 = vcmp.eq.s32.totalorder %v883, 1
      %vm887 = vcmp.eq.s32.totalorder %v884, 1
      %v888 = vsel %vm885, %v651, %v654
      %v889 = vsel %vm886, %v651, %v654
      %v890 = vsel %vm887, %v651, %v654
      %v891 = vld [vmem:[%s618] sm:$0xf]
      %v892 = vld [vmem:[%s618 + $0x4] sm:$0xf]
      %v893 = vld [vmem:[%s618 + $0x8] sm:$0xf]
      %v894 = vunpack.c.l.bf16 %v891
      %v895 = vunpack.c.l.bf16 %v892
      %v896 = vunpack.c.l.bf16 %v893
      %v897 = vadd.f32 %v888, %v894
      %v898 = vadd.f32 %v889, %v895
      %v899 = vadd.f32 %v890, %v896
      %vm900 = vcmask 261120
      %v901 = vsel %vm900, %v897, 0.0
      %902 = vadd.xlane.f32.xlu0 %v901
      %v903 = vpop.xlane.xlu0 %902
      %v904 = vsel %vm900, %v898, 0.0
      %905 = vadd.xlane.f32.xlu0 %v904
      %v906 = vpop.xlane.xlu0 %905
      %v907 = vsel %vm900, %v899, 0.0
      %908 = vadd.xlane.f32.xlu0 %v907
      %v909 = vpop.xlane.xlu0 %908
      %v910 = vrcp.pop 32.0
      %v911 = vmul.f32 32.0, %v910
      %v912 = vsub.f32 1.0, %v911
      %v913 = vmul.f32 %v910, %v912
      %v914 = vadd.f32 %v910, %v913
      %vm915 = vweird.f32 %v910
      %v916 = vsel %vm915, %v910, %v914
      %v917 = vmul.f32 %v903, %v916
      %v918 = vmul.f32 %v906, %v916
      %v919 = vmul.f32 %v909, %v916
      %v920 = vsub.f32 %v897, %v917
      %v921 = vsub.f32 %v898, %v918
      %v922 = vsub.f32 %v899, %v919
      %v923 = vmul.f32 %v920, %v920
      %v924 = vmul.f32 %v921, %v921
      %v925 = vmul.f32 %v922, %v922
      %v926 = vsel %vm900, %v923, 0.0
      %927 = vadd.xlane.f32.xlu0 %v926
      %v928 = vpop.xlane.xlu0 %927
      %v929 = vsel %vm900, %v924, 0.0
      %930 = vadd.xlane.f32.xlu0 %v929
      %v931 = vpop.xlane.xlu0 %930
      %v932 = vsel %vm900, %v925, 0.0
      %933 = vadd.xlane.f32.xlu0 %v932
      %v934 = vpop.xlane.xlu0 %933
      %v935 = vmul.f32 %v928, %v916
      %v936 = vmul.f32 %v931, %v916
      %v937 = vmul.f32 %v934, %v916
      %v938 = vadd.f32 %v935, 1e-05
      %v939 = vadd.f32 %v936, 1e-05
      %v940 = vadd.f32 %v937, 1e-05
      %v941 = vrsqrt.pop %v938
      %v942 = vmul.f32 %v941, %v938
      %v943 = vmul.f32 %v942, %v941
      %v944 = vmul.f32 0.5, %v943
      %v945 = vsub.f32 1.5, %v944
      %v946 = vmul.f32 %v941, %v945
      %vm947 = vweird.f32 %v938
      %vm948 = vweird.f32 %v941
      %vm949 = vmor %vm947, %vm948
      %v950 = vsel %vm949, %v941, %v946
      %v951 = vrsqrt.pop %v939
      %v952 = vmul.f32 %v951, %v939
      %v953 = vmul.f32 %v952, %v951
      %v954 = vmul.f32 0.5, %v953
      %v955 = vsub.f32 1.5, %v954
      %v956 = vmul.f32 %v951, %v955
      %vm957 = vweird.f32 %v939
      %vm958 = vweird.f32 %v951
      %vm959 = vmor %vm957, %vm958
      %v960 = vsel %vm959, %v951, %v956
      %v961 = vrsqrt.pop %v940
      %v962 = vmul.f32 %v961, %v940
      %v963 = vmul.f32 %v962, %v961
      %v964 = vmul.f32 0.5, %v963
      %v965 = vsub.f32 1.5, %v964
      %v966 = vmul.f32 %v961, %v965
      %vm967 = vweird.f32 %v940
      %vm968 = vweird.f32 %v961
      %vm969 = vmor %vm967, %vm968
      %v970 = vsel %vm969, %v961, %v966
      %v971 = vmul.f32 %v920, %v950
      %v972 = vmul.f32 %v921, %v960
      %v973 = vmul.f32 %v922, %v970
      %v974 = vperm.slane %v631, 0
      %v975 = vmul.f32 %v971, %v974
      %v976 = vmul.f32 %v972, %v974
      %v977 = vmul.f32 %v973, %v974
      %v978 = vperm.slane %v631, 1
      %v979 = vadd.f32 %v975, %v978
      %v980 = vadd.f32 %v976, %v978
      %v981 = vadd.f32 %v977, %v978
      %v982 = vpack.c.bf16 %v980, %v979
      %v983 = vpack.c.bf16 %v981, %v981
      %v984 = vld [vmem:[%s5] sm:$0xf]
      %v985 = vld [vmem:[%s5 + $0x4] sm:$0xf]
      %v986 = vld [vmem:[%s5 + $0x8] sm:$0xf]
      %v987 = vld [vmem:[%s5 + $0xc] sm:$0xf]
      %v988 = vld [vmem:[%s11] sm:$0x1]
      %v990 = vperm.slane %v988, 0
      %v996 = vunpack.c.l.b16 %v984
      %v997 = vunpack.c.l.b16 %v985
      %v998 = vunpack.c.l.b16 %v986
      %v999 = vunpack.c.l.b16 %v987
      %v1000 = vpack.c.b16 %v997, %v996
      %v1001 = vpack.c.b16 %v999, %v998
      %v1005 = vsel %vm900, %v982, 0
      %v1008 = vsel %vm900, %v983, 0
      %1010 = vmatpush.bf16.msra.mxu0 0
      %1011 = vmatpush.bf16.msra.mxu0 0
      %1012 = vmatpush.bf16.msra.mxu0 0
      %1013 = vmatpush.bf16.msra.mxu0 0
      %1014 = vmatpush.bf16.msra.mxu0 0
      %1015 = vmatpush.bf16.msra.mxu0 0
      %1016 = vmatpush.bf16.msra.mxu0 %v1001
      %1017 = vmatpush.bf16.msra.mxu0 %v1000
      %1018 = vmatmul.bf16.gmra.mxu0 %v1005
      %v1019 = vpop.f32.mrf.mxu0
      %v1020 = vadd.f32 %v990, %v1019
      %v1021 = vpop.f32.mrf.mxu0
      %v1022 = vadd.f32 %v990, %v1021
      %1023 = vmatmul.bf16.gmra.mxu0 %v1008
      %v1024 = vpop.f32.mrf.mxu0
      %v1025 = vadd.f32 %v990, %v1024
      %v1026 = vpop.f32.mrf.mxu0
      %1027 = vdwg.mxu0
      %v1028 = vpack.c.bf16 %v1022, %v1020
      %v1029 = vpack.c.bf16 %v1025, %v1025
      %v1030 = vld [vmem:[%s6] sm:$0xf]
      %v1031 = vld [vmem:[%s6 + $0x4] sm:$0xf]
      %v1032 = vld [vmem:[%s6 + $0x8] sm:$0xf]
      %v1033 = vld [vmem:[%s6 + $0xc] sm:$0xf]
      %v1034 = vld [vmem:[%s12] sm:$0x1]
      %v1036 = vperm.slane %v1034, 0
      %v1042 = vunpack.c.l.b16 %v1030
      %v1043 = vunpack.c.l.b16 %v1031
      %v1044 = vunpack.c.l.b16 %v1032
      %v1045 = vunpack.c.l.b16 %v1033
      %v1046 = vpack.c.b16 %v1043, %v1042
      %v1047 = vpack.c.b16 %v1045, %v1044
      %1050 = vmatpush.bf16.msra.mxu0 0
      %1051 = vmatpush.bf16.msra.mxu0 0
      %1052 = vmatpush.bf16.msra.mxu0 0
      %1053 = vmatpush.bf16.msra.mxu0 0
      %1054 = vmatpush.bf16.msra.mxu0 0
      %1055 = vmatpush.bf16.msra.mxu0 0
      %1056 = vmatpush.bf16.msra.mxu0 %v1047
      %1057 = vmatpush.bf16.msra.mxu0 %v1046
      %1058 = vmatmul.bf16.gmra.mxu0 %v1005
      %v1059 = vpop.f32.mrf.mxu0
      %v1060 = vadd.f32 %v1036, %v1059
      %v1061 = vpop.f32.mrf.mxu0
      %v1062 = vadd.f32 %v1036, %v1061
      %1063 = vmatmul.bf16.gmra.mxu0 %v1008
      %v1064 = vpop.f32.mrf.mxu0
      %v1065 = vadd.f32 %v1036, %v1064
      %v1066 = vpop.f32.mrf.mxu0
      %1067 = vdwg.mxu0
      %v1068 = vpack.c.bf16 %v1062, %v1060
      %v1069 = vpack.c.bf16 %v1065, %v1065
      %v1070 = vld [vmem:[#allocation2] sm:$0xf]
      %v1071 = vld [vmem:[#allocation2 + $0x4] sm:$0xf]
      %v1072 = vld [vmem:[#allocation2 + $0x8] sm:$0xf]
      %v1076 = vunpack.c.l.b16 %v1070
      %v1077 = vunpack.c.l.b16 %v1071
      %v1078 = vunpack.c.l.b16 %v1072
      %v1079 = vpack.c.b16 %v1077, %v1076
      %v1080 = vpack.c.b16 %v1078, %v1078
      %vm1081 = vcmask 130048
      %v1083 = vsel %vm1081, %v1079, 0
      %v1086 = vsel %vm1081, %v1080, 0
      %v1089 = vsel %vm1081, %v1028, 0
      %v1092 = vsel %vm1081, %v1029, 0
      %1094 = vmatpush.bf16.xpose.msra.mxu0 0
      %1095 = vmatpush.bf16.xpose.msra.mxu0 0
      %1096 = vmatpush.bf16.xpose.msra.mxu0 0
      %1097 = vmatpush.bf16.xpose.msra.mxu0 0
      %1098 = vmatpush.bf16.xpose.msra.mxu0 0
      %1099 = vmatpush.bf16.xpose.msra.mxu0 0
      %1100 = vmatpush.bf16.xpose.msra.mxu0 %v1092
      %1101 = vmatpush.bf16.xpose.msra.mxu0 %v1089
      %1102 = vmatmul.bf16.gmra.mxu0 %v1083
      %v1103 = vpop.f32.mrf.mxu0
      %v1104 = vadd.f32 0.0, %v1103
      %v1105 = vpop.f32.mrf.mxu0
      %v1106 = vadd.f32 0.0, %v1105
      %1107 = vmatmul.bf16.gmra.mxu0 %v1086
      %v1108 = vpop.f32.mrf.mxu0
      %v1109 = vadd.f32 0.0, %v1108
      %v1110 = vpop.f32.mrf.mxu0
      %1111 = vdwg.mxu0
      %v1112 = vmul.f32 %v1104, 0.25
      %v1113 = vmul.f32 %v1106, 0.25
      %v1114 = vmul.f32 %v1109, 0.25
      %v1115 = vld [vmem:[#allocation3] sm:$0xff]
      %v1116 = vld [vmem:[#allocation3 + $0x8] sm:$0xff]
      %v1117 = vld [vmem:[#allocation3 + $0x10] sm:$0xff]
      %vm1118 = vcmask 195584
      %v1119 = vsel %vm1118, %v1112, -inf
      %1120 = vmax.xlane.f32.xlu0 %v1119
      %v1121 = vpop.xlane.xlu0 %1120
      %v1122 = vsel %vm1118, %v1113, -inf
      %1123 = vmax.xlane.f32.xlu0 %v1122
      %v1124 = vpop.xlane.xlu0 %1123
      %v1125 = vsel %vm1118, %v1114, -inf
      %1126 = vmax.xlane.f32.xlu0 %v1125
      %v1127 = vpop.xlane.xlu0 %1126
      %v1128 = vmax.f32 %v1115, %v1121
      %v1129 = vmax.f32 %v1116, %v1124
      %v1130 = vmax.f32 %v1117, %v1127
      %v1131 = vsub.f32 %v1115, %v1128
      %v1132 = vsub.f32 %v1116, %v1129
      %v1133 = vsub.f32 %v1117, %v1130
      %v1134 = vmul.f32 %v1131, 1.442695
      %v1135 = vpow.pop %v1134
      %v1136 = vmul.f32 %v1132, 1.442695
      %v1137 = vpow.pop %v1136
      %v1138 = vmul.f32 %v1133, 1.442695
      %v1139 = vpow.pop %v1138
      %1141 = vset.pattern.permute.xlu0 0
      %1142 = vperm.xlu0 %1141, %v1128
      %v1143 = vpop.permute.xlu0 %1142
      %1146 = vset.pattern.permute.xlu0 0
      %1147 = vperm.xlu0 %1146, %v1129
      %v1148 = vpop.permute.xlu0 %1147
      %1151 = vset.pattern.permute.xlu0 0
      %1152 = vperm.xlu0 %1151, %v1130
      %v1153 = vpop.permute.xlu0 %1152
      %v1155 = vsub.f32 %v1112, %v1143
      %v1156 = vsub.f32 %v1113, %v1148
      %v1157 = vsub.f32 %v1114, %v1153
      %v1158 = vmul.f32 %v1155, 1.442695
      %v1159 = vpow.pop %v1158
      %v1160 = vmul.f32 %v1156, 1.442695
      %v1161 = vpow.pop %v1160
      %v1162 = vmul.f32 %v1157, 1.442695
      %v1163 = vpow.pop %v1162
      %v1164 = vld [vmem:[#allocation4] sm:$0xff]
      %v1165 = vld [vmem:[#allocation4 + $0x8] sm:$0xff]
      %v1166 = vld [vmem:[#allocation4 + $0x10] sm:$0xff]
      %v1167 = vmul.f32 %v1135, %v1164
      %v1168 = vmul.f32 %v1137, %v1165
      %v1169 = vmul.f32 %v1139, %v1166
      %v1170 = vsel %vm1118, %v1159, 0.0
      %1171 = vadd.xlane.f32.xlu0 %v1170
      %v1172 = vpop.xlane.xlu0 %1171
      %v1173 = vsel %vm1118, %v1161, 0.0
      %1174 = vadd.xlane.f32.xlu0 %v1173
      %v1175 = vpop.xlane.xlu0 %1174
      %v1176 = vsel %vm1118, %v1163, 0.0
      %1177 = vadd.xlane.f32.xlu0 %v1176
      %v1178 = vpop.xlane.xlu0 %1177
      %v1179 = vadd.f32 %v1167, %v1172
      %v1180 = vadd.f32 %v1168, %v1175
      %v1181 = vadd.f32 %v1169, %v1178
      %vm1182 = vcmask 7168
      %1183 = vst.msk [vmem:[#allocation4] sm:$0xff] %vm1182, %v1179
      %1184 = vst.msk [vmem:[#allocation4 + $0x8] sm:$0xff] %vm1182, %v1180
      %1185 = vst.msk [vmem:[#allocation4 + $0x10] sm:$0xff] %vm1182, %v1181
      %v1186 = vld [vmem:[#allocation5] sm:$0xff]
      %v1187 = vld [vmem:[#allocation5 + $0x8] sm:$0xff]
      %v1188 = vld [vmem:[#allocation5 + $0x10] sm:$0xff]
      %1190 = vset.pattern.permute.xlu0 0
      %1191 = vperm.xlu0 %1190, %v1135
      %v1192 = vpop.permute.xlu0 %1191
      %1195 = vset.pattern.permute.xlu0 0
      %1196 = vperm.xlu0 %1195, %v1137
      %v1197 = vpop.permute.xlu0 %1196
      %1200 = vset.pattern.permute.xlu0 0
      %1201 = vperm.xlu0 %1200, %v1139
      %v1202 = vpop.permute.xlu0 %1201
      %v1204 = vmul.f32 %v1192, %v1186
      %v1205 = vmul.f32 %v1197, %v1187
      %v1206 = vmul.f32 %v1202, %v1188
      %v1207 = vpack.c.bf16 %v1161, %v1159
      %v1208 = vpack.c.bf16 %v1163, %v1163
      %v1210 = vsel %vm1118, %v1207, 0
      %v1213 = vsel %vm1118, %v1208, 0
      %vm1215 = vcmask 1043456
      %v1217 = vsel %vm1215, %v1069, 0
      %1219 = vmatpush.bf16.msra.mxu0 0
      %1220 = vmatpush.bf16.msra.mxu0 0
      %1221 = vmatpush.bf16.msra.mxu0 0
      %1222 = vmatpush.bf16.msra.mxu0 0
      %1223 = vmatpush.bf16.msra.mxu0 0
      %1224 = vmatpush.bf16.msra.mxu0 0
      %1225 = vmatpush.bf16.msra.mxu0 %v1217
      %1226 = vmatpush.bf16.msra.mxu0 %v1068
      %1227 = vmatmul.bf16.gmra.mxu0 %v1210
      %v1228 = vpop.f32.mrf.mxu0
      %v1229 = vadd.f32 0.0, %v1228
      %v1230 = vpop.f32.mrf.mxu0
      %v1231 = vadd.f32 0.0, %v1230
      %1232 = vmatmul.bf16.gmra.mxu0 %v1213
      %v1233 = vpop.f32.mrf.mxu0
      %v1234 = vadd.f32 0.0, %v1233
      %v1235 = vpop.f32.mrf.mxu0
      %1236 = vdwg.mxu0
      %v1237 = vadd.f32 %v1204, %v1229
      %v1238 = vadd.f32 %v1205, %v1231
      %v1239 = vadd.f32 %v1206, %v1234
      %1240 = vst.msk [vmem:[#allocation5] sm:$0xff] %vm1081, %v1237
      %1241 = vst.msk [vmem:[#allocation5 + $0x8] sm:$0xff] %vm1081, %v1238
      %1242 = vst.msk [vmem:[#allocation5 + $0x10] sm:$0xff] %vm1081, %v1239
      %1243 = vst.msk [vmem:[#allocation3] sm:$0xff] %vm1182, %v1128
      %1244 = vst.msk [vmem:[#allocation3 + $0x8] sm:$0xff] %vm1182, %v1129
      %1245 = vst.msk [vmem:[#allocation3 + $0x10] sm:$0xff] %vm1182, %v1130
      %s1246 = scalar_lea.vmem %s5, 16
      %v1247 = vld [vmem:[%s1246] sm:$0xf]
      %v1248 = vld [vmem:[%s1246 + $0x4] sm:$0xf]
      %v1249 = vld [vmem:[%s1246 + $0x8] sm:$0xf]
      %v1250 = vld [vmem:[%s1246 + $0xc] sm:$0xf]
      %s1251 = scalar_lea.vmem %s11, 1
      %v1252 = vld [vmem:[%s1251] sm:$0x1]
      %v1254 = vperm.slane %v1252, 0
      %v1260 = vunpack.c.l.b16 %v1247
      %v1261 = vunpack.c.l.b16 %v1248
      %v1262 = vunpack.c.l.b16 %v1249
      %v1263 = vunpack.c.l.b16 %v1250
      %v1264 = vpack.c.b16 %v1261, %v1260
      %v1265 = vpack.c.b16 %v1263, %v1262
      %1268 = vmatpush.bf16.msra.mxu0 0
      %1269 = vmatpush.bf16.msra.mxu0 0
      %1270 = vmatpush.bf16.msra.mxu0 0
      %1271 = vmatpush.bf16.msra.mxu0 0
      %1272 = vmatpush.bf16.msra.mxu0 0
      %1273 = vmatpush.bf16.msra.mxu0 0
      %1274 = vmatpush.bf16.msra.mxu0 %v1265
      %1275 = vmatpush.bf16.msra.mxu0 %v1264
      %1276 = vmatmul.bf16.gmra.mxu0 %v1005
      %v1277 = vpop.f32.mrf.mxu0
      %v1278 = vadd.f32 %v1254, %v1277
      %v1279 = vpop.f32.mrf.mxu0
      %v1280 = vadd.f32 %v1254, %v1279
      %1281 = vmatmul.bf16.gmra.mxu0 %v1008
      %v1282 = vpop.f32.mrf.mxu0
      %v1283 = vadd.f32 %v1254, %v1282
      %v1284 = vpop.f32.mrf.mxu0
      %1285 = vdwg.mxu0
      %v1286 = vpack.c.bf16 %v1280, %v1278
      %v1287 = vpack.c.bf16 %v1283, %v1283
      %s1288 = scalar_lea.vmem %s6, 16
      %v1289 = vld [vmem:[%s1288] sm:$0xf]
      %v1290 = vld [vmem:[%s1288 + $0x4] sm:$0xf]
      %v1291 = vld [vmem:[%s1288 + $0x8] sm:$0xf]
      %v1292 = vld [vmem:[%s1288 + $0xc] sm:$0xf]
      %s1293 = scalar_lea.vmem %s12, 1
      %v1294 = vld [vmem:[%s1293] sm:$0x1]
      %v1296 = vperm.slane %v1294, 0
      %v1302 = vunpack.c.l.b16 %v1289
      %v1303 = vunpack.c.l.b16 %v1290
      %v1304 = vunpack.c.l.b16 %v1291
      %v1305 = vunpack.c.l.b16 %v1292
      %v1306 = vpack.c.b16 %v1303, %v1302
      %v1307 = vpack.c.b16 %v1305, %v1304
      %1310 = vmatpush.bf16.msra.mxu0 0
      %1311 = vmatpush.bf16.msra.mxu0 0
      %1312 = vmatpush.bf16.msra.mxu0 0
      %1313 = vmatpush.bf16.msra.mxu0 0
      %1314 = vmatpush.bf16.msra.mxu0 0
      %1315 = vmatpush.bf16.msra.mxu0 0
      %1316 = vmatpush.bf16.msra.mxu0 %v1307
      %1317 = vmatpush.bf16.msra.mxu0 %v1306
      %1318 = vmatmul.bf16.gmra.mxu0 %v1005
      %v1319 = vpop.f32.mrf.mxu0
      %v1320 = vadd.f32 %v1296, %v1319
      %v1321 = vpop.f32.mrf.mxu0
      %v1322 = vadd.f32 %v1296, %v1321
      %1323 = vmatmul.bf16.gmra.mxu0 %v1008
      %v1324 = vpop.f32.mrf.mxu0
      %v1325 = vadd.f32 %v1296, %v1324
      %v1326 = vpop.f32.mrf.mxu0
      %1327 = vdwg.mxu0
      %v1328 = vpack.c.bf16 %v1322, %v1320
      %v1329 = vpack.c.bf16 %v1325, %v1325
      %s1330 = scalar_lea.vmem [#allocation2], 12
      %v1331 = vld [vmem:[%s1330] sm:$0xf]
      %v1332 = vld [vmem:[%s1330 + $0x4] sm:$0xf]
      %v1333 = vld [vmem:[%s1330 + $0x8] sm:$0xf]
      %v1337 = vunpack.c.l.b16 %v1331
      %v1338 = vunpack.c.l.b16 %v1332
      %v1339 = vunpack.c.l.b16 %v1333
      %v1340 = vpack.c.b16 %v1338, %v1337
      %v1341 = vpack.c.b16 %v1339, %v1339
      %v1343 = vsel %vm1081, %v1340, 0
      %v1346 = vsel %vm1081, %v1341, 0
      %v1349 = vsel %vm1081, %v1286, 0
      %v1352 = vsel %vm1081, %v1287, 0
      %1354 = vmatpush.bf16.xpose.msra.mxu0 0
      %1355 = vmatpush.bf16.xpose.msra.mxu0 0
      %1356 = vmatpush.bf16.xpose.msra.mxu0 0
      %1357 = vmatpush.bf16.xpose.msra.mxu0 0
      %1358 = vmatpush.bf16.xpose.msra.mxu0 0
      %1359 = vmatpush.bf16.xpose.msra.mxu0 0
      %1360 = vmatpush.bf16.xpose.msra.mxu0 %v1352
      %1361 = vmatpush.bf16.xpose.msra.mxu0 %v1349
      %1362 = vmatmul.bf16.gmra.mxu0 %v1343
      %v1363 = vpop.f32.mrf.mxu0
      %v1364 = vadd.f32 0.0, %v1363
      %v1365 = vpop.f32.mrf.mxu0
      %v1366 = vadd.f32 0.0, %v1365
      %1367 = vmatmul.bf16.gmra.mxu0 %v1346
      %v1368 = vpop.f32.mrf.mxu0
      %v1369 = vadd.f32 0.0, %v1368
      %v1370 = vpop.f32.mrf.mxu0
      %1371 = vdwg.mxu0
      %v1372 = vmul.f32 %v1364, 0.25
      %v1373 = vmul.f32 %v1366, 0.25
      %v1374 = vmul.f32 %v1369, 0.25
      %s1375 = scalar_lea.vmem [#allocation3], 24
      %v1376 = vld [vmem:[%s1375] sm:$0xff]
      %v1377 = vld [vmem:[%s1375 + $0x8] sm:$0xff]
      %v1378 = vld [vmem:[%s1375 + $0x10] sm:$0xff]
      %v1379 = vsel %vm1118, %v1372, -inf
      %1380 = vmax.xlane.f32.xlu0 %v1379
      %v1381 = vpop.xlane.xlu0 %1380
      %v1382 = vsel %vm1118, %v1373, -inf
      %1383 = vmax.xlane.f32.xlu0 %v1382
      %v1384 = vpop.xlane.xlu0 %1383
      %v1385 = vsel %vm1118, %v1374, -inf
      %1386 = vmax.xlane.f32.xlu0 %v1385
      %v1387 = vpop.xlane.xlu0 %1386
      %v1388 = vmax.f32 %v1376, %v1381
      %v1389 = vmax.f32 %v1377, %v1384
      %v1390 = vmax.f32 %v1378, %v1387
      %v1391 = vsub.f32 %v1376, %v1388
      %v1392 = vsub.f32 %v1377, %v1389
      %v1393 = vsub.f32 %v1378, %v1390
      %v1394 = vmul.f32 %v1391, 1.442695
      %v1395 = vpow.pop %v1394
      %v1396 = vmul.f32 %v1392, 1.442695
      %v1397 = vpow.pop %v1396
      %v1398 = vmul.f32 %v1393, 1.442695
      %v1399 = vpow.pop %v1398
      %1401 = vset.pattern.permute.xlu0 0
      %1402 = vperm.xlu0 %1401, %v1388
      %v1403 = vpop.permute.xlu0 %1402
      %1406 = vset.pattern.permute.xlu0 0
      %1407 = vperm.xlu0 %1406, %v1389
      %v1408 = vpop.permute.xlu0 %1407
      %1411 = vset.pattern.permute.xlu0 0
      %1412 = vperm.xlu0 %1411, %v1390
      %v1413 = vpop.permute.xlu0 %1412
      %v1415 = vsub.f32 %v1372, %v1403
      %v1416 = vsub.f32 %v1373, %v1408
      %v1417 = vsub.f32 %v1374, %v1413
      %v1418 = vmul.f32 %v1415, 1.442695
      %v1419 = vpow.pop %v1418
      %v1420 = vmul.f32 %v1416, 1.442695
      %v1421 = vpow.pop %v1420
      %v1422 = vmul.f32 %v1417, 1.442695
      %v1423 = vpow.pop %v1422
      %s1424 = scalar_lea.vmem [#allocation4], 24
      %v1425 = vld [vmem:[%s1424] sm:$0xff]
      %v1426 = vld [vmem:[%s1424 + $0x8] sm:$0xff]
      %v1427 = vld [vmem:[%s1424 + $0x10] sm:$0xff]
      %v1428 = vmul.f32 %v1395, %v1425
      %v1429 = vmul.f32 %v1397, %v1426
      %v1430 = vmul.f32 %v1399, %v1427
      %v1431 = vsel %vm1118, %v1419, 0.0
      %1432 = vadd.xlane.f32.xlu0 %v1431
      %v1433 = vpop.xlane.xlu0 %1432
      %v1434 = vsel %vm1118, %v1421, 0.0
      %1435 = vadd.xlane.f32.xlu0 %v1434
      %v1436 = vpop.xlane.xlu0 %1435
      %v1437 = vsel %vm1118, %v1423, 0.0
      %1438 = vadd.xlane.f32.xlu0 %v1437
      %v1439 = vpop.xlane.xlu0 %1438
      %v1440 = vadd.f32 %v1428, %v1433
      %v1441 = vadd.f32 %v1429, %v1436
      %v1442 = vadd.f32 %v1430, %v1439
      %1443 = vst.msk [vmem:[%s1424] sm:$0xff] %vm1182, %v1440
      %1444 = vst.msk [vmem:[%s1424 + $0x8] sm:$0xff] %vm1182, %v1441
      %1445 = vst.msk [vmem:[%s1424 + $0x10] sm:$0xff] %vm1182, %v1442
      %s1446 = scalar_lea.vmem [#allocation5], 24
      %v1447 = vld [vmem:[%s1446] sm:$0xff]
      %v1448 = vld [vmem:[%s1446 + $0x8] sm:$0xff]
      %v1449 = vld [vmem:[%s1446 + $0x10] sm:$0xff]
      %1451 = vset.pattern.permute.xlu0 0
      %1452 = vperm.xlu0 %1451, %v1395
      %v1453 = vpop.permute.xlu0 %1452
      %1456 = vset.pattern.permute.xlu0 0
      %1457 = vperm.xlu0 %1456, %v1397
      %v1458 = vpop.permute.xlu0 %1457
      %1461 = vset.pattern.permute.xlu0 0
      %1462 = vperm.xlu0 %1461, %v1399
      %v1463 = vpop.permute.xlu0 %1462
      %v1465 = vmul.f32 %v1453, %v1447
      %v1466 = vmul.f32 %v1458, %v1448
      %v1467 = vmul.f32 %v1463, %v1449
      %v1468 = vpack.c.bf16 %v1421, %v1419
      %v1469 = vpack.c.bf16 %v1423, %v1423
      %v1471 = vsel %vm1118, %v1468, 0
      %v1474 = vsel %vm1118, %v1469, 0
      %v1477 = vsel %vm1215, %v1329, 0
      %1479 = vmatpush.bf16.msra.mxu0 0
      %1480 = vmatpush.bf16.msra.mxu0 0
      %1481 = vmatpush.bf16.msra.mxu0 0
      %1482 = vmatpush.bf16.msra.mxu0 0
      %1483 = vmatpush.bf16.msra.mxu0 0
      %1484 = vmatpush.bf16.msra.mxu0 0
      %1485 = vmatpush.bf16.msra.mxu0 %v1477
      %1486 = vmatpush.bf16.msra.mxu0 %v1328
      %1487 = vmatmul.bf16.gmra.mxu0 %v1471
      %v1488 = vpop.f32.mrf.mxu0
      %v1489 = vadd.f32 0.0, %v1488
      %v1490 = vpop.f32.mrf.mxu0
      %v1491 = vadd.f32 0.0, %v1490
      %1492 = vmatmul.bf16.gmra.mxu0 %v1474
      %v1493 = vpop.f32.mrf.mxu0
      %v1494 = vadd.f32 0.0, %v1493
      %v1495 = vpop.f32.mrf.mxu0
      %1496 = vdwg.mxu0
      %v1497 = vadd.f32 %v1465, %v1489
      %v1498 = vadd.f32 %v1466, %v1491
      %v1499 = vadd.f32 %v1467, %v1494
      %1500 = vst.msk [vmem:[%s1446] sm:$0xff] %vm1081, %v1497
      %1501 = vst.msk [vmem:[%s1446 + $0x8] sm:$0xff] %vm1081, %v1498
      %1502 = vst.msk [vmem:[%s1446 + $0x10] sm:$0xff] %vm1081, %v1499
      %1503 = vst.msk [vmem:[%s1375] sm:$0xff] %vm1182, %v1388
      %1504 = vst.msk [vmem:[%s1375 + $0x8] sm:$0xff] %vm1182, %v1389
      %1505 = vst.msk [vmem:[%s1375 + $0x10] sm:$0xff] %vm1182, %v1390
      // Predicated region
      $region93: #{dftr_forward.3} parent=87 // pred_check
        %p1506 = pneg %p668
      $region94: #{dftr_forward.3} parent=87 // pred_check_branch
        %1508 = sbr.rel (%p1506) target = $region96
      $region95: #{dftr_forward.3} parent=87 // pred_region
        %v1509 = vld [vmem:[#allocation4] sm:$0xff]
        %v1510 = vld [vmem:[#allocation4 + $0x8] sm:$0xff]
        %v1511 = vld [vmem:[#allocation4 + $0x10] sm:$0xff]
        %v1512 = vrcp.pop %v1509
        %v1513 = vrcp.pop %v1510
        %v1514 = vrcp.pop %v1511
        %v1515 = vld [vmem:[#allocation5] sm:$0xff]
        %v1516 = vld [vmem:[#allocation5 + $0x8] sm:$0xff]
        %v1517 = vld [vmem:[#allocation5 + $0x10] sm:$0xff]
        %1519 = vset.pattern.permute.xlu0 0
        %1520 = vperm.xlu0 %1519, %v1512
        %v1521 = vpop.permute.xlu0 %1520
        %1524 = vset.pattern.permute.xlu0 0
        %1525 = vperm.xlu0 %1524, %v1513
        %v1526 = vpop.permute.xlu0 %1525
        %1529 = vset.pattern.permute.xlu0 0
        %1530 = vperm.xlu0 %1529, %v1514
        %v1531 = vpop.permute.xlu0 %1530
        %v1533 = vmul.f32 %v1515, %v1521
        %v1534 = vmul.f32 %v1516, %v1526
        %v1535 = vmul.f32 %v1517, %v1531
        %v1536 = vpack.c.bf16 %v1534, %v1533
        %v1537 = vpack.c.bf16 %v1535, %v1535
        %v1538 = vld [vmem:[%s7] sm:$0xf]
        %v1539 = vld [vmem:[%s7 + $0x4] sm:$0xf]
        %v1540 = vld [vmem:[%s1424] sm:$0xff]
        %v1541 = vld [vmem:[%s1424 + $0x8] sm:$0xff]
        %v1542 = vld [vmem:[%s1424 + $0x10] sm:$0xff]
        %v1543 = vrcp.pop %v1540
        %v1544 = vrcp.pop %v1541
        %v1545 = vrcp.pop %v1542
        %v1546 = vld [vmem:[%s1446] sm:$0xff]
        %v1547 = vld [vmem:[%s1446 + $0x8] sm:$0xff]
        %v1548 = vld [vmem:[%s1446 + $0x10] sm:$0xff]
        %1550 = vset.pattern.permute.xlu0 0
        %1551 = vperm.xlu0 %1550, %v1543
        %v1552 = vpop.permute.xlu0 %1551
        %1555 = vset.pattern.permute.xlu0 0
        %1556 = vperm.xlu0 %1555, %v1544
        %v1557 = vpop.permute.xlu0 %1556
        %1560 = vset.pattern.permute.xlu0 0
        %1561 = vperm.xlu0 %1560, %v1545
        %v1562 = vpop.permute.xlu0 %1561
        %v1564 = vmul.f32 %v1546, %v1552
        %v1565 = vmul.f32 %v1547, %v1557
        %v1566 = vmul.f32 %v1548, %v1562
        %v1567 = vpack.c.bf16 %v1565, %v1564
        %v1568 = vpack.c.bf16 %v1566, %v1566
        %s1569 = scalar_lea.vmem %s7, 8
        %v1570 = vld [vmem:[%s1569] sm:$0xf]
        %v1571 = vld [vmem:[%s1569 + $0x4] sm:$0xf]
        %v1574 = vunpack.c.l.b16 %v1570
        %v1575 = vunpack.c.l.b16 %v1571
        %v1576 = vpack.c.b16 %v1575, %v1574
        %v1579 = vsel %vm1081, %v1567, 0
        %v1582 = vsel %vm1081, %v1568, 0
        %1584 = vmatpush.bf16.msra.mxu0 0
        %1585 = vmatpush.bf16.msra.mxu0 0
        %1586 = vmatpush.bf16.msra.mxu0 0
        %1587 = vmatpush.bf16.msra.mxu0 0
        %1588 = vmatpush.bf16.msra.mxu0 0
        %1589 = vmatpush.bf16.msra.mxu0 0
        %1590 = vmatpush.bf16.msra.mxu0 0
        %1591 = vmatpush.bf16.msra.mxu0 %v1576
        %1592 = vmatmul.bf16.gmra.mxu0 %v1579
        %v1593 = vpop.f32.mrf.mxu0
        %v1594 = vadd.f32 0.0, %v1593
        %v1595 = vpop.f32.mrf.mxu0
        %v1596 = vadd.f32 0.0, %v1595
        %1597 = vmatmul.bf16.gmra.mxu0 %v1582
        %v1598 = vpop.f32.mrf.mxu0
        %v1599 = vadd.f32 0.0, %v1598
        %v1600 = vpop.f32.mrf.mxu0
        %1601 = vdwg.mxu0
        %v1604 = vunpack.c.l.b16 %v1538
        %v1605 = vunpack.c.l.b16 %v1539
        %v1606 = vpack.c.b16 %v1605, %v1604
        %v1609 = vsel %vm1081, %v1536, 0
        %v1612 = vsel %vm1081, %v1537, 0
        %1614 = vmatpush.bf16.msra.mxu0 0
        %1615 = vmatpush.bf16.msra.mxu0 0
        %1616 = vmatpush.bf16.msra.mxu0 0
        %1617 = vmatpush.bf16.msra.mxu0 0
        %1618 = vmatpush.bf16.msra.mxu0 0
        %1619 = vmatpush.bf16.msra.mxu0 0
        %1620 = vmatpush.bf16.msra.mxu0 0
        %1621 = vmatpush.bf16.msra.mxu0 %v1606
        %1622 = vmatmul.bf16.gmra.mxu0 %v1609
        %v1623 = vpop.f32.mrf.mxu0
        %v1624 = vadd.f32 %v1594, %v1623
        %v1625 = vpop.f32.mrf.mxu0
        %v1626 = vadd.f32 %v1596, %v1625
        %1627 = vmatmul.bf16.gmra.mxu0 %v1612
        %v1628 = vpop.f32.mrf.mxu0
        %v1629 = vadd.f32 %v1599, %v1628
        %v1630 = vpop.f32.mrf.mxu0
        %1631 = vdwg.mxu0
        %v1632 = vadd.f32 %v665, %v1624
        %v1633 = vadd.f32 %v666, %v1626
        %v1634 = vadd.f32 %v667, %v1629
        %v1635 = vld [vmem:[%s13] sm:$0x1]
        %v1637 = vperm.slane %v1635, 0
        %v1639 = vadd.f32 %v1632, %v1637
        %v1640 = vadd.f32 %v1633, %v1637
        %v1641 = vadd.f32 %v1634, %v1637
        %v1642 = vsel %vm900, %v1639, 0.0
        %1643 = vadd.xlane.f32.xlu0 %v1642
        %v1644 = vpop.xlane.xlu0 %1643
        %v1645 = vsel %vm900, %v1640, 0.0
        %1646 = vadd.xlane.f32.xlu0 %v1645
        %v1647 = vpop.xlane.xlu0 %1646
        %v1648 = vsel %vm900, %v1641, 0.0
        %1649 = vadd.xlane.f32.xlu0 %v1648
        %v1650 = vpop.xlane.xlu0 %1649
        %v1651 = vmul.f32 %v1644, %v916
        %v1652 = vmul.f32 %v1647, %v916
        %v1653 = vmul.f32 %v1650, %v916
        %v1654 = vsub.f32 %v1639, %v1651
        %v1655 = vsub.f32 %v1640, %v1652
        %v1656 = vsub.f32 %v1641, %v1653
        %v1657 = vmul.f32 %v1654, %v1654
        %v1658 = vmul.f32 %v1655, %v1655
        %v1659 = vmul.f32 %v1656, %v1656
        %v1660 = vsel %vm900, %v1657, 0.0
        %1661 = vadd.xlane.f32.xlu0 %v1660
        %v1662 = vpop.xlane.xlu0 %1661
        %v1663 = vsel %vm900, %v1658, 0.0
        %1664 = vadd.xlane.f32.xlu0 %v1663
        %v1665 = vpop.xlane.xlu0 %1664
        %v1666 = vsel %vm900, %v1659, 0.0
        %1667 = vadd.xlane.f32.xlu0 %v1666
        %v1668 = vpop.xlane.xlu0 %1667
        %v1669 = vmul.f32 %v1662, %v916
        %v1670 = vmul.f32 %v1665, %v916
        %v1671 = vmul.f32 %v1668, %v916
        %v1672 = vadd.f32 %v1669, 1e-05
        %v1673 = vadd.f32 %v1670, 1e-05
        %v1674 = vadd.f32 %v1671, 1e-05
        %v1675 = vrsqrt.pop %v1672
        %v1676 = vmul.f32 %v1675, %v1672
        %v1677 = vmul.f32 %v1676, %v1675
        %v1678 = vmul.f32 0.5, %v1677
        %v1679 = vsub.f32 1.5, %v1678
        %v1680 = vmul.f32 %v1675, %v1679
        %vm1681 = vweird.f32 %v1672
        %vm1682 = vweird.f32 %v1675
        %vm1683 = vmor %vm1681, %vm1682
        %v1684 = vsel %vm1683, %v1675, %v1680
        %v1685 = vrsqrt.pop %v1673
        %v1686 = vmul.f32 %v1685, %v1673
        %v1687 = vmul.f32 %v1686, %v1685
        %v1688 = vmul.f32 0.5, %v1687
        %v1689 = vsub.f32 1.5, %v1688
        %v1690 = vmul.f32 %v1685, %v1689
        %vm1691 = vweird.f32 %v1673
        %vm1692 = vweird.f32 %v1685
        %vm1693 = vmor %vm1691, %vm1692
        %v1694 = vsel %vm1693, %v1685, %v1690
        %v1695 = vrsqrt.pop %v1674
        %v1696 = vmul.f32 %v1695, %v1674
        %v1697 = vmul.f32 %v1696, %v1695
        %v1698 = vmul.f32 0.5, %v1697
        %v1699 = vsub.f32 1.5, %v1698
        %v1700 = vmul.f32 %v1695, %v1699
        %vm1701 = vweird.f32 %v1674
        %vm1702 = vweird.f32 %v1695
        %vm1703 = vmor %vm1701, %vm1702
        %v1704 = vsel %vm1703, %v1695, %v1700
        %v1705 = vmul.f32 %v1654, %v1684
        %v1706 = vmul.f32 %v1655, %v1694
        %v1707 = vmul.f32 %v1656, %v1704
        %v1708 = vperm.slane %v631, 2
        %v1709 = vmul.f32 %v1705, %v1708
        %v1710 = vmul.f32 %v1706, %v1708
        %v1711 = vmul.f32 %v1707, %v1708
        %v1712 = vperm.slane %v631, 3
        %v1713 = vadd.f32 %v1709, %v1712
        %v1714 = vadd.f32 %v1710, %v1712
        %v1715 = vadd.f32 %v1711, %v1712
        %v1716 = vpack.c.bf16 %v1714, %v1713
        %v1717 = vpack.c.bf16 %v1715, %v1715
        %v1718 = vld [vmem:[%s8] sm:$0xf]
        %v1719 = vld [vmem:[%s8 + $0x4] sm:$0xf]
        %v1720 = vld [vmem:[%s8 + $0x8] sm:$0xf]
        %v1721 = vld [vmem:[%s8 + $0xc] sm:$0xf]
        %v1722 = vld [vmem:[%s14] sm:$0x1]
        %v1724 = vperm.slane %v1722, 0
        %v1730 = vunpack.c.l.b16 %v1718
        %v1731 = vunpack.c.l.b16 %v1719
        %v1732 = vunpack.c.l.b16 %v1720
        %v1733 = vunpack.c.l.b16 %v1721
        %v1734 = vpack.c.b16 %v1731, %v1730
        %v1735 = vpack.c.b16 %v1733, %v1732
        %v1739 = vsel %vm900, %v1716, 0
        %v1742 = vsel %vm900, %v1717, 0
        %1744 = vmatpush.bf16.msra.mxu0 0
        %1745 = vmatpush.bf16.msra.mxu0 0
        %1746 = vmatpush.bf16.msra.mxu0 0
        %1747 = vmatpush.bf16.msra.mxu0 0
        %1748 = vmatpush.bf16.msra.mxu0 0
        %1749 = vmatpush.bf16.msra.mxu0 0
        %1750 = vmatpush.bf16.msra.mxu0 %v1735
        %1751 = vmatpush.bf16.msra.mxu0 %v1734
        %1752 = vmatmul.bf16.gmra.mxu0 %v1739
        %v1753 = vpop.f32.mrf.mxu0
        %v1754 = vadd.f32 %v1724, %v1753
        %v1755 = vpop.f32.mrf.mxu0
        %v1756 = vadd.f32 %v1724, %v1755
        %1757 = vmatmul.bf16.gmra.mxu0 %v1742
        %v1758 = vpop.f32.mrf.mxu0
        %v1759 = vadd.f32 %v1724, %v1758
        %v1760 = vpop.f32.mrf.mxu0
        %1761 = vdwg.mxu0
        %v1762 = vmul.f32 %v1754, 0.5
        %v1763 = vmul.f32 %v1756, 0.5
        %v1764 = vmul.f32 %v1759, 0.5
        %v1765 = vmul.f32 %v1754, 0.70710677
        %v1766 = vmul.f32 %v1756, 0.70710677
        %v1767 = vmul.f32 %v1759, 0.70710677
        %v1768 = vmul.f32 %v1765, %v1765
        %v1769 = vmin.f32 16.0, %v1768
        %v1770 = vmul.f32 %v1769, 2.1237322e-06
        %v1771 = vadd.f32 %v1770, 0.00028619796
        %v1772 = vmul.f32 %v1769, %v1771
        %v1773 = vadd.f32 %v1772, 0.0036580483
        %v1774 = vmul.f32 %v1769, %v1773
        %v1775 = vadd.f32 %v1774, 0.05243302
        %v1776 = vmul.f32 %v1769, %v1775
        %v1777 = vadd.f32 %v1776, 0.18741608
        %v1778 = vmul.f32 %v1769, %v1777
        %v1779 = vadd.f32 %v1778, 1.1283791
        %v1780 = vmul.f32 %v1765, %v1779
        %v1781 = vmul.f32 %v1769, 3.8918573e-05
        %v1782 = vadd.f32 %v1781, 0.001143296
        %v1783 = vmul.f32 %v1769, %v1782
        %v1784 = vadd.f32 %v1783, 0.014752088
        %v1785 = vmul.f32 %v1769, %v1784
        %v1786 = vadd.f32 %v1785, 0.112945676
        %v1787 = vmul.f32 %v1769, %v1786
        %v1788 = vadd.f32 %v1787, 0.4994258
        %v1789 = vmul.f32 %v1769, %v1788
        %v1790 = vadd.f32 %v1789, 1.0
        %v1791 = vrcp.pop %v1790
        %v1792 = vmul.f32 %v1790, %v1791
        %v1793 = vsub.f32 1.0, %v1792
        %v1794 = vmul.f32 %v1791, %v1793
        %v1795 = vadd.f32 %v1791, %v1794
        %vm1796 = vweird.f32 %v1790
        %vm1797 = vweird.f32 %v1791
        %vm1798 = vmor %vm1796, %vm1797
        %v1799 = vsel %vm1798, %v1791, %v1795
        %v1800 = vand.u32 2147483647, %v1790
        %vm1801 = vcmp.eq.f32.partialorder %v1800, 8.507059e+37
        %v1802 = vand.u32 %v1790, 2147483648
        %v1803 = vor.u32 1.1754944e-38, %v1802
        %v1804 = vsel %vm1801, %v1803, %v1799
        %v1805 = vmul.f32 %v1780, %v1804
        %v1806 = vmin.f32 %v1805, 1.0
        %v1807 = vmax.f32 %v1806, -1.0
        %v1808 = vmul.f32 %v1766, %v1766
        %v1809 = vmin.f32 16.0, %v1808
        %v1810 = vmul.f32 %v1809, 2.1237322e-06
        %v1811 = vadd.f32 %v1810, 0.00028619796
        %v1812 = vmul.f32 %v1809, %v1811
        %v1813 = vadd.f32 %v1812, 0.0036580483
        %v1814 = vmul.f32 %v1809, %v1813
        %v1815 = vadd.f32 %v1814, 0.05243302
        %v1816 = vmul.f32 %v1809, %v1815
        %v1817 = vadd.f32 %v1816, 0.18741608
        %v1818 = vmul.f32 %v1809, %v1817
        %v1819 = vadd.f32 %v1818, 1.1283791
        %v1820 = vmul.f32 %v1766, %v1819
        %v1821 = vmul.f32 %v1809, 3.8918573e-05
        %v1822 = vadd.f32 %v1821, 0.001143296
        %v1823 = vmul.f32 %v1809, %v1822
        %v1824 = vadd.f32 %v1823, 0.014752088
        %v1825 = vmul.f32 %v1809, %v1824
        %v1826 = vadd.f32 %v1825, 0.112945676
        %v1827 = vmul.f32 %v1809, %v1826
        %v1828 = vadd.f32 %v1827, 0.4994258
        %v1829 = vmul.f32 %v1809, %v1828
        %v1830 = vadd.f32 %v1829, 1.0
        %v1831 = vrcp.pop %v1830
        %v1832 = vmul.f32 %v1830, %v1831
        %v1833 = vsub.f32 1.0, %v1832
        %v1834 = vmul.f32 %v1831, %v1833
        %v1835 = vadd.f32 %v1831, %v1834
        %vm1836 = vweird.f32 %v1830
        %vm1837 = vweird.f32 %v1831
        %vm1838 = vmor %vm1836, %vm1837
        %v1839 = vsel %vm1838, %v1831, %v1835
        %v1840 = vand.u32 2147483647, %v1830
        %vm1841 = vcmp.eq.f32.partialorder %v1840, 8.507059e+37
        %v1842 = vand.u32 %v1830, 2147483648
        %v1843 = vor.u32 1.1754944e-38, %v1842
        %v1844 = vsel %vm1841, %v1843, %v1839
        %v1845 = vmul.f32 %v1820, %v1844
        %v1846 = vmin.f32 %v1845, 1.0
        %v1847 = vmax.f32 %v1846, -1.0
        %v1848 = vmul.f32 %v1767, %v1767
        %v1849 = vmin.f32 16.0, %v1848
        %v1850 = vmul.f32 %v1849, 2.1237322e-06
        %v1851 = vadd.f32 %v1850, 0.00028619796
        %v1852 = vmul.f32 %v1849, %v1851
        %v1853 = vadd.f32 %v1852, 0.0036580483
        %v1854 = vmul.f32 %v1849, %v1853
        %v1855 = vadd.f32 %v1854, 0.05243302
        %v1856 = vmul.f32 %v1849, %v1855
        %v1857 = vadd.f32 %v1856, 0.18741608
        %v1858 = vmul.f32 %v1849, %v1857
        %v1859 = vadd.f32 %v1858, 1.1283791
        %v1860 = vmul.f32 %v1767, %v1859
        %v1861 = vmul.f32 %v1849, 3.8918573e-05
        %v1862 = vadd.f32 %v1861, 0.001143296
        %v1863 = vmul.f32 %v1849, %v1862
        %v1864 = vadd.f32 %v1863, 0.014752088
        %v1865 = vmul.f32 %v1849, %v1864
        %v1866 = vadd.f32 %v1865, 0.112945676
        %v1867 = vmul.f32 %v1849, %v1866
        %v1868 = vadd.f32 %v1867, 0.4994258
        %v1869 = vmul.f32 %v1849, %v1868
        %v1870 = vadd.f32 %v1869, 1.0
        %v1871 = vrcp.pop %v1870
        %v1872 = vmul.f32 %v1870, %v1871
        %v1873 = vsub.f32 1.0, %v1872
        %v1874 = vmul.f32 %v1871, %v1873
        %v1875 = vadd.f32 %v1871, %v1874
        %vm1876 = vweird.f32 %v1870
        %vm1877 = vweird.f32 %v1871
        %vm1878 = vmor %vm1876, %vm1877
        %v1879 = vsel %vm1878, %v1871, %v1875
        %v1880 = vand.u32 2147483647, %v1870
        %vm1881 = vcmp.eq.f32.partialorder %v1880, 8.507059e+37
        %v1882 = vand.u32 %v1870, 2147483648
        %v1883 = vor.u32 1.1754944e-38, %v1882
        %v1884 = vsel %vm1881, %v1883, %v1879
        %v1885 = vmul.f32 %v1860, %v1884
        %v1886 = vmin.f32 %v1885, 1.0
        %v1887 = vmax.f32 %v1886, -1.0
        %v1888 = vadd.f32 %v1807, 1.0
        %v1889 = vadd.f32 %v1847, 1.0
        %v1890 = vadd.f32 %v1887, 1.0
        %v1891 = vmul.f32 %v1762, %v1888
        %v1892 = vmul.f32 %v1763, %v1889
        %v1893 = vmul.f32 %v1764, %v1890
        %v1894 = vpack.c.bf16 %v1892, %v1891
        %v1895 = vpack.c.bf16 %v1893, %v1893
        %v1896 = vld [vmem:[%s9] sm:$0xf]
        %v1897 = vld [vmem:[%s9 + $0x4] sm:$0xf]
        %v1898 = vld [vmem:[%s9 + $0x8] sm:$0xf]
        %v1899 = vld [vmem:[%s9 + $0xc] sm:$0xf]
        %v1900 = vld [vmem:[%s9 + $0x10] sm:$0xf]
        %v1901 = vld [vmem:[%s9 + $0x14] sm:$0xf]
        %v1902 = vld [vmem:[%s9 + $0x18] sm:$0xf]
        %v1903 = vld [vmem:[%s9 + $0x1c] sm:$0xf]
        %v1904 = vld [vmem:[%s15] sm:$0x1]
        %v1906 = vperm.slane %v1904, 0
        %v1916 = vunpack.c.l.b16 %v1896
        %v1917 = vunpack.c.l.b16 %v1897
        %v1918 = vunpack.c.l.b16 %v1898
        %v1919 = vunpack.c.l.b16 %v1899
        %v1920 = vunpack.c.l.b16 %v1900
        %v1921 = vunpack.c.l.b16 %v1901
        %v1922 = vunpack.c.l.b16 %v1902
        %v1923 = vunpack.c.l.b16 %v1903
        %v1924 = vpack.c.b16 %v1917, %v1916
        %v1925 = vpack.c.b16 %v1919, %v1918
        %v1926 = vpack.c.b16 %v1921, %v1920
        %v1927 = vpack.c.b16 %v1923, %v1922
        %vm1932 = vcmask 523264
        %v1934 = vsel %vm1932, %v1894, 0
        %v1937 = vsel %vm1932, %v1895, 0
        %1939 = vmatpush.bf16.msra.mxu0 0
        %1940 = vmatpush.bf16.msra.mxu0 0
        %1941 = vmatpush.bf16.msra.mxu0 0
        %1942 = vmatpush.bf16.msra.mxu0 0
        %1943 = vmatpush.bf16.msra.mxu0 %v1927
        %1944 = vmatpush.bf16.msra.mxu0 %v1926
        %1945 = vmatpush.bf16.msra.mxu0 %v1925
        %1946 = vmatpush.bf16.msra.mxu0 %v1924
        %1947 = vmatmul.bf16.gmra.mxu0 %v1934
        %v1948 = vpop.f32.mrf.mxu0
        %v1949 = vadd.f32 %v1906, %v1948
        %v1950 = vpop.f32.mrf.mxu0
        %v1951 = vadd.f32 %v1906, %v1950
        %1952 = vmatmul.bf16.gmra.mxu0 %v1937
        %v1953 = vpop.f32.mrf.mxu0
        %v1954 = vadd.f32 %v1906, %v1953
        %v1955 = vpop.f32.mrf.mxu0
        %1956 = vdwg.mxu0
        %v1957 = vadd.f32 %v1639, %v1949
        %v1958 = vadd.f32 %v1640, %v1951
        %v1959 = vadd.f32 %v1641, %v1954
        %v1960 = vsel %vm900, %v1957, 0.0
        %1961 = vadd.xlane.f32.xlu0 %v1960
        %v1962 = vpop.xlane.xlu0 %1961
        %v1963 = vsel %vm900, %v1958, 0.0
        %1964 = vadd.xlane.f32.xlu0 %v1963
        %v1965 = vpop.xlane.xlu0 %1964
        %v1966 = vsel %vm900, %v1959, 0.0
        %1967 = vadd.xlane.f32.xlu0 %v1966
        %v1968 = vpop.xlane.xlu0 %1967
        %v1969 = vmul.f32 %v1962, %v916
        %v1970 = vmul.f32 %v1965, %v916
        %v1971 = vmul.f32 %v1968, %v916
        %v1972 = vsub.f32 %v1957, %v1969
        %v1973 = vsub.f32 %v1958, %v1970
        %v1974 = vsub.f32 %v1959, %v1971
        %v1975 = vmul.f32 %v1972, %v1972
        %v1976 = vmul.f32 %v1973, %v1973
        %v1977 = vmul.f32 %v1974, %v1974
        %v1978 = vsel %vm900, %v1975, 0.0
        %1979 = vadd.xlane.f32.xlu0 %v1978
        %v1980 = vpop.xlane.xlu0 %1979
        %v1981 = vsel %vm900, %v1976, 0.0
        %1982 = vadd.xlane.f32.xlu0 %v1981
        %v1983 = vpop.xlane.xlu0 %1982
        %v1984 = vsel %vm900, %v1977, 0.0
        %1985 = vadd.xlane.f32.xlu0 %v1984
        %v1986 = vpop.xlane.xlu0 %1985
        %v1987 = vmul.f32 %v1980, %v916
        %v1988 = vmul.f32 %v1983, %v916
        %v1989 = vmul.f32 %v1986, %v916
        %v1990 = vadd.f32 %v1987, 1e-05
        %v1991 = vadd.f32 %v1988, 1e-05
        %v1992 = vadd.f32 %v1989, 1e-05
        %v1993 = vrsqrt.pop %v1990
        %v1994 = vmul.f32 %v1993, %v1990
        %v1995 = vmul.f32 %v1994, %v1993
        %v1996 = vmul.f32 0.5, %v1995
        %v1997 = vsub.f32 1.5, %v1996
        %v1998 = vmul.f32 %v1993, %v1997
        %vm1999 = vweird.f32 %v1990
        %vm2000 = vweird.f32 %v1993
        %vm2001 = vmor %vm1999, %vm2000
        %v2002 = vsel %vm2001, %v1993, %v1998
        %v2003 = vrsqrt.pop %v1991
        %v2004 = vmul.f32 %v2003, %v1991
        %v2005 = vmul.f32 %v2004, %v2003
        %v2006 = vmul.f32 0.5, %v2005
        %v2007 = vsub.f32 1.5, %v2006
        %v2008 = vmul.f32 %v2003, %v2007
        %vm2009 = vweird.f32 %v1991
        %vm2010 = vweird.f32 %v2003
        %vm2011 = vmor %vm2009, %vm2010
        %v2012 = vsel %vm2011, %v2003, %v2008
        %v2013 = vrsqrt.pop %v1992
        %v2014 = vmul.f32 %v2013, %v1992
        %v2015 = vmul.f32 %v2014, %v2013
        %v2016 = vmul.f32 0.5, %v2015
        %v2017 = vsub.f32 1.5, %v2016
        %v2018 = vmul.f32 %v2013, %v2017
        %vm2019 = vweird.f32 %v1992
        %vm2020 = vweird.f32 %v2013
        %vm2021 = vmor %vm2019, %vm2020
        %v2022 = vsel %vm2021, %v2013, %v2018
        %v2023 = vmul.f32 %v1972, %v2002
        %v2024 = vmul.f32 %v1973, %v2012
        %v2025 = vmul.f32 %v1974, %v2022
        %v2026 = vperm.slane %v631, 4
        %v2027 = vmul.f32 %v2023, %v2026
        %v2028 = vmul.f32 %v2024, %v2026
        %v2029 = vmul.f32 %v2025, %v2026
        %v2030 = vperm.slane %v631, 5
        %v2031 = vadd.f32 %v2027, %v2030
        %v2032 = vadd.f32 %v2028, %v2030
        %v2033 = vadd.f32 %v2029, %v2030
        %2034 = vxpose.xlu0.b32.start [1/16] %v2031, 128
        %2035 = vxpose.xlu0.b32.cont [2/16] %v2032, 128
        %2036 = vxpose.xlu0.b32.cont [3/16] %v2033, 128
        %2037 = vxpose.xlu0.b32.cont [4/16] 0.0, 128
        %2038 = vxpose.xlu0.b32.cont [5/16] 0.0, 128
        %2039 = vxpose.xlu0.b32.cont [6/16] 0.0, 128
        %2040 = vxpose.xlu0.b32.cont [7/16] 0.0, 128
        %2041 = vxpose.xlu0.b32.cont [8/16] 0.0, 128
        %2042 = vxpose.xlu0.b32.cont [9/16] 0.0, 128
        %2043 = vxpose.xlu0.b32.cont [10/16] 0.0, 128
        %2044 = vxpose.xlu0.b32.cont [11/16] 0.0, 128
        %2045 = vxpose.xlu0.b32.cont [12/16] 0.0, 128
        %2046 = vxpose.xlu0.b32.cont [13/16] 0.0, 128
        %2047 = vxpose.xlu0.b32.cont [14/16] 0.0, 128
        %2048 = vxpose.xlu0.b32.cont [15/16] 0.0, 128
        %2049 = vxpose.xlu0.b32.end [16/16] 0.0, 128
        %v2050 = vpop.trf.xlu0
        %v2051 = vpop.trf.xlu0
        %v2052 = vpop.trf.xlu0
        %v2053 = vpop.trf.xlu0
        %v2054 = vpop.trf.xlu0
        %v2055 = vpop.trf.xlu0
        %v2056 = vpop.trf.xlu0
        %v2057 = vpop.trf.xlu0
        %v2058 = vpop.trf.xlu0
        %v2059 = vpop.trf.xlu0
        %v2060 = vpop.trf.xlu0
        %v2061 = vpop.trf.xlu0
        %v2062 = vpop.trf.xlu0
        %v2063 = vpop.trf.xlu0
        %v2064 = vpop.trf.xlu0
        %v2065 = vpop.trf.xlu0
        %2066 = vst.msk [vmem:[%s627] sm:$0xff] %vm1118, %v2050
        %2067 = vst.msk [vmem:[%s627 + $0x8] sm:$0xff] %vm1118, %v2051
        %2068 = vst.msk [vmem:[%s627 + $0x10] sm:$0xff] %vm1118, %v2052
        %2069 = vst.msk [vmem:[%s627 + $0x18] sm:$0xff] %vm1118, %v2053
      $region96: #{dftr_forward.3} parent=87 // pred_fallthru
        _
      %p2070 = scmp.lt.s32.totalorder %s33, 1
      %s2071 = scalar_select %p2070, %s33, 1
      %p2072 = scmp.lt.s32.totalorder %s34, 0
      %s2073 = scalar_select %p2072, %s34, 0
      %s2074 = smul.addr %s2071, 4
      %s2075 = sadd.s32 %s2073, %s2074
      %s2076 = smul.addr %s2075, 8
      %s2077 = scalar_lea.vmem %s17, %s2076
      // Predicated region
      $region97: #{dftr_forward.3} parent=87 // pred_check
        %p2078 = pneg %p444
      $region98: #{dftr_forward.3} parent=87 // pred_check_branch
        %2080 = sbr.rel (%p2078) target = $region100
      $region99: #{dftr_forward.3} parent=87 // pred_region
        _
      $region100: #{dftr_forward.3} parent=87 // pred_fallthru
        _
    $region88: #{dftr_forward.3} parent=5 // pred_fallthru
      _
    %p2081 = scmp.le.s32.totalorder 2, %s23
    // Predicated region
    $region101: #{dftr_forward.3} parent=5 // pred_check
      %p2082 = pneg %p2081
    $region102: #{dftr_forward.3} parent=5 // pred_check_branch
      %2084 = sbr.rel (%p2082) target = $region104
    $region103: #{dftr_forward.3} parent=5 // pred_region
      %s2085 = ssub.s32 %s23, 2
      // Predicated region
      $region105: #{dftr_forward.3} parent=103 // pred_check
        %p2086 = pneg %p450
      $region106: #{dftr_forward.3} parent=103 // pred_check_branch
        %2088 = sbr.rel (%p2086) target = $region108
      $region107: #{dftr_forward.3} parent=103 // pred_region
        %p2089 = scmp.lt.s32.totalorder %s36, 1
        %s2090 = scalar_select %p2089, %s36, 1
        %p2091 = scmp.lt.s32.totalorder %s37, 0
        %s2092 = scalar_select %p2091, %s37, 0
        %s2093 = smul.addr %s2090, 4
        %s2094 = sadd.s32 %s2092, %s2093
        %s2095 = smul.addr %s2094, 8
        %s2096 = scalar_lea.vmem %s17, %s2095
      $region108: #{dftr_forward.3} parent=103 // pred_fallthru
        _
    $region104: #{dftr_forward.3} parent=5 // pred_fallthru
      _
  $region6: #{dftr_forward.3} parent=0 // loop_footer
    %s27 = sadd.s32 1, %s23
  $region7: #{dftr_forward.3} parent=0 // loop_footer_branch
    %22 = sbr.rel target = $region3
  $region8: #{dftr_forward.3} parent=0 // loop_exit
    _

</llo_original>
